<compile_context>
chip_gen: v6e
topology: v6e:2x2x1
jax: 0.10.0
libtpu: 0.0.40
codegen_flags: <defaults>
</compile_context>

<pallas_src>
import functools

import jax
import jax.numpy as jnp
from jax.experimental import pallas as pl
from jax.experimental.pallas import tpu as pltpu

D_IN, D_H, D_Z = 784, 400, 20
# Lane-padded widths (multiples of 128) so all output stores are unmasked.
D_MULV = 256            # packed [mu @ cols 0..19 | logvar @ cols 128..147]
LV_OFF = 128
D_OUT = 896             # 7 * 128 >= 784


# ----------------------------------------------------------------------------
# Pallas kernel: one batch tile of the full VAE forward
# ----------------------------------------------------------------------------
def vae_fwd_kernel(
    x_ref, eps_ref,
    w1_ref, b1_ref,       # (784, 400) bf16, (1, 400) f32
    w2_ref, b2_ref,       # (400, 256) bf16, (1, 256) f32   (fused fc21 | fc22)
    w3_ref, b3_ref,       # (20, 400)  bf16, (1, 400) f32
    w4_ref, b4_ref,       # (400, 896) bf16, (1, 896) f32   (fc4 lane-padded)
    recon_ref, mulv_ref,  # (TB, 896) f32, (TB, 256) f32
):
    x = x_ref[...]                                      # (TB, 784) f32

    # ---- encode ----
    h1 = jnp.dot(x.astype(jnp.bfloat16), w1_ref[...],
                 preferred_element_type=jnp.float32)
    h1 = jnp.maximum(h1 + b1_ref[...], 0.0)             # relu, (TB, 400) f32

    mulv = jnp.dot(h1.astype(jnp.bfloat16), w2_ref[...],
                   preferred_element_type=jnp.float32) + b2_ref[...]  # (TB, 256)
    mu = mulv[:, :D_Z]                                   # lane offset 0
    logvar = mulv[:, LV_OFF:LV_OFF + D_Z]                # lane offset 128 (aligned)

    # ---- reparameterize ----
    z = mu + eps_ref[...] * jnp.exp(0.5 * logvar)        # (TB, 20) f32

    # ---- decode ----
    h3 = jnp.dot(z.astype(jnp.bfloat16), w3_ref[...],
                 preferred_element_type=jnp.float32)
    h3 = jnp.maximum(h3 + b3_ref[...], 0.0)              # relu, (TB, 400) f32

    logits = jnp.dot(h3.astype(jnp.bfloat16), w4_ref[...],
                     preferred_element_type=jnp.float32) + b4_ref[...]  # (TB, 896)

    # sigmoid = 1 / (1 + exp(-x)): exp + approx reciprocal both go to the EUP
    # slot, keeping the VALU slots free for bias/relu/cast traffic (v5e win).
    recon_ref[...] = pl.reciprocal(1.0 + jnp.exp(-logits), approx=True)
    mulv_ref[...] = mulv                                 # packed [mu | logvar]


# ----------------------------------------------------------------------------
# Wrapper
# ----------------------------------------------------------------------------
def _round_up(n, m):
    return ((n + m - 1) // m) * m


@functools.partial(jax.jit, static_argnames=("tb_max",))
def vae_forward(x_nchw, eps, params, *, tb_max=512):
    """x_nchw: (B, 1, 28, 28) f32.  eps: (B, 20) f32.  Returns (recon, mu, logvar)."""
    B = x_nchw.shape[0]
    x = x_nchw.reshape(B, D_IN)                          # torch x.view(-1, 784)

    # Tile selection (all static under jit):
    #   * tile is a multiple of 8 (sublane alignment),
    #   * padding is bounded to < 8 rows per tile (no full-tile pad copies),
    #   * at least 2 grid steps when the batch allows, so the "parallel" grid
    #     axis actually feeds both TensorCores on v7x.
    Bp = _round_up(B, 8)
    n_tiles = max(1, pl.cdiv(Bp, tb_max))
    if n_tiles == 1 and Bp >= 16:
        n_tiles = 2
    tb = _round_up(pl.cdiv(Bp, n_tiles), 8)
    Bp = tb * n_tiles
    if Bp != B:
        x = jnp.pad(x, ((0, Bp - B), (0, 0)))
        eps = jnp.pad(eps, ((0, Bp - B), (0, 0)))

    grid = (n_tiles,)

    # x/eps/outputs blocked along batch; constant index_maps keep all
    # weights/biases VMEM-resident across grid steps (DMA'd once).
    x_spec = pl.BlockSpec((tb, D_IN), lambda i: (i, 0))
    eps_spec = pl.BlockSpec((tb, D_Z), lambda i: (i, 0))
    param_specs = [pl.BlockSpec(p.shape, lambda i: (0, 0)) for p in params]

    out_specs = (
        pl.BlockSpec((tb, D_OUT), lambda i: (i, 0)),      # recon (896 lanes)
        pl.BlockSpec((tb, D_MULV), lambda i: (i, 0)),     # packed mu|logvar (256)
    )
    out_shape = (
        jax.ShapeDtypeStruct((Bp, D_OUT), jnp.float32),
        jax.ShapeDtypeStruct((Bp, D_MULV), jnp.float32),
    )

    flops = 2 * Bp * (D_IN * D_H + D_H * D_MULV + D_Z * D_H + D_H * D_OUT)
    transcendentals = Bp * (D_Z + D_OUT)                  # exp + sigmoid
    bytes_accessed = (
        sum(int(p.size) * p.dtype.itemsize for p in params)
        + x.size * x.dtype.itemsize + eps.size * eps.dtype.itemsize
        + Bp * D_OUT * 4 + Bp * D_MULV * 4
    )

    recon, mulv = pl.pallas_call(
        vae_fwd_kernel,
        grid=grid,
        in_specs=[x_spec, eps_spec] + param_specs,
        out_specs=out_specs,
        out_shape=out_shape,
        compiler_params=pltpu.CompilerParams(
            dimension_semantics=("parallel",),            # dual-TC shard on v7x
            vmem_limit_bytes=32 * 1024 * 1024,
        ),
        cost_estimate=pl.CostEstimate(
            flops=flops,
            transcendentals=transcendentals,
            bytes_accessed=bytes_accessed,
        ),
    )(x, eps, *params)

    recon = recon[:B, :D_IN]
    mu = mulv[:B, :D_Z]
    logvar = mulv[:B, LV_OFF:LV_OFF + D_Z]
    return recon, mu, logvar


def init_params(key):
    """nn.Linear-style init; weights stored as (in, out) bf16, biases (1, out) f32.
    fc21/fc22 fused into one lane-aligned (400, 256) projection; fc4 padded to 896
    output lanes. Padded columns (weights and biases) are exactly zero."""
    dims = [
        ("fc1", D_IN, D_H),
        ("fc21", D_H, D_Z),
        ("fc22", D_H, D_Z),
        ("fc3", D_Z, D_H),
        ("fc4", D_H, D_IN),
    ]
    raw = {}
    for i, (name, fan_in, fan_out) in enumerate(dims):
        kw, kb = jax.random.split(jax.random.fold_in(key, i))
        bound = 1.0 / jnp.sqrt(fan_in)
        w = jax.random.uniform(kw, (fan_in, fan_out), jnp.float32, -bound, bound)
        b = jax.random.uniform(kb, (1, fan_out), jnp.float32, -bound, bound)
        raw[name] = (w, b)

    w1, b1 = raw["fc1"]

    w2 = jnp.zeros((D_H, D_MULV), jnp.float32)
    w2 = w2.at[:, :D_Z].set(raw["fc21"][0]).at[:, LV_OFF:LV_OFF + D_Z].set(raw["fc22"][0])
    b2 = jnp.zeros((1, D_MULV), jnp.float32)
    b2 = b2.at[:, :D_Z].set(raw["fc21"][1]).at[:, LV_OFF:LV_OFF + D_Z].set(raw["fc22"][1])

    w3, b3 = raw["fc3"]

    w4 = jnp.zeros((D_H, D_OUT), jnp.float32).at[:, :D_IN].set(raw["fc4"][0])
    b4 = jnp.zeros((1, D_OUT), jnp.float32).at[:, :D_IN].set(raw["fc4"][1])

    bf = jnp.bfloat16
    return [
        w1.astype(bf), b1,
        w2.astype(bf), b2,
        w3.astype(bf), b3,
        w4.astype(bf), b4,
    ]


if __name__ == "__main__":
    key = jax.random.PRNGKey(0)
    k_x, k_eps, k_p = jax.random.split(key, 3)

    B = 2
    x = jax.random.uniform(k_x, (B, 1, 28, 28), jnp.float32)   # MNIST-like NCHW input
    eps = jax.random.normal(k_eps, (B, D_Z), jnp.float32)      # reparameterization noise
    params = init_params(k_p)

    recon, mu, logvar = vae_forward(x, eps, params)
    jax.block_until_ready((recon, mu, logvar))

    # ---- sanity check against a pure-JAX f32 reference (bf16-quantized weights) ----
    xf = x.reshape(B, D_IN)
    w1, b1, w2, b2, w3, b3, w4, b4 = [
        p.astype(jnp.float32) if p.dtype == jnp.bfloat16 else p for p in params
    ]
    h1 = jnp.maximum(xf @ w1 + b1, 0.0)
    mu_ref = h1 @ w2[:, :D_Z] + b2[:, :D_Z]
    lv_ref = h1 @ w2[:, LV_OFF:LV_OFF + D_Z] + b2[:, LV_OFF:LV_OFF + D_Z]
    z_ref = mu_ref + eps * jnp.exp(0.5 * lv_ref)
    h3 = jnp.maximum(z_ref @ w3 + b3, 0.0)
    rec_ref = jax.nn.sigmoid(h3 @ w4[:, :D_IN] + b4[:, :D_IN])

    assert recon.shape == (B, D_IN) and mu.shape == (B, D_Z) and logvar.shape == (B, D_Z)
    # bf16 MXU inputs (f32 accumulation) + approx reciprocal -> loosened tolerance.
    assert jnp.allclose(recon, rec_ref, atol=2e-2, rtol=2e-2)
    assert jnp.allclose(mu, mu_ref, atol=2e-2, rtol=2e-2)
    assert jnp.allclose(logvar, lv_ref, atol=2e-2, rtol=2e-2)

    print("KERNEL_OK")
</pallas_src>

<mosaic_0001>
module attributes {stable_mosaic.version = 11 : i64} {
  func.func @vae_fwd_kernel(%arg0: i32, %arg1: memref<8x784xf32, #tpu.memory_space<vmem>>, %arg2: memref<8x20xf32, #tpu.memory_space<vmem>>, %arg3: memref<784x400xbf16, #tpu.memory_space<vmem>>, %arg4: memref<1x400xf32, #tpu.memory_space<vmem>>, %arg5: memref<400x256xbf16, #tpu.memory_space<vmem>>, %arg6: memref<1x256xf32, #tpu.memory_space<vmem>>, %arg7: memref<20x400xbf16, #tpu.memory_space<vmem>>, %arg8: memref<1x400xf32, #tpu.memory_space<vmem>>, %arg9: memref<400x896xbf16, #tpu.memory_space<vmem>>, %arg10: memref<1x896xf32, #tpu.memory_space<vmem>>, %arg11: memref<8x896xf32, #tpu.memory_space<vmem>>, %arg12: memref<8x256xf32, #tpu.memory_space<vmem>>) attributes {dimension_semantics = [#tpu.dimension_semantics<parallel>], iteration_bounds = array<i64: 1>, scalar_prefetch = 0 : i64, scratch_operands = 0 : i64, tpu.core_type = #tpu.core_type<tc>, window_params = [{transform_indices = @transform_0, window_bounds = array<i64: 8, 784>}, {transform_indices = @transform_1, window_bounds = array<i64: 8, 20>}, {pipeline_mode = #tpu.pipeline_mode<synchronous>, transform_indices = @transform_2, window_bounds = array<i64: 784, 400>}, {pipeline_mode = #tpu.pipeline_mode<synchronous>, transform_indices = @transform_3, window_bounds = array<i64: 1, 400>}, {pipeline_mode = #tpu.pipeline_mode<synchronous>, transform_indices = @transform_4, window_bounds = array<i64: 400, 256>}, {pipeline_mode = #tpu.pipeline_mode<synchronous>, transform_indices = @transform_5, window_bounds = array<i64: 1, 256>}, {pipeline_mode = #tpu.pipeline_mode<synchronous>, transform_indices = @transform_6, window_bounds = array<i64: 20, 400>}, {pipeline_mode = #tpu.pipeline_mode<synchronous>, transform_indices = @transform_7, window_bounds = array<i64: 1, 400>}, {pipeline_mode = #tpu.pipeline_mode<synchronous>, transform_indices = @transform_8, window_bounds = array<i64: 400, 896>}, {pipeline_mode = #tpu.pipeline_mode<synchronous>, transform_indices = @transform_9, window_bounds = array<i64: 1, 896>}, {transform_indices = @transform_10, window_bounds = array<i64: 8, 896>}, {transform_indices = @transform_11, window_bounds = array<i64: 8, 256>}]} {
    %c0 = arith.constant 0 : index
    %c0_0 = arith.constant 0 : index
    %0 = vector.load %arg1[%c0, %c0_0] : memref<8x784xf32, #tpu.memory_space<vmem>>, vector<8x784xf32>
    %1 = arith.truncf %0 : vector<8x784xf32> to vector<8x784xbf16>
    %c0_1 = arith.constant 0 : index
    %c0_2 = arith.constant 0 : index
    %2 = vector.load %arg3[%c0_1, %c0_2] : memref<784x400xbf16, #tpu.memory_space<vmem>>, vector<784x400xbf16>
    %cst = arith.constant dense<0.000000e+00> : vector<8x400xf32>
    %3 = tpu.matmul %1, %2, %cst {dimension_numbers = #tpu.dot_dimension_numbers<[1], [0], [0], [1], [0, 0, 1, 1], [], []>} : vector<8x784xbf16>, vector<784x400xbf16>, vector<8x400xf32> -> vector<8x400xf32>
    %c0_3 = arith.constant 0 : index
    %c0_4 = arith.constant 0 : index
    %4 = vector.load %arg4[%c0_3, %c0_4] : memref<1x400xf32, #tpu.memory_space<vmem>>, vector<1x400xf32>
    %5 = vector.broadcast %4 : vector<1x400xf32> to vector<8x400xf32>
    %6 = arith.addf %3, %5 : vector<8x400xf32>
    %cst_5 = arith.constant 0.000000e+00 : f32
    %7 = vector.broadcast %cst_5 : f32 to vector<8x400xf32>
    %8 = arith.maximumf %6, %7 : vector<8x400xf32>
    %9 = arith.truncf %8 : vector<8x400xf32> to vector<8x400xbf16>
    %c0_6 = arith.constant 0 : index
    %c0_7 = arith.constant 0 : index
    %10 = vector.load %arg5[%c0_6, %c0_7] : memref<400x256xbf16, #tpu.memory_space<vmem>>, vector<400x256xbf16>
    %cst_8 = arith.constant dense<0.000000e+00> : vector<8x256xf32>
    %11 = tpu.matmul %9, %10, %cst_8 {dimension_numbers = #tpu.dot_dimension_numbers<[1], [0], [0], [1], [0, 0, 1, 1], [], []>} : vector<8x400xbf16>, vector<400x256xbf16>, vector<8x256xf32> -> vector<8x256xf32>
    %c0_9 = arith.constant 0 : index
    %c0_10 = arith.constant 0 : index
    %12 = vector.load %arg6[%c0_9, %c0_10] : memref<1x256xf32, #tpu.memory_space<vmem>>, vector<1x256xf32>
    %13 = vector.broadcast %12 : vector<1x256xf32> to vector<8x256xf32>
    %14 = arith.addf %11, %13 : vector<8x256xf32>
    %15 = vector.extract_strided_slice %14 {offsets = [0, 0], sizes = [8, 20], strides = [1, 1]} : vector<8x256xf32> to vector<8x20xf32>
    %16 = vector.extract_strided_slice %14 {offsets = [0, 128], sizes = [8, 20], strides = [1, 1]} : vector<8x256xf32> to vector<8x20xf32>
    %c0_11 = arith.constant 0 : index
    %c0_12 = arith.constant 0 : index
    %17 = vector.load %arg2[%c0_11, %c0_12] : memref<8x20xf32, #tpu.memory_space<vmem>>, vector<8x20xf32>
    %cst_13 = arith.constant 5.000000e-01 : f32
    %18 = vector.broadcast %cst_13 : f32 to vector<8x20xf32>
    %19 = arith.mulf %18, %16 : vector<8x20xf32>
    %20 = math.exp %19 : vector<8x20xf32>
    %21 = arith.mulf %17, %20 : vector<8x20xf32>
    %22 = arith.addf %15, %21 : vector<8x20xf32>
    %23 = arith.truncf %22 : vector<8x20xf32> to vector<8x20xbf16>
    %c0_14 = arith.constant 0 : index
    %c0_15 = arith.constant 0 : index
    %24 = vector.load %arg7[%c0_14, %c0_15] : memref<20x400xbf16, #tpu.memory_space<vmem>>, vector<20x400xbf16>
    %cst_16 = arith.constant dense<0.000000e+00> : vector<8x400xf32>
    %25 = tpu.matmul %23, %24, %cst_16 {dimension_numbers = #tpu.dot_dimension_numbers<[1], [0], [0], [1], [0, 0, 1, 1], [], []>} : vector<8x20xbf16>, vector<20x400xbf16>, vector<8x400xf32> -> vector<8x400xf32>
    %c0_17 = arith.constant 0 : index
    %c0_18 = arith.constant 0 : index
    %26 = vector.load %arg8[%c0_17, %c0_18] : memref<1x400xf32, #tpu.memory_space<vmem>>, vector<1x400xf32>
    %27 = vector.broadcast %26 : vector<1x400xf32> to vector<8x400xf32>
    %28 = arith.addf %25, %27 : vector<8x400xf32>
    %cst_19 = arith.constant 0.000000e+00 : f32
    %29 = vector.broadcast %cst_19 : f32 to vector<8x400xf32>
    %30 = arith.maximumf %28, %29 : vector<8x400xf32>
    %31 = arith.truncf %30 : vector<8x400xf32> to vector<8x400xbf16>
    %c0_20 = arith.constant 0 : index
    %c0_21 = arith.constant 0 : index
    %32 = vector.load %arg9[%c0_20, %c0_21] : memref<400x896xbf16, #tpu.memory_space<vmem>>, vector<400x896xbf16>
    %cst_22 = arith.constant dense<0.000000e+00> : vector<8x896xf32>
    %33 = tpu.matmul %31, %32, %cst_22 {dimension_numbers = #tpu.dot_dimension_numbers<[1], [0], [0], [1], [0, 0, 1, 1], [], []>} : vector<8x400xbf16>, vector<400x896xbf16>, vector<8x896xf32> -> vector<8x896xf32>
    %c0_23 = arith.constant 0 : index
    %c0_24 = arith.constant 0 : index
    %34 = vector.load %arg10[%c0_23, %c0_24] : memref<1x896xf32, #tpu.memory_space<vmem>>, vector<1x896xf32>
    %35 = vector.broadcast %34 : vector<1x896xf32> to vector<8x896xf32>
    %36 = arith.addf %33, %35 : vector<8x896xf32>
    %cst_25 = arith.constant 0.000000e+00 : f32
    %37 = vector.broadcast %cst_25 : f32 to vector<8x896xf32>
    %38 = arith.subf %37, %36 : vector<8x896xf32>
    %39 = math.exp %38 : vector<8x896xf32>
    %cst_26 = arith.constant 1.000000e+00 : f32
    %40 = vector.broadcast %cst_26 : f32 to vector<8x896xf32>
    %41 = arith.addf %40, %39 : vector<8x896xf32>
    %42 = tpu.reciprocal %41 {approx = true} : vector<8x896xf32> -> vector<8x896xf32>
    %c0_27 = arith.constant 0 : index
    %c0_28 = arith.constant 0 : index
    %43 = vector.load %arg11[%c0_27, %c0_28] : memref<8x896xf32, #tpu.memory_space<vmem>>, vector<8x896xf32>
    tpu.vector_store %arg11[%c0_27, %c0_28], %42 {strides = array<i32>} : memref<8x896xf32, #tpu.memory_space<vmem>>, vector<8x896xf32>,
    %c0_29 = arith.constant 0 : index
    %c0_30 = arith.constant 0 : index
    %44 = vector.load %arg12[%c0_29, %c0_30] : memref<8x256xf32, #tpu.memory_space<vmem>>, vector<8x256xf32>
    tpu.vector_store %arg12[%c0_29, %c0_30], %14 {strides = array<i32>} : memref<8x256xf32, #tpu.memory_space<vmem>>, vector<8x256xf32>,
    return
  }
  func.func @transform_0(%arg0: i32) -> (i32, i32) {
    %c0_i32 = arith.constant 0 : i32
    %c0_i32_0 = arith.constant 0 : i32
    return %arg0, %c0_i32 : i32, i32
  }
  func.func @transform_1(%arg0: i32) -> (i32, i32) {
    %c0_i32 = arith.constant 0 : i32
    %c0_i32_0 = arith.constant 0 : i32
    return %arg0, %c0_i32 : i32, i32
  }
  func.func @transform_2(%arg0: i32) -> (i32, i32) {
    %c0_i32 = arith.constant 0 : i32
    %c0_i32_0 = arith.constant 0 : i32
    %c0_i32_1 = arith.constant 0 : i32
    return %c0_i32, %c0_i32_0 : i32, i32
  }
  func.func @transform_3(%arg0: i32) -> (i32, i32) {
    %c0_i32 = arith.constant 0 : i32
    %c0_i32_0 = arith.constant 0 : i32
    %c0_i32_1 = arith.constant 0 : i32
    return %c0_i32, %c0_i32_0 : i32, i32
  }
  func.func @transform_4(%arg0: i32) -> (i32, i32) {
    %c0_i32 = arith.constant 0 : i32
    %c0_i32_0 = arith.constant 0 : i32
    %c0_i32_1 = arith.constant 0 : i32
    return %c0_i32, %c0_i32_0 : i32, i32
  }
  func.func @transform_5(%arg0: i32) -> (i32, i32) {
    %c0_i32 = arith.constant 0 : i32
    %c0_i32_0 = arith.constant 0 : i32
    %c0_i32_1 = arith.constant 0 : i32
    return %c0_i32, %c0_i32_0 : i32, i32
  }
  func.func @transform_6(%arg0: i32) -> (i32, i32) {
    %c0_i32 = arith.constant 0 : i32
    %c0_i32_0 = arith.constant 0 : i32
    %c0_i32_1 = arith.constant 0 : i32
    return %c0_i32, %c0_i32_0 : i32, i32
  }
  func.func @transform_7(%arg0: i32) -> (i32, i32) {
    %c0_i32 = arith.constant 0 : i32
    %c0_i32_0 = arith.constant 0 : i32
    %c0_i32_1 = arith.constant 0 : i32
    return %c0_i32, %c0_i32_0 : i32, i32
  }
  func.func @transform_8(%arg0: i32) -> (i32, i32) {
    %c0_i32 = arith.constant 0 : i32
    %c0_i32_0 = arith.constant 0 : i32
    %c0_i32_1 = arith.constant 0 : i32
    return %c0_i32, %c0_i32_0 : i32, i32
  }
  func.func @transform_9(%arg0: i32) -> (i32, i32) {
    %c0_i32 = arith.constant 0 : i32
    %c0_i32_0 = arith.constant 0 : i32
    %c0_i32_1 = arith.constant 0 : i32
    return %c0_i32, %c0_i32_0 : i32, i32
  }
  func.func @transform_10(%arg0: i32) -> (i32, i32) {
    %c0_i32 = arith.constant 0 : i32
    %c0_i32_0 = arith.constant 0 : i32
    return %arg0, %c0_i32 : i32, i32
  }
  func.func @transform_11(%arg0: i32) -> (i32, i32) {
    %c0_i32 = arith.constant 0 : i32
    %c0_i32_0 = arith.constant 0 : i32
    return %arg0, %c0_i32 : i32, i32
  }
}

</mosaic_0001>

<llo_original>
// kernel: vae_forward.1
$region0: #{vae_forward.1}
  #allocation0 [shape = 'u32[]', space=smem, size = 0x4, offset = 0x4, fixed_abs, tag = 'smem constant byte address 0x4 - core index']
  #allocation1 [shape = 'u32[144,128]{1,0:T(1,128)}', space=vmem, size = 0x12000, scoped, tag = 'internal scratch']
  %s0 = inlined_call_operand.vmem [shape: f32[8,784], index: 0, kind: input, shape index: {}]
  %s1 = inlined_call_operand.vmem [shape: f32[8,20], index: 1, kind: input, shape index: {}]
  %s2 = inlined_call_operand.vmem [shape: bf16[784,400], index: 2, kind: input, shape index: {}]
  %s3 = inlined_call_operand.vmem [shape: f32[1,400], index: 3, kind: input, shape index: {}]
  %s4 = inlined_call_operand.vmem [shape: bf16[400,256], index: 4, kind: input, shape index: {}]
  %s5 = inlined_call_operand.vmem [shape: f32[1,256], index: 5, kind: input, shape index: {}]
  %s6 = inlined_call_operand.vmem [shape: bf16[20,400], index: 6, kind: input, shape index: {}]
  %s7 = inlined_call_operand.vmem [shape: f32[1,400], index: 7, kind: input, shape index: {}]
  %s8 = inlined_call_operand.vmem [shape: bf16[400,896], index: 8, kind: input, shape index: {}]
  %s9 = inlined_call_operand.vmem [shape: f32[1,896], index: 9, kind: input, shape index: {}]
  %s10 = inlined_call_operand.vmem [shape: f32[8,896], index: 10, kind: output, shape index: {0}]
  %s11 = inlined_call_operand.vmem [shape: f32[8,256], index: 11, kind: output, shape index: {1}]
  %12 = xla_tuple %s10, %s11
  %s13 = sld [smem:[#allocation0]]
  $region58: #{vae_forward.1} parent=0
    _
  %s15 = ssub.s32 1, %s13
  %s16 = scalar_select 0, %s15, %s13
  // Predicated region
  $region2: #{vae_forward.1} parent=0 // pred_check
    _
  $region3: #{vae_forward.1} parent=0 // pred_check_branch
    %18 = sbr.rel (0) target = $region5
  $region4: #{vae_forward.1} parent=0 // pred_region
    _
  $region5: #{vae_forward.1} parent=0 // pred_fallthru
    _
  // Predicated region
  $region6: #{vae_forward.1} parent=0 // pred_check
    _
  $region7: #{vae_forward.1} parent=0 // pred_check_branch
    %20 = sbr.rel (0) target = $region9
  $region8: #{vae_forward.1} parent=0 // pred_region
    _
  $region9: #{vae_forward.1} parent=0 // pred_fallthru
    _
  // Predicated region
  $region10: #{vae_forward.1} parent=0 // pred_check
    _
  $region11: #{vae_forward.1} parent=0 // pred_check_branch
    %22 = sbr.rel (0) target = $region13
  $region12: #{vae_forward.1} parent=0 // pred_region
    _
  $region13: #{vae_forward.1} parent=0 // pred_fallthru
    _
  // Predicated region
  $region14: #{vae_forward.1} parent=0 // pred_check
    _
  $region15: #{vae_forward.1} parent=0 // pred_check_branch
    %24 = sbr.rel (0) target = $region17
  $region16: #{vae_forward.1} parent=0 // pred_region
    _
  $region17: #{vae_forward.1} parent=0 // pred_fallthru
    _
  // Predicated region
  $region18: #{vae_forward.1} parent=0 // pred_check
    _
  $region19: #{vae_forward.1} parent=0 // pred_check_branch
    %26 = sbr.rel (0) target = $region21
  $region20: #{vae_forward.1} parent=0 // pred_region
    _
  $region21: #{vae_forward.1} parent=0 // pred_fallthru
    _
  // Predicated region
  $region22: #{vae_forward.1} parent=0 // pred_check
    _
  $region23: #{vae_forward.1} parent=0 // pred_check_branch
    %28 = sbr.rel (0) target = $region25
  $region24: #{vae_forward.1} parent=0 // pred_region
    _
  $region25: #{vae_forward.1} parent=0 // pred_fallthru
    _
  // Predicated region
  $region26: #{vae_forward.1} parent=0 // pred_check
    _
  $region27: #{vae_forward.1} parent=0 // pred_check_branch
    %30 = sbr.rel (0) target = $region29
  $region28: #{vae_forward.1} parent=0 // pred_region
    _
  $region29: #{vae_forward.1} parent=0 // pred_fallthru
    _
  // Predicated region
  $region30: #{vae_forward.1} parent=0 // pred_check
    _
  $region31: #{vae_forward.1} parent=0 // pred_check_branch
    %32 = sbr.rel (0) target = $region33
  $region32: #{vae_forward.1} parent=0 // pred_region
    _
  $region33: #{vae_forward.1} parent=0 // pred_fallthru
    _
  // Predicated region
  $region34: #{vae_forward.1} parent=0 // pred_check
    _
  $region35: #{vae_forward.1} parent=0 // pred_check_branch
    %34 = sbr.rel (0) target = $region37
  $region36: #{vae_forward.1} parent=0 // pred_region
    _
  $region37: #{vae_forward.1} parent=0 // pred_fallthru
    _
  // Predicated region
  $region38: #{vae_forward.1} parent=0 // pred_check
    _
  $region39: #{vae_forward.1} parent=0 // pred_check_branch
    %36 = sbr.rel (0) target = $region41
  $region40: #{vae_forward.1} parent=0 // pred_region
    _
  $region41: #{vae_forward.1} parent=0 // pred_fallthru
    _
  %v38 = vld [vmem:[%s0] sm:$0xff]
  %v39 = vld [vmem:[%s0 + $0x8] sm:$0xff]
  %v40 = vld [vmem:[%s0 + $0x10] sm:$0xff]
  %v41 = vld [vmem:[%s0 + $0x18] sm:$0xff]
  %v42 = vld [vmem:[%s0 + $0x20] sm:$0xff]
  %v43 = vld [vmem:[%s0 + $0x28] sm:$0xff]
  %v44 = vld [vmem:[%s0 + $0x30] sm:$0xff]
  %v45 = vpack.c.bf16 %v38, %v38
  %v46 = vpack.c.bf16 %v39, %v39
  %v47 = vpack.c.bf16 %v40, %v40
  %v48 = vpack.c.bf16 %v41, %v41
  %v49 = vpack.c.bf16 %v42, %v42
  %v50 = vpack.c.bf16 %v43, %v43
  %v51 = vpack.c.bf16 %v44, %v44
  %v52 = vld [vmem:[%s2] sm:$0xff]
  %v53 = vld [vmem:[%s2 + $0x8] sm:$0xff]
  %v54 = vld [vmem:[%s2 + $0x10] sm:$0xff]
  %v55 = vld [vmem:[%s2 + $0x18] sm:$0xff]
  %v56 = vld [vmem:[%s2 + $0x20] sm:$0xff]
  %v57 = vld [vmem:[%s2 + $0x28] sm:$0xff]
  %v58 = vld [vmem:[%s2 + $0x30] sm:$0xff]
  %v59 = vld [vmem:[%s2 + $0x38] sm:$0xff]
  %v60 = vld [vmem:[%s2 + $0x40] sm:$0xff]
  %v61 = vld [vmem:[%s2 + $0x48] sm:$0xff]
  %v62 = vld [vmem:[%s2 + $0x50] sm:$0xff]
  %v63 = vld [vmem:[%s2 + $0x58] sm:$0xff]
  %v64 = vld [vmem:[%s2 + $0x60] sm:$0xff]
  %v65 = vld [vmem:[%s2 + $0x68] sm:$0xff]
  %v66 = vld [vmem:[%s2 + $0x70] sm:$0xff]
  %v67 = vld [vmem:[%s2 + $0x78] sm:$0xff]
  %v68 = vld [vmem:[%s2 + $0x80] sm:$0xff]
  %v69 = vld [vmem:[%s2 + $0x88] sm:$0xff]
  %v70 = vld [vmem:[%s2 + $0x90] sm:$0xff]
  %v71 = vld [vmem:[%s2 + $0x98] sm:$0xff]
  %v72 = vld [vmem:[%s2 + $0xa0] sm:$0xff]
  %v73 = vld [vmem:[%s2 + $0xa8] sm:$0xff]
  %v74 = vld [vmem:[%s2 + $0xb0] sm:$0xff]
  %v75 = vld [vmem:[%s2 + $0xb8] sm:$0xff]
  %v76 = vld [vmem:[%s2 + $0xc0] sm:$0xff]
  %v77 = vld [vmem:[%s2 + $0xc8] sm:$0xff]
  %v78 = vld [vmem:[%s2 + $0xd0] sm:$0xff]
  %v79 = vld [vmem:[%s2 + $0xd8] sm:$0xff]
  %v80 = vld [vmem:[%s2 + $0xe0] sm:$0xff]
  %v81 = vld [vmem:[%s2 + $0xe8] sm:$0xff]
  %v82 = vld [vmem:[%s2 + $0xf0] sm:$0xff]
  %v83 = vld [vmem:[%s2 + $0xf8] sm:$0xff]
  %v84 = vld [vmem:[%s2 + $0x100] sm:$0xff]
  %v85 = vld [vmem:[%s2 + $0x108] sm:$0xff]
  %v86 = vld [vmem:[%s2 + $0x110] sm:$0xff]
  %v87 = vld [vmem:[%s2 + $0x118] sm:$0xff]
  %v88 = vld [vmem:[%s2 + $0x120] sm:$0xff]
  %v89 = vld [vmem:[%s2 + $0x128] sm:$0xff]
  %v90 = vld [vmem:[%s2 + $0x130] sm:$0xff]
  %v91 = vld [vmem:[%s2 + $0x138] sm:$0xff]
  %v92 = vld [vmem:[%s2 + $0x140] sm:$0xff]
  %v93 = vld [vmem:[%s2 + $0x148] sm:$0xff]
  %v94 = vld [vmem:[%s2 + $0x150] sm:$0xff]
  %v95 = vld [vmem:[%s2 + $0x158] sm:$0xff]
  %v96 = vld [vmem:[%s2 + $0x160] sm:$0xff]
  %v97 = vld [vmem:[%s2 + $0x168] sm:$0xff]
  %v98 = vld [vmem:[%s2 + $0x170] sm:$0xff]
  %v99 = vld [vmem:[%s2 + $0x178] sm:$0xff]
  %v100 = vld [vmem:[%s2 + $0x180] sm:$0xff]
  %v101 = vld [vmem:[%s2 + $0x188] sm:$0xff]
  %v102 = vld [vmem:[%s2 + $0x190] sm:$0xff]
  %v103 = vld [vmem:[%s2 + $0x198] sm:$0xff]
  %v104 = vld [vmem:[%s2 + $0x1a0] sm:$0xff]
  %v105 = vld [vmem:[%s2 + $0x1a8] sm:$0xff]
  %v106 = vld [vmem:[%s2 + $0x1b0] sm:$0xff]
  %v107 = vld [vmem:[%s2 + $0x1b8] sm:$0xff]
  %v108 = vld [vmem:[%s2 + $0x1c0] sm:$0xff]
  %v109 = vld [vmem:[%s2 + $0x1c8] sm:$0xff]
  %v110 = vld [vmem:[%s2 + $0x1d0] sm:$0xff]
  %v111 = vld [vmem:[%s2 + $0x1d8] sm:$0xff]
  %v112 = vld [vmem:[%s2 + $0x1e0] sm:$0xff]
  %v113 = vld [vmem:[%s2 + $0x1e8] sm:$0xff]
  %v114 = vld [vmem:[%s2 + $0x1f0] sm:$0xff]
  %v115 = vld [vmem:[%s2 + $0x1f8] sm:$0xff]
  %v116 = vld [vmem:[%s2 + $0x200] sm:$0xff]
  %v117 = vld [vmem:[%s2 + $0x208] sm:$0xff]
  %v118 = vld [vmem:[%s2 + $0x210] sm:$0xff]
  %v119 = vld [vmem:[%s2 + $0x218] sm:$0xff]
  %v120 = vld [vmem:[%s2 + $0x220] sm:$0xff]
  %v121 = vld [vmem:[%s2 + $0x228] sm:$0xff]
  %v122 = vld [vmem:[%s2 + $0x230] sm:$0xff]
  %v123 = vld [vmem:[%s2 + $0x238] sm:$0xff]
  %v124 = vld [vmem:[%s2 + $0x240] sm:$0xff]
  %v125 = vld [vmem:[%s2 + $0x248] sm:$0xff]
  %v126 = vld [vmem:[%s2 + $0x250] sm:$0xff]
  %v127 = vld [vmem:[%s2 + $0x258] sm:$0xff]
  %v128 = vld [vmem:[%s2 + $0x260] sm:$0xff]
  %v129 = vld [vmem:[%s2 + $0x268] sm:$0xff]
  %v130 = vld [vmem:[%s2 + $0x270] sm:$0xff]
  %v131 = vld [vmem:[%s2 + $0x278] sm:$0xff]
  %v132 = vld [vmem:[%s2 + $0x280] sm:$0xff]
  %v133 = vld [vmem:[%s2 + $0x288] sm:$0xff]
  %v134 = vld [vmem:[%s2 + $0x290] sm:$0xff]
  %v135 = vld [vmem:[%s2 + $0x298] sm:$0xff]
  %v136 = vld [vmem:[%s2 + $0x2a0] sm:$0xff]
  %v137 = vld [vmem:[%s2 + $0x2a8] sm:$0xff]
  %v138 = vld [vmem:[%s2 + $0x2b0] sm:$0xff]
  %v139 = vld [vmem:[%s2 + $0x2b8] sm:$0xff]
  %v140 = vld [vmem:[%s2 + $0x2c0] sm:$0xff]
  %v141 = vld [vmem:[%s2 + $0x2c8] sm:$0xff]
  %v142 = vld [vmem:[%s2 + $0x2d0] sm:$0xff]
  %v143 = vld [vmem:[%s2 + $0x2d8] sm:$0xff]
  %v144 = vld [vmem:[%s2 + $0x2e0] sm:$0xff]
  %v145 = vld [vmem:[%s2 + $0x2e8] sm:$0xff]
  %v146 = vld [vmem:[%s2 + $0x2f0] sm:$0xff]
  %v147 = vld [vmem:[%s2 + $0x2f8] sm:$0xff]
  %v148 = vld [vmem:[%s2 + $0x300] sm:$0xff]
  %v149 = vld [vmem:[%s2 + $0x308] sm:$0xff]
  %v150 = vld [vmem:[%s2 + $0x310] sm:$0xff]
  %v151 = vld [vmem:[%s2 + $0x318] sm:$0xff]
  %v152 = vld [vmem:[%s2 + $0x320] sm:$0xff]
  %v153 = vld [vmem:[%s2 + $0x328] sm:$0xff]
  %v154 = vld [vmem:[%s2 + $0x330] sm:$0xff]
  %v155 = vld [vmem:[%s2 + $0x338] sm:$0xff]
  %v156 = vld [vmem:[%s2 + $0x340] sm:$0xff]
  %v157 = vld [vmem:[%s2 + $0x348] sm:$0xff]
  %v158 = vld [vmem:[%s2 + $0x350] sm:$0xff]
  %v159 = vld [vmem:[%s2 + $0x358] sm:$0xff]
  %v160 = vld [vmem:[%s2 + $0x360] sm:$0xff]
  %v161 = vld [vmem:[%s2 + $0x368] sm:$0xff]
  %v162 = vld [vmem:[%s2 + $0x370] sm:$0xff]
  %v163 = vld [vmem:[%s2 + $0x378] sm:$0xff]
  %v164 = vld [vmem:[%s2 + $0x380] sm:$0xff]
  %v165 = vld [vmem:[%s2 + $0x388] sm:$0xff]
  %v166 = vld [vmem:[%s2 + $0x390] sm:$0xff]
  %v167 = vld [vmem:[%s2 + $0x398] sm:$0xff]
  %v168 = vld [vmem:[%s2 + $0x3a0] sm:$0xff]
  %v169 = vld [vmem:[%s2 + $0x3a8] sm:$0xff]
  %v170 = vld [vmem:[%s2 + $0x3b0] sm:$0xff]
  %v171 = vld [vmem:[%s2 + $0x3b8] sm:$0xff]
  %v172 = vld [vmem:[%s2 + $0x3c0] sm:$0xff]
  %v173 = vld [vmem:[%s2 + $0x3c8] sm:$0xff]
  %v174 = vld [vmem:[%s2 + $0x3d0] sm:$0xff]
  %v175 = vld [vmem:[%s2 + $0x3d8] sm:$0xff]
  %v176 = vld [vmem:[%s2 + $0x3e0] sm:$0xff]
  %v177 = vld [vmem:[%s2 + $0x3e8] sm:$0xff]
  %v178 = vld [vmem:[%s2 + $0x3f0] sm:$0xff]
  %v179 = vld [vmem:[%s2 + $0x3f8] sm:$0xff]
  %v180 = vld [vmem:[%s2 + $0x400] sm:$0xff]
  %v181 = vld [vmem:[%s2 + $0x408] sm:$0xff]
  %v182 = vld [vmem:[%s2 + $0x410] sm:$0xff]
  %v183 = vld [vmem:[%s2 + $0x418] sm:$0xff]
  %v184 = vld [vmem:[%s2 + $0x420] sm:$0xff]
  %v185 = vld [vmem:[%s2 + $0x428] sm:$0xff]
  %v186 = vld [vmem:[%s2 + $0x430] sm:$0xff]
  %v187 = vld [vmem:[%s2 + $0x438] sm:$0xff]
  %v188 = vld [vmem:[%s2 + $0x440] sm:$0xff]
  %v189 = vld [vmem:[%s2 + $0x448] sm:$0xff]
  %v190 = vld [vmem:[%s2 + $0x450] sm:$0xff]
  %v191 = vld [vmem:[%s2 + $0x458] sm:$0xff]
  %v192 = vld [vmem:[%s2 + $0x460] sm:$0xff]
  %v193 = vld [vmem:[%s2 + $0x468] sm:$0xff]
  %v194 = vld [vmem:[%s2 + $0x470] sm:$0xff]
  %v195 = vld [vmem:[%s2 + $0x478] sm:$0xff]
  %v196 = vld [vmem:[%s2 + $0x480] sm:$0xff]
  %v197 = vld [vmem:[%s2 + $0x488] sm:$0xff]
  %v198 = vld [vmem:[%s2 + $0x490] sm:$0xff]
  %v199 = vld [vmem:[%s2 + $0x498] sm:$0xff]
  %v200 = vld [vmem:[%s2 + $0x4a0] sm:$0xff]
  %v201 = vld [vmem:[%s2 + $0x4a8] sm:$0xff]
  %v202 = vld [vmem:[%s2 + $0x4b0] sm:$0xff]
  %v203 = vld [vmem:[%s2 + $0x4b8] sm:$0xff]
  %v204 = vld [vmem:[%s2 + $0x4c0] sm:$0xff]
  %v205 = vld [vmem:[%s2 + $0x4c8] sm:$0xff]
  %v206 = vld [vmem:[%s2 + $0x4d0] sm:$0xff]
  %v207 = vld [vmem:[%s2 + $0x4d8] sm:$0xff]
  %v208 = vld [vmem:[%s2 + $0x4e0] sm:$0xff]
  %v209 = vld [vmem:[%s2 + $0x4e8] sm:$0xff]
  %v210 = vld [vmem:[%s2 + $0x4f0] sm:$0xff]
  %v211 = vld [vmem:[%s2 + $0x4f8] sm:$0xff]
  %v212 = vld [vmem:[%s2 + $0x500] sm:$0xff]
  %v213 = vld [vmem:[%s2 + $0x508] sm:$0xff]
  %v214 = vld [vmem:[%s2 + $0x510] sm:$0xff]
  %v215 = vld [vmem:[%s2 + $0x518] sm:$0xff]
  %v216 = vld [vmem:[%s2 + $0x520] sm:$0xff]
  %v217 = vld [vmem:[%s2 + $0x528] sm:$0xff]
  %v218 = vld [vmem:[%s2 + $0x530] sm:$0xff]
  %v219 = vld [vmem:[%s2 + $0x538] sm:$0xff]
  %v220 = vld [vmem:[%s2 + $0x540] sm:$0xff]
  %v221 = vld [vmem:[%s2 + $0x548] sm:$0xff]
  %v222 = vld [vmem:[%s2 + $0x550] sm:$0xff]
  %v223 = vld [vmem:[%s2 + $0x558] sm:$0xff]
  %v224 = vld [vmem:[%s2 + $0x560] sm:$0xff]
  %v225 = vld [vmem:[%s2 + $0x568] sm:$0xff]
  %v226 = vld [vmem:[%s2 + $0x570] sm:$0xff]
  %v227 = vld [vmem:[%s2 + $0x578] sm:$0xff]
  %v228 = vld [vmem:[%s2 + $0x580] sm:$0xff]
  %v229 = vld [vmem:[%s2 + $0x588] sm:$0xff]
  %v230 = vld [vmem:[%s2 + $0x590] sm:$0xff]
  %v231 = vld [vmem:[%s2 + $0x598] sm:$0xff]
  %v232 = vld [vmem:[%s2 + $0x5a0] sm:$0xff]
  %v233 = vld [vmem:[%s2 + $0x5a8] sm:$0xff]
  %v234 = vld [vmem:[%s2 + $0x5b0] sm:$0xff]
  %v235 = vld [vmem:[%s2 + $0x5b8] sm:$0xff]
  %v236 = vld [vmem:[%s2 + $0x5c0] sm:$0xff]
  %v237 = vld [vmem:[%s2 + $0x5c8] sm:$0xff]
  %v238 = vld [vmem:[%s2 + $0x5d0] sm:$0xff]
  %v239 = vld [vmem:[%s2 + $0x5d8] sm:$0xff]
  %v240 = vld [vmem:[%s2 + $0x5e0] sm:$0xff]
  %v241 = vld [vmem:[%s2 + $0x5e8] sm:$0xff]
  %v242 = vld [vmem:[%s2 + $0x5f0] sm:$0xff]
  %v243 = vld [vmem:[%s2 + $0x5f8] sm:$0xff]
  %v244 = vld [vmem:[%s2 + $0x600] sm:$0xff]
  %v245 = vld [vmem:[%s2 + $0x608] sm:$0xff]
  %v246 = vld [vmem:[%s2 + $0x610] sm:$0xff]
  %v247 = vld [vmem:[%s2 + $0x618] sm:$0xff]
  %v248 = vld [vmem:[%s3] sm:$0xf]
  %v250 = vlaneseq
  %v251 = vshrl.u32 %v250, 7
  %v252 = vsub.s32 0, %v251
  %v253 = vrot.slane %v248, %v252
  %v254 = vlaneseq
  %v255 = vshrl.u32 %v254, 7
  %v256 = vsub.s32 1, %v255
  %v257 = vrot.slane %v248, %v256
  %v258 = vlaneseq
  %v259 = vshrl.u32 %v258, 7
  %v260 = vsub.s32 2, %v259
  %v261 = vrot.slane %v248, %v260
  %v262 = vlaneseq
  %v263 = vshrl.u32 %v262, 7
  %v264 = vsub.s32 3, %v263
  %v265 = vrot.slane %v248, %v264
  %v466 = vunpack.c.l.b16 %v52
  %v467 = vunpack.c.h.b16 %v52
  %v468 = vunpack.c.l.b16 %v53
  %v469 = vunpack.c.h.b16 %v53
  %v470 = vunpack.c.l.b16 %v54
  %v471 = vunpack.c.h.b16 %v54
  %v472 = vunpack.c.l.b16 %v55
  %v473 = vunpack.c.h.b16 %v55
  %v474 = vunpack.c.l.b16 %v56
  %v475 = vunpack.c.h.b16 %v56
  %v476 = vunpack.c.l.b16 %v57
  %v477 = vunpack.c.h.b16 %v57
  %v478 = vunpack.c.l.b16 %v58
  %v479 = vunpack.c.h.b16 %v58
  %v480 = vunpack.c.l.b16 %v59
  %v481 = vunpack.c.h.b16 %v59
  %v482 = vunpack.c.l.b16 %v60
  %v483 = vunpack.c.h.b16 %v60
  %v484 = vunpack.c.l.b16 %v61
  %v485 = vunpack.c.h.b16 %v61
  %v486 = vunpack.c.l.b16 %v62
  %v487 = vunpack.c.h.b16 %v62
  %v488 = vunpack.c.l.b16 %v63
  %v489 = vunpack.c.h.b16 %v63
  %v490 = vunpack.c.l.b16 %v64
  %v491 = vunpack.c.h.b16 %v64
  %v492 = vunpack.c.l.b16 %v65
  %v493 = vunpack.c.h.b16 %v65
  %v494 = vunpack.c.l.b16 %v66
  %v495 = vunpack.c.h.b16 %v66
  %v496 = vunpack.c.l.b16 %v67
  %v497 = vunpack.c.h.b16 %v67
  %v498 = vunpack.c.l.b16 %v68
  %v499 = vunpack.c.h.b16 %v68
  %v500 = vunpack.c.l.b16 %v69
  %v501 = vunpack.c.h.b16 %v69
  %v502 = vunpack.c.l.b16 %v70
  %v503 = vunpack.c.h.b16 %v70
  %v504 = vunpack.c.l.b16 %v71
  %v505 = vunpack.c.h.b16 %v71
  %v506 = vunpack.c.l.b16 %v72
  %v507 = vunpack.c.h.b16 %v72
  %v508 = vunpack.c.l.b16 %v73
  %v509 = vunpack.c.h.b16 %v73
  %v510 = vunpack.c.l.b16 %v74
  %v511 = vunpack.c.h.b16 %v74
  %v512 = vunpack.c.l.b16 %v75
  %v513 = vunpack.c.h.b16 %v75
  %v514 = vunpack.c.l.b16 %v76
  %v515 = vunpack.c.h.b16 %v76
  %v516 = vunpack.c.l.b16 %v77
  %v517 = vunpack.c.h.b16 %v77
  %v518 = vunpack.c.l.b16 %v78
  %v519 = vunpack.c.h.b16 %v78
  %v520 = vunpack.c.l.b16 %v79
  %v521 = vunpack.c.h.b16 %v79
  %v522 = vunpack.c.l.b16 %v80
  %v523 = vunpack.c.h.b16 %v80
  %v524 = vunpack.c.l.b16 %v81
  %v525 = vunpack.c.h.b16 %v81
  %v526 = vunpack.c.l.b16 %v82
  %v527 = vunpack.c.h.b16 %v82
  %v528 = vunpack.c.l.b16 %v83
  %v529 = vunpack.c.h.b16 %v83
  %v530 = vunpack.c.l.b16 %v84
  %v531 = vunpack.c.h.b16 %v84
  %v532 = vunpack.c.l.b16 %v85
  %v533 = vunpack.c.h.b16 %v85
  %v534 = vunpack.c.l.b16 %v86
  %v535 = vunpack.c.h.b16 %v86
  %v536 = vunpack.c.l.b16 %v87
  %v537 = vunpack.c.h.b16 %v87
  %v538 = vunpack.c.l.b16 %v88
  %v539 = vunpack.c.h.b16 %v88
  %v540 = vunpack.c.l.b16 %v89
  %v541 = vunpack.c.h.b16 %v89
  %v542 = vunpack.c.l.b16 %v90
  %v543 = vunpack.c.h.b16 %v90
  %v544 = vunpack.c.l.b16 %v91
  %v545 = vunpack.c.h.b16 %v91
  %v546 = vunpack.c.l.b16 %v92
  %v547 = vunpack.c.h.b16 %v92
  %v548 = vunpack.c.l.b16 %v93
  %v549 = vunpack.c.h.b16 %v93
  %v550 = vunpack.c.l.b16 %v94
  %v551 = vunpack.c.h.b16 %v94
  %v552 = vunpack.c.l.b16 %v95
  %v553 = vunpack.c.h.b16 %v95
  %v554 = vunpack.c.l.b16 %v96
  %v555 = vunpack.c.h.b16 %v96
  %v556 = vunpack.c.l.b16 %v97
  %v557 = vunpack.c.h.b16 %v97
  %v558 = vunpack.c.l.b16 %v98
  %v559 = vunpack.c.h.b16 %v98
  %v560 = vunpack.c.l.b16 %v99
  %v561 = vunpack.c.h.b16 %v99
  %v562 = vunpack.c.l.b16 %v100
  %v563 = vunpack.c.h.b16 %v100
  %v564 = vunpack.c.l.b16 %v101
  %v565 = vunpack.c.h.b16 %v101
  %v566 = vunpack.c.l.b16 %v102
  %v567 = vunpack.c.h.b16 %v102
  %v568 = vunpack.c.l.b16 %v103
  %v569 = vunpack.c.h.b16 %v103
  %v570 = vunpack.c.l.b16 %v104
  %v571 = vunpack.c.h.b16 %v104
  %v572 = vunpack.c.l.b16 %v105
  %v573 = vunpack.c.h.b16 %v105
  %v574 = vunpack.c.l.b16 %v106
  %v575 = vunpack.c.h.b16 %v106
  %v576 = vunpack.c.l.b16 %v107
  %v577 = vunpack.c.h.b16 %v107
  %v578 = vunpack.c.l.b16 %v108
  %v579 = vunpack.c.h.b16 %v108
  %v580 = vunpack.c.l.b16 %v109
  %v581 = vunpack.c.h.b16 %v109
  %v582 = vunpack.c.l.b16 %v110
  %v583 = vunpack.c.h.b16 %v110
  %v584 = vunpack.c.l.b16 %v111
  %v585 = vunpack.c.h.b16 %v111
  %v586 = vunpack.c.l.b16 %v112
  %v587 = vunpack.c.h.b16 %v112
  %v588 = vunpack.c.l.b16 %v113
  %v589 = vunpack.c.h.b16 %v113
  %v590 = vunpack.c.l.b16 %v114
  %v591 = vunpack.c.h.b16 %v114
  %v592 = vunpack.c.l.b16 %v115
  %v593 = vunpack.c.h.b16 %v115
  %v594 = vunpack.c.l.b16 %v116
  %v595 = vunpack.c.h.b16 %v116
  %v596 = vunpack.c.l.b16 %v117
  %v597 = vunpack.c.h.b16 %v117
  %v598 = vunpack.c.l.b16 %v118
  %v599 = vunpack.c.h.b16 %v118
  %v600 = vunpack.c.l.b16 %v119
  %v601 = vunpack.c.h.b16 %v119
  %v602 = vunpack.c.l.b16 %v120
  %v603 = vunpack.c.h.b16 %v120
  %v604 = vunpack.c.l.b16 %v121
  %v605 = vunpack.c.h.b16 %v121
  %v606 = vunpack.c.l.b16 %v122
  %v607 = vunpack.c.h.b16 %v122
  %v608 = vunpack.c.l.b16 %v123
  %v609 = vunpack.c.h.b16 %v123
  %v610 = vunpack.c.l.b16 %v124
  %v611 = vunpack.c.h.b16 %v124
  %v612 = vunpack.c.l.b16 %v125
  %v613 = vunpack.c.h.b16 %v125
  %v614 = vunpack.c.l.b16 %v126
  %v615 = vunpack.c.h.b16 %v126
  %v616 = vunpack.c.l.b16 %v127
  %v617 = vunpack.c.h.b16 %v127
  %v618 = vunpack.c.l.b16 %v128
  %v619 = vunpack.c.h.b16 %v128
  %v620 = vunpack.c.l.b16 %v129
  %v621 = vunpack.c.h.b16 %v129
  %v622 = vunpack.c.l.b16 %v130
  %v623 = vunpack.c.h.b16 %v130
  %v624 = vunpack.c.l.b16 %v131
  %v625 = vunpack.c.h.b16 %v131
  %v626 = vunpack.c.l.b16 %v132
  %v627 = vunpack.c.h.b16 %v132
  %v628 = vunpack.c.l.b16 %v133
  %v629 = vunpack.c.h.b16 %v133
  %v630 = vunpack.c.l.b16 %v134
  %v631 = vunpack.c.h.b16 %v134
  %v632 = vunpack.c.l.b16 %v135
  %v633 = vunpack.c.h.b16 %v135
  %v634 = vunpack.c.l.b16 %v136
  %v635 = vunpack.c.h.b16 %v136
  %v636 = vunpack.c.l.b16 %v137
  %v637 = vunpack.c.h.b16 %v137
  %v638 = vunpack.c.l.b16 %v138
  %v639 = vunpack.c.h.b16 %v138
  %v640 = vunpack.c.l.b16 %v139
  %v641 = vunpack.c.h.b16 %v139
  %v642 = vunpack.c.l.b16 %v140
  %v643 = vunpack.c.h.b16 %v140
  %v644 = vunpack.c.l.b16 %v141
  %v645 = vunpack.c.h.b16 %v141
  %v646 = vunpack.c.l.b16 %v142
  %v647 = vunpack.c.h.b16 %v142
  %v648 = vunpack.c.l.b16 %v143
  %v649 = vunpack.c.h.b16 %v143
  %v650 = vunpack.c.l.b16 %v144
  %v651 = vunpack.c.h.b16 %v144
  %v652 = vunpack.c.l.b16 %v145
  %v653 = vunpack.c.h.b16 %v145
  %v654 = vunpack.c.l.b16 %v146
  %v655 = vunpack.c.h.b16 %v146
  %v656 = vunpack.c.l.b16 %v147
  %v657 = vunpack.c.h.b16 %v147
  %v658 = vunpack.c.l.b16 %v148
  %v659 = vunpack.c.h.b16 %v148
  %v660 = vunpack.c.l.b16 %v149
  %v661 = vunpack.c.h.b16 %v149
  %v662 = vunpack.c.l.b16 %v150
  %v663 = vunpack.c.h.b16 %v150
  %v664 = vunpack.c.l.b16 %v151
  %v665 = vunpack.c.h.b16 %v151
  %v666 = vunpack.c.l.b16 %v152
  %v667 = vunpack.c.h.b16 %v152
  %v668 = vunpack.c.l.b16 %v153
  %v669 = vunpack.c.h.b16 %v153
  %v670 = vunpack.c.l.b16 %v154
  %v671 = vunpack.c.h.b16 %v154
  %v672 = vunpack.c.l.b16 %v155
  %v673 = vunpack.c.h.b16 %v155
  %v674 = vunpack.c.l.b16 %v156
  %v675 = vunpack.c.h.b16 %v156
  %v676 = vunpack.c.l.b16 %v157
  %v677 = vunpack.c.h.b16 %v157
  %v678 = vunpack.c.l.b16 %v158
  %v679 = vunpack.c.h.b16 %v158
  %v680 = vunpack.c.l.b16 %v159
  %v681 = vunpack.c.h.b16 %v159
  %v682 = vunpack.c.l.b16 %v160
  %v683 = vunpack.c.h.b16 %v160
  %v684 = vunpack.c.l.b16 %v161
  %v685 = vunpack.c.h.b16 %v161
  %v686 = vunpack.c.l.b16 %v162
  %v687 = vunpack.c.h.b16 %v162
  %v688 = vunpack.c.l.b16 %v163
  %v689 = vunpack.c.h.b16 %v163
  %v690 = vunpack.c.l.b16 %v164
  %v691 = vunpack.c.h.b16 %v164
  %v692 = vunpack.c.l.b16 %v165
  %v693 = vunpack.c.h.b16 %v165
  %v694 = vunpack.c.l.b16 %v166
  %v695 = vunpack.c.h.b16 %v166
  %v696 = vunpack.c.l.b16 %v167
  %v697 = vunpack.c.h.b16 %v167
  %v698 = vunpack.c.l.b16 %v168
  %v699 = vunpack.c.h.b16 %v168
  %v700 = vunpack.c.l.b16 %v169
  %v701 = vunpack.c.h.b16 %v169
  %v702 = vunpack.c.l.b16 %v170
  %v703 = vunpack.c.h.b16 %v170
  %v704 = vunpack.c.l.b16 %v171
  %v705 = vunpack.c.h.b16 %v171
  %v706 = vunpack.c.l.b16 %v172
  %v707 = vunpack.c.h.b16 %v172
  %v708 = vunpack.c.l.b16 %v173
  %v709 = vunpack.c.h.b16 %v173
  %v710 = vunpack.c.l.b16 %v174
  %v711 = vunpack.c.h.b16 %v174
  %v712 = vunpack.c.l.b16 %v175
  %v713 = vunpack.c.h.b16 %v175
  %v714 = vunpack.c.l.b16 %v176
  %v715 = vunpack.c.h.b16 %v176
  %v716 = vunpack.c.l.b16 %v177
  %v717 = vunpack.c.h.b16 %v177
  %v718 = vunpack.c.l.b16 %v178
  %v719 = vunpack.c.h.b16 %v178
  %v720 = vunpack.c.l.b16 %v179
  %v721 = vunpack.c.h.b16 %v179
  %v722 = vunpack.c.l.b16 %v180
  %v723 = vunpack.c.h.b16 %v180
  %v724 = vunpack.c.l.b16 %v181
  %v725 = vunpack.c.h.b16 %v181
  %v726 = vunpack.c.l.b16 %v182
  %v727 = vunpack.c.h.b16 %v182
  %v728 = vunpack.c.l.b16 %v183
  %v729 = vunpack.c.h.b16 %v183
  %v730 = vunpack.c.l.b16 %v184
  %v731 = vunpack.c.h.b16 %v184
  %v732 = vunpack.c.l.b16 %v185
  %v733 = vunpack.c.h.b16 %v185
  %v734 = vunpack.c.l.b16 %v186
  %v735 = vunpack.c.h.b16 %v186
  %v736 = vunpack.c.l.b16 %v187
  %v737 = vunpack.c.h.b16 %v187
  %v738 = vunpack.c.l.b16 %v188
  %v739 = vunpack.c.h.b16 %v188
  %v740 = vunpack.c.l.b16 %v189
  %v741 = vunpack.c.h.b16 %v189
  %v742 = vunpack.c.l.b16 %v190
  %v743 = vunpack.c.h.b16 %v190
  %v744 = vunpack.c.l.b16 %v191
  %v745 = vunpack.c.h.b16 %v191
  %v746 = vunpack.c.l.b16 %v192
  %v747 = vunpack.c.h.b16 %v192
  %v748 = vunpack.c.l.b16 %v193
  %v749 = vunpack.c.h.b16 %v193
  %v750 = vunpack.c.l.b16 %v194
  %v751 = vunpack.c.h.b16 %v194
  %v752 = vunpack.c.l.b16 %v195
  %v753 = vunpack.c.h.b16 %v195
  %v754 = vunpack.c.l.b16 %v196
  %v755 = vunpack.c.h.b16 %v196
  %v756 = vunpack.c.l.b16 %v197
  %v757 = vunpack.c.h.b16 %v197
  %v758 = vunpack.c.l.b16 %v198
  %v759 = vunpack.c.h.b16 %v198
  %v760 = vunpack.c.l.b16 %v199
  %v761 = vunpack.c.h.b16 %v199
  %v762 = vunpack.c.l.b16 %v200
  %v763 = vunpack.c.h.b16 %v200
  %v764 = vunpack.c.l.b16 %v201
  %v765 = vunpack.c.h.b16 %v201
  %v766 = vunpack.c.l.b16 %v202
  %v767 = vunpack.c.h.b16 %v202
  %v768 = vunpack.c.l.b16 %v203
  %v769 = vunpack.c.h.b16 %v203
  %v770 = vunpack.c.l.b16 %v204
  %v771 = vunpack.c.h.b16 %v204
  %v772 = vunpack.c.l.b16 %v205
  %v773 = vunpack.c.h.b16 %v205
  %v774 = vunpack.c.l.b16 %v206
  %v775 = vunpack.c.h.b16 %v206
  %v776 = vunpack.c.l.b16 %v207
  %v777 = vunpack.c.h.b16 %v207
  %v778 = vunpack.c.l.b16 %v208
  %v779 = vunpack.c.h.b16 %v208
  %v780 = vunpack.c.l.b16 %v209
  %v781 = vunpack.c.h.b16 %v209
  %v782 = vunpack.c.l.b16 %v210
  %v783 = vunpack.c.h.b16 %v210
  %v784 = vunpack.c.l.b16 %v211
  %v785 = vunpack.c.h.b16 %v211
  %v786 = vunpack.c.l.b16 %v212
  %v787 = vunpack.c.h.b16 %v212
  %v788 = vunpack.c.l.b16 %v213
  %v789 = vunpack.c.h.b16 %v213
  %v790 = vunpack.c.l.b16 %v214
  %v791 = vunpack.c.h.b16 %v214
  %v792 = vunpack.c.l.b16 %v215
  %v793 = vunpack.c.h.b16 %v215
  %v794 = vunpack.c.l.b16 %v216
  %v795 = vunpack.c.h.b16 %v216
  %v796 = vunpack.c.l.b16 %v217
  %v797 = vunpack.c.h.b16 %v217
  %v798 = vunpack.c.l.b16 %v218
  %v799 = vunpack.c.h.b16 %v218
  %v800 = vunpack.c.l.b16 %v219
  %v801 = vunpack.c.h.b16 %v219
  %v802 = vunpack.c.l.b16 %v220
  %v803 = vunpack.c.h.b16 %v220
  %v804 = vunpack.c.l.b16 %v221
  %v805 = vunpack.c.h.b16 %v221
  %v806 = vunpack.c.l.b16 %v222
  %v807 = vunpack.c.h.b16 %v222
  %v808 = vunpack.c.l.b16 %v223
  %v809 = vunpack.c.h.b16 %v223
  %v810 = vunpack.c.l.b16 %v224
  %v811 = vunpack.c.h.b16 %v224
  %v812 = vunpack.c.l.b16 %v225
  %v813 = vunpack.c.h.b16 %v225
  %v814 = vunpack.c.l.b16 %v226
  %v815 = vunpack.c.h.b16 %v226
  %v816 = vunpack.c.l.b16 %v227
  %v817 = vunpack.c.h.b16 %v227
  %v818 = vunpack.c.l.b16 %v228
  %v819 = vunpack.c.h.b16 %v228
  %v820 = vunpack.c.l.b16 %v229
  %v821 = vunpack.c.h.b16 %v229
  %v822 = vunpack.c.l.b16 %v230
  %v823 = vunpack.c.h.b16 %v230
  %v824 = vunpack.c.l.b16 %v231
  %v825 = vunpack.c.h.b16 %v231
  %v826 = vunpack.c.l.b16 %v232
  %v827 = vunpack.c.h.b16 %v232
  %v828 = vunpack.c.l.b16 %v233
  %v829 = vunpack.c.h.b16 %v233
  %v830 = vunpack.c.l.b16 %v234
  %v831 = vunpack.c.h.b16 %v234
  %v832 = vunpack.c.l.b16 %v235
  %v833 = vunpack.c.h.b16 %v235
  %v834 = vunpack.c.l.b16 %v236
  %v835 = vunpack.c.h.b16 %v236
  %v836 = vunpack.c.l.b16 %v237
  %v837 = vunpack.c.h.b16 %v237
  %v838 = vunpack.c.l.b16 %v238
  %v839 = vunpack.c.h.b16 %v238
  %v840 = vunpack.c.l.b16 %v239
  %v841 = vunpack.c.h.b16 %v239
  %v842 = vunpack.c.l.b16 %v240
  %v843 = vunpack.c.h.b16 %v240
  %v844 = vunpack.c.l.b16 %v241
  %v845 = vunpack.c.h.b16 %v241
  %v846 = vunpack.c.l.b16 %v242
  %v847 = vunpack.c.h.b16 %v242
  %v848 = vunpack.c.l.b16 %v243
  %v849 = vunpack.c.h.b16 %v243
  %v850 = vunpack.c.l.b16 %v244
  %v851 = vunpack.c.h.b16 %v244
  %v852 = vunpack.c.l.b16 %v245
  %v853 = vunpack.c.h.b16 %v245
  %v854 = vunpack.c.l.b16 %v246
  %v855 = vunpack.c.h.b16 %v246
  %v856 = vunpack.c.l.b16 %v247
  %v857 = vunpack.c.h.b16 %v247
  %v858 = vpack.c.b16 %v470, %v466
  %v859 = vpack.c.b16 %v471, %v467
  %v860 = vpack.c.b16 %v472, %v468
  %v861 = vpack.c.b16 %v473, %v469
  %v862 = vpack.c.b16 %v478, %v474
  %v863 = vpack.c.b16 %v479, %v475
  %v864 = vpack.c.b16 %v480, %v476
  %v865 = vpack.c.b16 %v481, %v477
  %v866 = vpack.c.b16 %v486, %v482
  %v867 = vpack.c.b16 %v487, %v483
  %v868 = vpack.c.b16 %v488, %v484
  %v869 = vpack.c.b16 %v489, %v485
  %v870 = vpack.c.b16 %v494, %v490
  %v871 = vpack.c.b16 %v495, %v491
  %v872 = vpack.c.b16 %v496, %v492
  %v873 = vpack.c.b16 %v497, %v493
  %v874 = vpack.c.b16 %v502, %v498
  %v875 = vpack.c.b16 %v503, %v499
  %v876 = vpack.c.b16 %v504, %v500
  %v877 = vpack.c.b16 %v505, %v501
  %v878 = vpack.c.b16 %v510, %v506
  %v879 = vpack.c.b16 %v511, %v507
  %v880 = vpack.c.b16 %v512, %v508
  %v881 = vpack.c.b16 %v513, %v509
  %v882 = vpack.c.b16 %v518, %v514
  %v883 = vpack.c.b16 %v519, %v515
  %v884 = vpack.c.b16 %v520, %v516
  %v885 = vpack.c.b16 %v521, %v517
  %v886 = vpack.c.b16 %v526, %v522
  %v887 = vpack.c.b16 %v527, %v523
  %v888 = vpack.c.b16 %v528, %v524
  %v889 = vpack.c.b16 %v529, %v525
  %v890 = vpack.c.b16 %v534, %v530
  %v891 = vpack.c.b16 %v535, %v531
  %v892 = vpack.c.b16 %v536, %v532
  %v893 = vpack.c.b16 %v537, %v533
  %v894 = vpack.c.b16 %v542, %v538
  %v895 = vpack.c.b16 %v543, %v539
  %v896 = vpack.c.b16 %v544, %v540
  %v897 = vpack.c.b16 %v545, %v541
  %v898 = vpack.c.b16 %v550, %v546
  %v899 = vpack.c.b16 %v551, %v547
  %v900 = vpack.c.b16 %v552, %v548
  %v901 = vpack.c.b16 %v553, %v549
  %v902 = vpack.c.b16 %v558, %v554
  %v903 = vpack.c.b16 %v559, %v555
  %v904 = vpack.c.b16 %v560, %v556
  %v905 = vpack.c.b16 %v561, %v557
  %v906 = vpack.c.b16 %v566, %v562
  %v907 = vpack.c.b16 %v567, %v563
  %v908 = vpack.c.b16 %v568, %v564
  %v909 = vpack.c.b16 %v569, %v565
  %v910 = vpack.c.b16 %v574, %v570
  %v911 = vpack.c.b16 %v575, %v571
  %v912 = vpack.c.b16 %v576, %v572
  %v913 = vpack.c.b16 %v577, %v573
  %v914 = vpack.c.b16 %v582, %v578
  %v915 = vpack.c.b16 %v583, %v579
  %v916 = vpack.c.b16 %v584, %v580
  %v917 = vpack.c.b16 %v585, %v581
  %v918 = vpack.c.b16 %v590, %v586
  %v919 = vpack.c.b16 %v591, %v587
  %v920 = vpack.c.b16 %v592, %v588
  %v921 = vpack.c.b16 %v593, %v589
  %v922 = vpack.c.b16 %v598, %v594
  %v923 = vpack.c.b16 %v599, %v595
  %v924 = vpack.c.b16 %v600, %v596
  %v925 = vpack.c.b16 %v601, %v597
  %v926 = vpack.c.b16 %v606, %v602
  %v927 = vpack.c.b16 %v607, %v603
  %v928 = vpack.c.b16 %v608, %v604
  %v929 = vpack.c.b16 %v609, %v605
  %v930 = vpack.c.b16 %v614, %v610
  %v931 = vpack.c.b16 %v615, %v611
  %v932 = vpack.c.b16 %v616, %v612
  %v933 = vpack.c.b16 %v617, %v613
  %v934 = vpack.c.b16 %v622, %v618
  %v935 = vpack.c.b16 %v623, %v619
  %v936 = vpack.c.b16 %v624, %v620
  %v937 = vpack.c.b16 %v625, %v621
  %v938 = vpack.c.b16 %v630, %v626
  %v939 = vpack.c.b16 %v631, %v627
  %v940 = vpack.c.b16 %v632, %v628
  %v941 = vpack.c.b16 %v633, %v629
  %v942 = vpack.c.b16 %v638, %v634
  %v943 = vpack.c.b16 %v639, %v635
  %v944 = vpack.c.b16 %v640, %v636
  %v945 = vpack.c.b16 %v641, %v637
  %v946 = vpack.c.b16 %v646, %v642
  %v947 = vpack.c.b16 %v647, %v643
  %v948 = vpack.c.b16 %v648, %v644
  %v949 = vpack.c.b16 %v649, %v645
  %v950 = vpack.c.b16 %v654, %v650
  %v951 = vpack.c.b16 %v655, %v651
  %v952 = vpack.c.b16 %v656, %v652
  %v953 = vpack.c.b16 %v657, %v653
  %v954 = vpack.c.b16 %v662, %v658
  %v955 = vpack.c.b16 %v663, %v659
  %v956 = vpack.c.b16 %v664, %v660
  %v957 = vpack.c.b16 %v665, %v661
  %v958 = vpack.c.b16 %v670, %v666
  %v959 = vpack.c.b16 %v671, %v667
  %v960 = vpack.c.b16 %v672, %v668
  %v961 = vpack.c.b16 %v673, %v669
  %v962 = vpack.c.b16 %v678, %v674
  %v963 = vpack.c.b16 %v679, %v675
  %v964 = vpack.c.b16 %v680, %v676
  %v965 = vpack.c.b16 %v681, %v677
  %v966 = vpack.c.b16 %v686, %v682
  %v967 = vpack.c.b16 %v687, %v683
  %v968 = vpack.c.b16 %v688, %v684
  %v969 = vpack.c.b16 %v689, %v685
  %v970 = vpack.c.b16 %v694, %v690
  %v971 = vpack.c.b16 %v695, %v691
  %v972 = vpack.c.b16 %v696, %v692
  %v973 = vpack.c.b16 %v697, %v693
  %v974 = vpack.c.b16 %v702, %v698
  %v975 = vpack.c.b16 %v703, %v699
  %v976 = vpack.c.b16 %v704, %v700
  %v977 = vpack.c.b16 %v705, %v701
  %v978 = vpack.c.b16 %v710, %v706
  %v979 = vpack.c.b16 %v711, %v707
  %v980 = vpack.c.b16 %v712, %v708
  %v981 = vpack.c.b16 %v713, %v709
  %v982 = vpack.c.b16 %v718, %v714
  %v983 = vpack.c.b16 %v719, %v715
  %v984 = vpack.c.b16 %v720, %v716
  %v985 = vpack.c.b16 %v721, %v717
  %v986 = vpack.c.b16 %v726, %v722
  %v987 = vpack.c.b16 %v727, %v723
  %v988 = vpack.c.b16 %v728, %v724
  %v989 = vpack.c.b16 %v729, %v725
  %v990 = vpack.c.b16 %v734, %v730
  %v991 = vpack.c.b16 %v735, %v731
  %v992 = vpack.c.b16 %v736, %v732
  %v993 = vpack.c.b16 %v737, %v733
  %v994 = vpack.c.b16 %v742, %v738
  %v995 = vpack.c.b16 %v743, %v739
  %v996 = vpack.c.b16 %v744, %v740
  %v997 = vpack.c.b16 %v745, %v741
  %v998 = vpack.c.b16 %v750, %v746
  %v999 = vpack.c.b16 %v751, %v747
  %v1000 = vpack.c.b16 %v752, %v748
  %v1001 = vpack.c.b16 %v753, %v749
  %v1002 = vpack.c.b16 %v758, %v754
  %v1003 = vpack.c.b16 %v759, %v755
  %v1004 = vpack.c.b16 %v760, %v756
  %v1005 = vpack.c.b16 %v761, %v757
  %v1006 = vpack.c.b16 %v766, %v762
  %v1007 = vpack.c.b16 %v767, %v763
  %v1008 = vpack.c.b16 %v768, %v764
  %v1009 = vpack.c.b16 %v769, %v765
  %v1010 = vpack.c.b16 %v774, %v770
  %v1011 = vpack.c.b16 %v775, %v771
  %v1012 = vpack.c.b16 %v776, %v772
  %v1013 = vpack.c.b16 %v777, %v773
  %v1014 = vpack.c.b16 %v782, %v778
  %v1015 = vpack.c.b16 %v783, %v779
  %v1016 = vpack.c.b16 %v784, %v780
  %v1017 = vpack.c.b16 %v785, %v781
  %v1018 = vpack.c.b16 %v790, %v786
  %v1019 = vpack.c.b16 %v791, %v787
  %v1020 = vpack.c.b16 %v792, %v788
  %v1021 = vpack.c.b16 %v793, %v789
  %v1022 = vpack.c.b16 %v798, %v794
  %v1023 = vpack.c.b16 %v799, %v795
  %v1024 = vpack.c.b16 %v800, %v796
  %v1025 = vpack.c.b16 %v801, %v797
  %v1026 = vpack.c.b16 %v806, %v802
  %v1027 = vpack.c.b16 %v807, %v803
  %v1028 = vpack.c.b16 %v808, %v804
  %v1029 = vpack.c.b16 %v809, %v805
  %v1030 = vpack.c.b16 %v814, %v810
  %v1031 = vpack.c.b16 %v815, %v811
  %v1032 = vpack.c.b16 %v816, %v812
  %v1033 = vpack.c.b16 %v817, %v813
  %v1034 = vpack.c.b16 %v822, %v818
  %v1035 = vpack.c.b16 %v823, %v819
  %v1036 = vpack.c.b16 %v824, %v820
  %v1037 = vpack.c.b16 %v825, %v821
  %v1038 = vpack.c.b16 %v830, %v826
  %v1039 = vpack.c.b16 %v831, %v827
  %v1040 = vpack.c.b16 %v832, %v828
  %v1041 = vpack.c.b16 %v833, %v829
  %v1042 = vpack.c.b16 %v838, %v834
  %v1043 = vpack.c.b16 %v839, %v835
  %v1044 = vpack.c.b16 %v840, %v836
  %v1045 = vpack.c.b16 %v841, %v837
  %v1046 = vpack.c.b16 %v846, %v842
  %v1047 = vpack.c.b16 %v847, %v843
  %v1048 = vpack.c.b16 %v848, %v844
  %v1049 = vpack.c.b16 %v849, %v845
  %v1050 = vpack.c.b16 %v854, %v850
  %v1051 = vpack.c.b16 %v855, %v851
  %v1052 = vpack.c.b16 %v856, %v852
  %v1053 = vpack.c.b16 %v857, %v853
  %vm1250 = vcmask 130048
  %v1252 = vsel %vm1250, %v51, 0
  %1254 = vmatprep.subr.bf16.mxu0 %v887
  %1255 = vmatpush1.bf16.msra.mxu0 %v886
  %1256 = vmatprep.subr.bf16.mxu0 %v883
  %1257 = vmatpush1.bf16.msra.mxu0 %v882
  %1258 = vmatprep.subr.bf16.mxu0 %v879
  %1259 = vmatpush1.bf16.msra.mxu0 %v878
  %1260 = vmatprep.subr.bf16.mxu0 %v875
  %1261 = vmatpush1.bf16.msra.mxu0 %v874
  %1262 = vmatprep.subr.bf16.mxu0 %v871
  %1263 = vmatpush1.bf16.msra.mxu0 %v870
  %1264 = vmatprep.subr.bf16.mxu0 %v867
  %1265 = vmatpush1.bf16.msra.mxu0 %v866
  %1266 = vmatprep.subr.bf16.mxu0 %v863
  %1267 = vmatpush1.bf16.msra.mxu0 %v862
  %1268 = vmatprep.subr.bf16.mxu0 %v859
  %1269 = vmatpush1.bf16.msra.mxu0 %v858
  %1270 = vmatprep.subr.bf16.mxu0 %v919
  %1271 = vmatpush2.bf16.msra.mxu0 %v918
  %1272 = vmatprep.subr.bf16.mxu0 %v915
  %1273 = vmatpush2.bf16.msra.mxu0 %v914
  %1274 = vmatprep.subr.bf16.mxu0 %v911
  %1275 = vmatpush2.bf16.msra.mxu0 %v910
  %1276 = vmatprep.subr.bf16.mxu0 %v907
  %1277 = vmatpush2.bf16.msra.mxu0 %v906
  %1278 = vmatprep.subr.bf16.mxu0 %v903
  %1279 = vmatpush2.bf16.msra.mxu0 %v902
  %1280 = vmatprep.subr.bf16.mxu0 %v899
  %1281 = vmatpush2.bf16.msra.mxu0 %v898
  %1282 = vmatprep.subr.bf16.mxu0 %v895
  %1283 = vmatpush2.bf16.msra.mxu0 %v894
  %1284 = vmatprep.subr.bf16.mxu0 %v891
  %1285 = vmatpush2.bf16.msra.mxu0 %v890
  %1286 = vmatprep.mubr.bf16.mxu0 %v46
  %1287 = vmatmul.mubr.bf16.gmra.mxu0 %v45
  %v1288 = vpop.f32.mrf.mxu0
  %v1289 = vadd.f32 %v253, %v1288
  %v1290 = vpop.f32.mrf.mxu0
  %v1291 = vadd.f32 %v257, %v1290
  %v1292 = vpop.f32.mrf.mxu0
  %v1293 = vpop.f32.mrf.mxu0
  %1294 = vdwg.mxu0
  %1295 = vmatprep.subr.bf16.mxu0 %v951
  %1296 = vmatpush1.bf16.msra.mxu0 %v950
  %1297 = vmatprep.subr.bf16.mxu0 %v947
  %1298 = vmatpush1.bf16.msra.mxu0 %v946
  %1299 = vmatprep.subr.bf16.mxu0 %v943
  %1300 = vmatpush1.bf16.msra.mxu0 %v942
  %1301 = vmatprep.subr.bf16.mxu0 %v939
  %1302 = vmatpush1.bf16.msra.mxu0 %v938
  %1303 = vmatprep.subr.bf16.mxu0 %v935
  %1304 = vmatpush1.bf16.msra.mxu0 %v934
  %1305 = vmatprep.subr.bf16.mxu0 %v931
  %1306 = vmatpush1.bf16.msra.mxu0 %v930
  %1307 = vmatprep.subr.bf16.mxu0 %v927
  %1308 = vmatpush1.bf16.msra.mxu0 %v926
  %1309 = vmatprep.subr.bf16.mxu0 %v923
  %1310 = vmatpush1.bf16.msra.mxu0 %v922
  %1311 = vmatprep.subr.bf16.mxu0 %v983
  %1312 = vmatpush2.bf16.msra.mxu0 %v982
  %1313 = vmatprep.subr.bf16.mxu0 %v979
  %1314 = vmatpush2.bf16.msra.mxu0 %v978
  %1315 = vmatprep.subr.bf16.mxu0 %v975
  %1316 = vmatpush2.bf16.msra.mxu0 %v974
  %1317 = vmatprep.subr.bf16.mxu0 %v971
  %1318 = vmatpush2.bf16.msra.mxu0 %v970
  %1319 = vmatprep.subr.bf16.mxu0 %v967
  %1320 = vmatpush2.bf16.msra.mxu0 %v966
  %1321 = vmatprep.subr.bf16.mxu0 %v963
  %1322 = vmatpush2.bf16.msra.mxu0 %v962
  %1323 = vmatprep.subr.bf16.mxu0 %v959
  %1324 = vmatpush2.bf16.msra.mxu0 %v958
  %1325 = vmatprep.subr.bf16.mxu0 %v955
  %1326 = vmatpush2.bf16.msra.mxu0 %v954
  %1327 = vmatprep.mubr.bf16.mxu0 %v48
  %1328 = vmatmul.mubr.bf16.gmra.mxu0 %v47
  %v1329 = vpop.f32.mrf.mxu0
  %v1330 = vadd.f32 %v1289, %v1329
  %v1331 = vpop.f32.mrf.mxu0
  %v1332 = vadd.f32 %v1291, %v1331
  %v1333 = vpop.f32.mrf.mxu0
  %v1334 = vpop.f32.mrf.mxu0
  %1335 = vdwg.mxu0
  %1336 = vmatprep.subr.bf16.mxu0 %v1015
  %1337 = vmatpush1.bf16.msra.mxu0 %v1014
  %1338 = vmatprep.subr.bf16.mxu0 %v1011
  %1339 = vmatpush1.bf16.msra.mxu0 %v1010
  %1340 = vmatprep.subr.bf16.mxu0 %v1007
  %1341 = vmatpush1.bf16.msra.mxu0 %v1006
  %1342 = vmatprep.subr.bf16.mxu0 %v1003
  %1343 = vmatpush1.bf16.msra.mxu0 %v1002
  %1344 = vmatprep.subr.bf16.mxu0 %v999
  %1345 = vmatpush1.bf16.msra.mxu0 %v998
  %1346 = vmatprep.subr.bf16.mxu0 %v995
  %1347 = vmatpush1.bf16.msra.mxu0 %v994
  %1348 = vmatprep.subr.bf16.mxu0 %v991
  %1349 = vmatpush1.bf16.msra.mxu0 %v990
  %1350 = vmatprep.subr.bf16.mxu0 %v987
  %1351 = vmatpush1.bf16.msra.mxu0 %v986
  %1352 = vmatprep.subr.bf16.mxu0 %v1047
  %1353 = vmatpush2.bf16.msra.mxu0 %v1046
  %1354 = vmatprep.subr.bf16.mxu0 %v1043
  %1355 = vmatpush2.bf16.msra.mxu0 %v1042
  %1356 = vmatprep.subr.bf16.mxu0 %v1039
  %1357 = vmatpush2.bf16.msra.mxu0 %v1038
  %1358 = vmatprep.subr.bf16.mxu0 %v1035
  %1359 = vmatpush2.bf16.msra.mxu0 %v1034
  %1360 = vmatprep.subr.bf16.mxu0 %v1031
  %1361 = vmatpush2.bf16.msra.mxu0 %v1030
  %1362 = vmatprep.subr.bf16.mxu0 %v1027
  %1363 = vmatpush2.bf16.msra.mxu0 %v1026
  %1364 = vmatprep.subr.bf16.mxu0 %v1023
  %1365 = vmatpush2.bf16.msra.mxu0 %v1022
  %1366 = vmatprep.subr.bf16.mxu0 %v1019
  %1367 = vmatpush2.bf16.msra.mxu0 %v1018
  %1368 = vmatprep.mubr.bf16.mxu0 %v50
  %1369 = vmatmul.mubr.bf16.gmra.mxu0 %v49
  %v1370 = vpop.f32.mrf.mxu0
  %v1371 = vadd.f32 %v1330, %v1370
  %v1372 = vpop.f32.mrf.mxu0
  %v1373 = vadd.f32 %v1332, %v1372
  %v1374 = vpop.f32.mrf.mxu0
  %v1375 = vpop.f32.mrf.mxu0
  %1376 = vdwg.mxu0
  %1377 = vmatprep.subr.bf16.mxu0 0
  %1378 = vmatpush1.bf16.msra.mxu0 0
  %1379 = vmatprep.subr.bf16.mxu0 0
  %1380 = vmatpush1.bf16.msra.mxu0 0
  %1381 = vmatprep.subr.bf16.mxu0 0
  %1382 = vmatpush1.bf16.msra.mxu0 0
  %1383 = vmatprep.subr.bf16.mxu0 0
  %1384 = vmatpush1.bf16.msra.mxu0 0
  %1385 = vmatprep.subr.bf16.mxu0 0
  %1386 = vmatpush1.bf16.msra.mxu0 0
  %1387 = vmatprep.subr.bf16.mxu0 0
  %1388 = vmatpush1.bf16.msra.mxu0 0
  %1389 = vmatprep.subr.bf16.mxu0 0
  %1390 = vmatpush1.bf16.msra.mxu0 0
  %1391 = vmatprep.subr.bf16.mxu0 %v1051
  %1392 = vmatpush1.bf16.msra.mxu0 %v1050
  %1393 = vmatprep.subr.bf16.mxu0 0
  %1394 = vmatpush2.bf16.msra.mxu0 0
  %1395 = vmatprep.subr.bf16.mxu0 0
  %1396 = vmatpush2.bf16.msra.mxu0 0
  %1397 = vmatprep.subr.bf16.mxu0 0
  %1398 = vmatpush2.bf16.msra.mxu0 0
  %1399 = vmatprep.subr.bf16.mxu0 0
  %1400 = vmatpush2.bf16.msra.mxu0 0
  %1401 = vmatprep.subr.bf16.mxu0 0
  %1402 = vmatpush2.bf16.msra.mxu0 0
  %1403 = vmatprep.subr.bf16.mxu0 0
  %1404 = vmatpush2.bf16.msra.mxu0 0
  %1405 = vmatprep.subr.bf16.mxu0 0
  %1406 = vmatpush2.bf16.msra.mxu0 0
  %1407 = vmatprep.subr.bf16.mxu0 0
  %1408 = vmatpush2.bf16.msra.mxu0 0
  %1409 = vmatprep.mubr.bf16.mxu0 0
  %1410 = vmatmul.mubr.bf16.gmra.mxu0 %v1252
  %v1411 = vpop.f32.mrf.mxu0
  %v1412 = vadd.f32 %v1371, %v1411
  %v1413 = vpop.f32.mrf.mxu0
  %v1414 = vadd.f32 %v1373, %v1413
  %v1415 = vpop.f32.mrf.mxu0
  %v1416 = vpop.f32.mrf.mxu0
  %1417 = vdwg.mxu0
  %1418 = vmatprep.subr.bf16.mxu0 %v889
  %1419 = vmatpush1.bf16.msra.mxu0 %v888
  %1420 = vmatprep.subr.bf16.mxu0 %v885
  %1421 = vmatpush1.bf16.msra.mxu0 %v884
  %1422 = vmatprep.subr.bf16.mxu0 %v881
  %1423 = vmatpush1.bf16.msra.mxu0 %v880
  %1424 = vmatprep.subr.bf16.mxu0 %v877
  %1425 = vmatpush1.bf16.msra.mxu0 %v876
  %1426 = vmatprep.subr.bf16.mxu0 %v873
  %1427 = vmatpush1.bf16.msra.mxu0 %v872
  %1428 = vmatprep.subr.bf16.mxu0 %v869
  %1429 = vmatpush1.bf16.msra.mxu0 %v868
  %1430 = vmatprep.subr.bf16.mxu0 %v865
  %1431 = vmatpush1.bf16.msra.mxu0 %v864
  %1432 = vmatprep.subr.bf16.mxu0 %v861
  %1433 = vmatpush1.bf16.msra.mxu0 %v860
  %1434 = vmatprep.subr.bf16.mxu0 %v921
  %1435 = vmatpush2.bf16.msra.mxu0 %v920
  %1436 = vmatprep.subr.bf16.mxu0 %v917
  %1437 = vmatpush2.bf16.msra.mxu0 %v916
  %1438 = vmatprep.subr.bf16.mxu0 %v913
  %1439 = vmatpush2.bf16.msra.mxu0 %v912
  %1440 = vmatprep.subr.bf16.mxu0 %v909
  %1441 = vmatpush2.bf16.msra.mxu0 %v908
  %1442 = vmatprep.subr.bf16.mxu0 %v905
  %1443 = vmatpush2.bf16.msra.mxu0 %v904
  %1444 = vmatprep.subr.bf16.mxu0 %v901
  %1445 = vmatpush2.bf16.msra.mxu0 %v900
  %1446 = vmatprep.subr.bf16.mxu0 %v897
  %1447 = vmatpush2.bf16.msra.mxu0 %v896
  %1448 = vmatprep.subr.bf16.mxu0 %v893
  %1449 = vmatpush2.bf16.msra.mxu0 %v892
  %1450 = vmatprep.mubr.bf16.mxu0 %v46
  %1451 = vmatmul.mubr.bf16.gmra.mxu0 %v45
  %v1452 = vpop.f32.mrf.mxu0
  %v1453 = vadd.f32 %v261, %v1452
  %v1454 = vpop.f32.mrf.mxu0
  %v1455 = vadd.f32 %v265, %v1454
  %v1456 = vpop.f32.mrf.mxu0
  %v1457 = vpop.f32.mrf.mxu0
  %1458 = vdwg.mxu0
  %1459 = vmatprep.subr.bf16.mxu0 %v953
  %1460 = vmatpush1.bf16.msra.mxu0 %v952
  %1461 = vmatprep.subr.bf16.mxu0 %v949
  %1462 = vmatpush1.bf16.msra.mxu0 %v948
  %1463 = vmatprep.subr.bf16.mxu0 %v945
  %1464 = vmatpush1.bf16.msra.mxu0 %v944
  %1465 = vmatprep.subr.bf16.mxu0 %v941
  %1466 = vmatpush1.bf16.msra.mxu0 %v940
  %1467 = vmatprep.subr.bf16.mxu0 %v937
  %1468 = vmatpush1.bf16.msra.mxu0 %v936
  %1469 = vmatprep.subr.bf16.mxu0 %v933
  %1470 = vmatpush1.bf16.msra.mxu0 %v932
  %1471 = vmatprep.subr.bf16.mxu0 %v929
  %1472 = vmatpush1.bf16.msra.mxu0 %v928
  %1473 = vmatprep.subr.bf16.mxu0 %v925
  %1474 = vmatpush1.bf16.msra.mxu0 %v924
  %1475 = vmatprep.subr.bf16.mxu0 %v985
  %1476 = vmatpush2.bf16.msra.mxu0 %v984
  %1477 = vmatprep.subr.bf16.mxu0 %v981
  %1478 = vmatpush2.bf16.msra.mxu0 %v980
  %1479 = vmatprep.subr.bf16.mxu0 %v977
  %1480 = vmatpush2.bf16.msra.mxu0 %v976
  %1481 = vmatprep.subr.bf16.mxu0 %v973
  %1482 = vmatpush2.bf16.msra.mxu0 %v972
  %1483 = vmatprep.subr.bf16.mxu0 %v969
  %1484 = vmatpush2.bf16.msra.mxu0 %v968
  %1485 = vmatprep.subr.bf16.mxu0 %v965
  %1486 = vmatpush2.bf16.msra.mxu0 %v964
  %1487 = vmatprep.subr.bf16.mxu0 %v961
  %1488 = vmatpush2.bf16.msra.mxu0 %v960
  %1489 = vmatprep.subr.bf16.mxu0 %v957
  %1490 = vmatpush2.bf16.msra.mxu0 %v956
  %1491 = vmatprep.mubr.bf16.mxu0 %v48
  %1492 = vmatmul.mubr.bf16.gmra.mxu0 %v47
  %v1493 = vpop.f32.mrf.mxu0
  %v1494 = vadd.f32 %v1453, %v1493
  %v1495 = vpop.f32.mrf.mxu0
  %v1496 = vadd.f32 %v1455, %v1495
  %v1497 = vpop.f32.mrf.mxu0
  %v1498 = vpop.f32.mrf.mxu0
  %1499 = vdwg.mxu0
  %1500 = vmatprep.subr.bf16.mxu0 %v1017
  %1501 = vmatpush1.bf16.msra.mxu0 %v1016
  %1502 = vmatprep.subr.bf16.mxu0 %v1013
  %1503 = vmatpush1.bf16.msra.mxu0 %v1012
  %1504 = vmatprep.subr.bf16.mxu0 %v1009
  %1505 = vmatpush1.bf16.msra.mxu0 %v1008
  %1506 = vmatprep.subr.bf16.mxu0 %v1005
  %1507 = vmatpush1.bf16.msra.mxu0 %v1004
  %1508 = vmatprep.subr.bf16.mxu0 %v1001
  %1509 = vmatpush1.bf16.msra.mxu0 %v1000
  %1510 = vmatprep.subr.bf16.mxu0 %v997
  %1511 = vmatpush1.bf16.msra.mxu0 %v996
  %1512 = vmatprep.subr.bf16.mxu0 %v993
  %1513 = vmatpush1.bf16.msra.mxu0 %v992
  %1514 = vmatprep.subr.bf16.mxu0 %v989
  %1515 = vmatpush1.bf16.msra.mxu0 %v988
  %1516 = vmatprep.subr.bf16.mxu0 %v1049
  %1517 = vmatpush2.bf16.msra.mxu0 %v1048
  %1518 = vmatprep.subr.bf16.mxu0 %v1045
  %1519 = vmatpush2.bf16.msra.mxu0 %v1044
  %1520 = vmatprep.subr.bf16.mxu0 %v1041
  %1521 = vmatpush2.bf16.msra.mxu0 %v1040
  %1522 = vmatprep.subr.bf16.mxu0 %v1037
  %1523 = vmatpush2.bf16.msra.mxu0 %v1036
  %1524 = vmatprep.subr.bf16.mxu0 %v1033
  %1525 = vmatpush2.bf16.msra.mxu0 %v1032
  %1526 = vmatprep.subr.bf16.mxu0 %v1029
  %1527 = vmatpush2.bf16.msra.mxu0 %v1028
  %1528 = vmatprep.subr.bf16.mxu0 %v1025
  %1529 = vmatpush2.bf16.msra.mxu0 %v1024
  %1530 = vmatprep.subr.bf16.mxu0 %v1021
  %1531 = vmatpush2.bf16.msra.mxu0 %v1020
  %1532 = vmatprep.mubr.bf16.mxu0 %v50
  %1533 = vmatmul.mubr.bf16.gmra.mxu0 %v49
  %v1534 = vpop.f32.mrf.mxu0
  %v1535 = vadd.f32 %v1494, %v1534
  %v1536 = vpop.f32.mrf.mxu0
  %v1537 = vadd.f32 %v1496, %v1536
  %v1538 = vpop.f32.mrf.mxu0
  %v1539 = vpop.f32.mrf.mxu0
  %1540 = vdwg.mxu0
  %1541 = vmatprep.subr.bf16.mxu0 0
  %1542 = vmatpush1.bf16.msra.mxu0 0
  %1543 = vmatprep.subr.bf16.mxu0 0
  %1544 = vmatpush1.bf16.msra.mxu0 0
  %1545 = vmatprep.subr.bf16.mxu0 0
  %1546 = vmatpush1.bf16.msra.mxu0 0
  %1547 = vmatprep.subr.bf16.mxu0 0
  %1548 = vmatpush1.bf16.msra.mxu0 0
  %1549 = vmatprep.subr.bf16.mxu0 0
  %1550 = vmatpush1.bf16.msra.mxu0 0
  %1551 = vmatprep.subr.bf16.mxu0 0
  %1552 = vmatpush1.bf16.msra.mxu0 0
  %1553 = vmatprep.subr.bf16.mxu0 0
  %1554 = vmatpush1.bf16.msra.mxu0 0
  %1555 = vmatprep.subr.bf16.mxu0 %v1053
  %1556 = vmatpush1.bf16.msra.mxu0 %v1052
  %1557 = vmatprep.subr.bf16.mxu0 0
  %1558 = vmatpush2.bf16.msra.mxu0 0
  %1559 = vmatprep.subr.bf16.mxu0 0
  %1560 = vmatpush2.bf16.msra.mxu0 0
  %1561 = vmatprep.subr.bf16.mxu0 0
  %1562 = vmatpush2.bf16.msra.mxu0 0
  %1563 = vmatprep.subr.bf16.mxu0 0
  %1564 = vmatpush2.bf16.msra.mxu0 0
  %1565 = vmatprep.subr.bf16.mxu0 0
  %1566 = vmatpush2.bf16.msra.mxu0 0
  %1567 = vmatprep.subr.bf16.mxu0 0
  %1568 = vmatpush2.bf16.msra.mxu0 0
  %1569 = vmatprep.subr.bf16.mxu0 0
  %1570 = vmatpush2.bf16.msra.mxu0 0
  %1571 = vmatprep.subr.bf16.mxu0 0
  %1572 = vmatpush2.bf16.msra.mxu0 0
  %1573 = vmatprep.mubr.bf16.mxu0 0
  %1574 = vmatmul.mubr.bf16.gmra.mxu0 %v1252
  %v1575 = vpop.f32.mrf.mxu0
  %v1576 = vadd.f32 %v1535, %v1575
  %v1577 = vpop.f32.mrf.mxu0
  %v1578 = vadd.f32 %v1537, %v1577
  %v1579 = vpop.f32.mrf.mxu0
  %v1580 = vpop.f32.mrf.mxu0
  %1581 = vdwg.mxu0
  %v1582 = vmax.f32 %v1412, 0.0
  %v1583 = vmax.f32 %v1414, 0.0
  %v1584 = vmax.f32 %v1576, 0.0
  %v1585 = vmax.f32 %v1578, 0.0
  %v1586 = vpack.c.bf16 %v1582, %v1582
  %v1587 = vpack.c.bf16 %v1583, %v1583
  %v1588 = vpack.c.bf16 %v1584, %v1584
  %v1589 = vpack.c.bf16 %v1585, %v1585
  %v1590 = vld [vmem:[%s4] sm:$0xff]
  %v1591 = vld [vmem:[%s4 + $0x8] sm:$0xff]
  %v1592 = vld [vmem:[%s4 + $0x10] sm:$0xff]
  %v1593 = vld [vmem:[%s4 + $0x18] sm:$0xff]
  %v1594 = vld [vmem:[%s4 + $0x20] sm:$0xff]
  %v1595 = vld [vmem:[%s4 + $0x28] sm:$0xff]
  %v1596 = vld [vmem:[%s4 + $0x30] sm:$0xff]
  %v1597 = vld [vmem:[%s4 + $0x38] sm:$0xff]
  %v1598 = vld [vmem:[%s4 + $0x40] sm:$0xff]
  %v1599 = vld [vmem:[%s4 + $0x48] sm:$0xff]
  %v1600 = vld [vmem:[%s4 + $0x50] sm:$0xff]
  %v1601 = vld [vmem:[%s4 + $0x58] sm:$0xff]
  %v1602 = vld [vmem:[%s4 + $0x60] sm:$0xff]
  %v1603 = vld [vmem:[%s4 + $0x68] sm:$0xff]
  %v1604 = vld [vmem:[%s4 + $0x70] sm:$0xff]
  %v1605 = vld [vmem:[%s4 + $0x78] sm:$0xff]
  %v1606 = vld [vmem:[%s4 + $0x80] sm:$0xff]
  %v1607 = vld [vmem:[%s4 + $0x88] sm:$0xff]
  %v1608 = vld [vmem:[%s4 + $0x90] sm:$0xff]
  %v1609 = vld [vmem:[%s4 + $0x98] sm:$0xff]
  %v1610 = vld [vmem:[%s4 + $0xa0] sm:$0xff]
  %v1611 = vld [vmem:[%s4 + $0xa8] sm:$0xff]
  %v1612 = vld [vmem:[%s4 + $0xb0] sm:$0xff]
  %v1613 = vld [vmem:[%s4 + $0xb8] sm:$0xff]
  %v1614 = vld [vmem:[%s4 + $0xc0] sm:$0xff]
  %v1615 = vld [vmem:[%s4 + $0xc8] sm:$0xff]
  %v1616 = vld [vmem:[%s4 + $0xd0] sm:$0xff]
  %v1617 = vld [vmem:[%s4 + $0xd8] sm:$0xff]
  %v1618 = vld [vmem:[%s4 + $0xe0] sm:$0xff]
  %v1619 = vld [vmem:[%s4 + $0xe8] sm:$0xff]
  %v1620 = vld [vmem:[%s4 + $0xf0] sm:$0xff]
  %v1621 = vld [vmem:[%s4 + $0xf8] sm:$0xff]
  %v1622 = vld [vmem:[%s4 + $0x100] sm:$0xff]
  %v1623 = vld [vmem:[%s4 + $0x108] sm:$0xff]
  %v1624 = vld [vmem:[%s4 + $0x110] sm:$0xff]
  %v1625 = vld [vmem:[%s4 + $0x118] sm:$0xff]
  %v1626 = vld [vmem:[%s4 + $0x120] sm:$0xff]
  %v1627 = vld [vmem:[%s4 + $0x128] sm:$0xff]
  %v1628 = vld [vmem:[%s4 + $0x130] sm:$0xff]
  %v1629 = vld [vmem:[%s4 + $0x138] sm:$0xff]
  %v1630 = vld [vmem:[%s4 + $0x140] sm:$0xff]
  %v1631 = vld [vmem:[%s4 + $0x148] sm:$0xff]
  %v1632 = vld [vmem:[%s4 + $0x150] sm:$0xff]
  %v1633 = vld [vmem:[%s4 + $0x158] sm:$0xff]
  %v1634 = vld [vmem:[%s4 + $0x160] sm:$0xff]
  %v1635 = vld [vmem:[%s4 + $0x168] sm:$0xff]
  %v1636 = vld [vmem:[%s4 + $0x170] sm:$0xff]
  %v1637 = vld [vmem:[%s4 + $0x178] sm:$0xff]
  %v1638 = vld [vmem:[%s4 + $0x180] sm:$0xff]
  %v1639 = vld [vmem:[%s4 + $0x188] sm:$0xff]
  %v1640 = vld [vmem:[%s5] sm:$0x3]
  %v1642 = vlaneseq
  %v1643 = vshrl.u32 %v1642, 7
  %v1644 = vsub.s32 0, %v1643
  %v1645 = vrot.slane %v1640, %v1644
  %v1646 = vlaneseq
  %v1647 = vshrl.u32 %v1646, 7
  %v1648 = vsub.s32 1, %v1647
  %v1649 = vrot.slane %v1640, %v1648
  %v1702 = vunpack.c.l.b16 %v1590
  %v1703 = vunpack.c.h.b16 %v1590
  %v1704 = vunpack.c.l.b16 %v1591
  %v1705 = vunpack.c.h.b16 %v1591
  %v1706 = vunpack.c.l.b16 %v1592
  %v1707 = vunpack.c.h.b16 %v1592
  %v1708 = vunpack.c.l.b16 %v1593
  %v1709 = vunpack.c.h.b16 %v1593
  %v1710 = vunpack.c.l.b16 %v1594
  %v1711 = vunpack.c.h.b16 %v1594
  %v1712 = vunpack.c.l.b16 %v1595
  %v1713 = vunpack.c.h.b16 %v1595
  %v1714 = vunpack.c.l.b16 %v1596
  %v1715 = vunpack.c.h.b16 %v1596
  %v1716 = vunpack.c.l.b16 %v1597
  %v1717 = vunpack.c.h.b16 %v1597
  %v1718 = vunpack.c.l.b16 %v1598
  %v1719 = vunpack.c.h.b16 %v1598
  %v1720 = vunpack.c.l.b16 %v1599
  %v1721 = vunpack.c.h.b16 %v1599
  %v1722 = vunpack.c.l.b16 %v1600
  %v1723 = vunpack.c.h.b16 %v1600
  %v1724 = vunpack.c.l.b16 %v1601
  %v1725 = vunpack.c.h.b16 %v1601
  %v1726 = vunpack.c.l.b16 %v1602
  %v1727 = vunpack.c.h.b16 %v1602
  %v1728 = vunpack.c.l.b16 %v1603
  %v1729 = vunpack.c.h.b16 %v1603
  %v1730 = vunpack.c.l.b16 %v1604
  %v1731 = vunpack.c.h.b16 %v1604
  %v1732 = vunpack.c.l.b16 %v1605
  %v1733 = vunpack.c.h.b16 %v1605
  %v1734 = vunpack.c.l.b16 %v1606
  %v1735 = vunpack.c.h.b16 %v1606
  %v1736 = vunpack.c.l.b16 %v1607
  %v1737 = vunpack.c.h.b16 %v1607
  %v1738 = vunpack.c.l.b16 %v1608
  %v1739 = vunpack.c.h.b16 %v1608
  %v1740 = vunpack.c.l.b16 %v1609
  %v1741 = vunpack.c.h.b16 %v1609
  %v1742 = vunpack.c.l.b16 %v1610
  %v1743 = vunpack.c.h.b16 %v1610
  %v1744 = vunpack.c.l.b16 %v1611
  %v1745 = vunpack.c.h.b16 %v1611
  %v1746 = vunpack.c.l.b16 %v1612
  %v1747 = vunpack.c.h.b16 %v1612
  %v1748 = vunpack.c.l.b16 %v1613
  %v1749 = vunpack.c.h.b16 %v1613
  %v1750 = vunpack.c.l.b16 %v1614
  %v1751 = vunpack.c.h.b16 %v1614
  %v1752 = vunpack.c.l.b16 %v1615
  %v1753 = vunpack.c.h.b16 %v1615
  %v1754 = vunpack.c.l.b16 %v1616
  %v1755 = vunpack.c.h.b16 %v1616
  %v1756 = vunpack.c.l.b16 %v1617
  %v1757 = vunpack.c.h.b16 %v1617
  %v1758 = vunpack.c.l.b16 %v1618
  %v1759 = vunpack.c.h.b16 %v1618
  %v1760 = vunpack.c.l.b16 %v1619
  %v1761 = vunpack.c.h.b16 %v1619
  %v1762 = vunpack.c.l.b16 %v1620
  %v1763 = vunpack.c.h.b16 %v1620
  %v1764 = vunpack.c.l.b16 %v1621
  %v1765 = vunpack.c.h.b16 %v1621
  %v1766 = vunpack.c.l.b16 %v1622
  %v1767 = vunpack.c.h.b16 %v1622
  %v1768 = vunpack.c.l.b16 %v1623
  %v1769 = vunpack.c.h.b16 %v1623
  %v1770 = vunpack.c.l.b16 %v1624
  %v1771 = vunpack.c.h.b16 %v1624
  %v1772 = vunpack.c.l.b16 %v1625
  %v1773 = vunpack.c.h.b16 %v1625
  %v1774 = vunpack.c.l.b16 %v1626
  %v1775 = vunpack.c.h.b16 %v1626
  %v1776 = vunpack.c.l.b16 %v1627
  %v1777 = vunpack.c.h.b16 %v1627
  %v1778 = vunpack.c.l.b16 %v1628
  %v1779 = vunpack.c.h.b16 %v1628
  %v1780 = vunpack.c.l.b16 %v1629
  %v1781 = vunpack.c.h.b16 %v1629
  %v1782 = vunpack.c.l.b16 %v1630
  %v1783 = vunpack.c.h.b16 %v1630
  %v1784 = vunpack.c.l.b16 %v1631
  %v1785 = vunpack.c.h.b16 %v1631
  %v1786 = vunpack.c.l.b16 %v1632
  %v1787 = vunpack.c.h.b16 %v1632
  %v1788 = vunpack.c.l.b16 %v1633
  %v1789 = vunpack.c.h.b16 %v1633
  %v1790 = vunpack.c.l.b16 %v1634
  %v1791 = vunpack.c.h.b16 %v1634
  %v1792 = vunpack.c.l.b16 %v1635
  %v1793 = vunpack.c.h.b16 %v1635
  %v1794 = vunpack.c.l.b16 %v1636
  %v1795 = vunpack.c.h.b16 %v1636
  %v1796 = vunpack.c.l.b16 %v1637
  %v1797 = vunpack.c.h.b16 %v1637
  %v1798 = vunpack.c.l.b16 %v1638
  %v1799 = vunpack.c.h.b16 %v1638
  %v1800 = vunpack.c.l.b16 %v1639
  %v1801 = vunpack.c.h.b16 %v1639
  %v1802 = vpack.c.b16 %v1704, %v1702
  %v1803 = vpack.c.b16 %v1705, %v1703
  %v1804 = vpack.c.b16 %v1708, %v1706
  %v1805 = vpack.c.b16 %v1709, %v1707
  %v1806 = vpack.c.b16 %v1712, %v1710
  %v1807 = vpack.c.b16 %v1713, %v1711
  %v1808 = vpack.c.b16 %v1716, %v1714
  %v1809 = vpack.c.b16 %v1717, %v1715
  %v1810 = vpack.c.b16 %v1720, %v1718
  %v1811 = vpack.c.b16 %v1721, %v1719
  %v1812 = vpack.c.b16 %v1724, %v1722
  %v1813 = vpack.c.b16 %v1725, %v1723
  %v1814 = vpack.c.b16 %v1728, %v1726
  %v1815 = vpack.c.b16 %v1729, %v1727
  %v1816 = vpack.c.b16 %v1732, %v1730
  %v1817 = vpack.c.b16 %v1733, %v1731
  %v1818 = vpack.c.b16 %v1736, %v1734
  %v1819 = vpack.c.b16 %v1737, %v1735
  %v1820 = vpack.c.b16 %v1740, %v1738
  %v1821 = vpack.c.b16 %v1741, %v1739
  %v1822 = vpack.c.b16 %v1744, %v1742
  %v1823 = vpack.c.b16 %v1745, %v1743
  %v1824 = vpack.c.b16 %v1748, %v1746
  %v1825 = vpack.c.b16 %v1749, %v1747
  %v1826 = vpack.c.b16 %v1752, %v1750
  %v1827 = vpack.c.b16 %v1753, %v1751
  %v1828 = vpack.c.b16 %v1756, %v1754
  %v1829 = vpack.c.b16 %v1757, %v1755
  %v1830 = vpack.c.b16 %v1760, %v1758
  %v1831 = vpack.c.b16 %v1761, %v1759
  %v1832 = vpack.c.b16 %v1764, %v1762
  %v1833 = vpack.c.b16 %v1765, %v1763
  %v1834 = vpack.c.b16 %v1768, %v1766
  %v1835 = vpack.c.b16 %v1769, %v1767
  %v1836 = vpack.c.b16 %v1772, %v1770
  %v1837 = vpack.c.b16 %v1773, %v1771
  %v1838 = vpack.c.b16 %v1776, %v1774
  %v1839 = vpack.c.b16 %v1777, %v1775
  %v1840 = vpack.c.b16 %v1780, %v1778
  %v1841 = vpack.c.b16 %v1781, %v1779
  %v1842 = vpack.c.b16 %v1784, %v1782
  %v1843 = vpack.c.b16 %v1785, %v1783
  %v1844 = vpack.c.b16 %v1788, %v1786
  %v1845 = vpack.c.b16 %v1789, %v1787
  %v1846 = vpack.c.b16 %v1792, %v1790
  %v1847 = vpack.c.b16 %v1793, %v1791
  %v1848 = vpack.c.b16 %v1796, %v1794
  %v1849 = vpack.c.b16 %v1797, %v1795
  %v1850 = vpack.c.b16 %v1800, %v1798
  %v1851 = vpack.c.b16 %v1801, %v1799
  %v1903 = vsel %vm1250, %v1589, 0
  %1905 = vmatprep.subr.bf16.mxu0 %v1817
  %1906 = vmatpush1.bf16.msra.mxu0 %v1816
  %1907 = vmatprep.subr.bf16.mxu0 %v1815
  %1908 = vmatpush1.bf16.msra.mxu0 %v1814
  %1909 = vmatprep.subr.bf16.mxu0 %v1813
  %1910 = vmatpush1.bf16.msra.mxu0 %v1812
  %1911 = vmatprep.subr.bf16.mxu0 %v1811
  %1912 = vmatpush1.bf16.msra.mxu0 %v1810
  %1913 = vmatprep.subr.bf16.mxu0 %v1809
  %1914 = vmatpush1.bf16.msra.mxu0 %v1808
  %1915 = vmatprep.subr.bf16.mxu0 %v1807
  %1916 = vmatpush1.bf16.msra.mxu0 %v1806
  %1917 = vmatprep.subr.bf16.mxu0 %v1805
  %1918 = vmatpush1.bf16.msra.mxu0 %v1804
  %1919 = vmatprep.subr.bf16.mxu0 %v1803
  %1920 = vmatpush1.bf16.msra.mxu0 %v1802
  %1921 = vmatprep.subr.bf16.mxu0 %v1833
  %1922 = vmatpush2.bf16.msra.mxu0 %v1832
  %1923 = vmatprep.subr.bf16.mxu0 %v1831
  %1924 = vmatpush2.bf16.msra.mxu0 %v1830
  %1925 = vmatprep.subr.bf16.mxu0 %v1829
  %1926 = vmatpush2.bf16.msra.mxu0 %v1828
  %1927 = vmatprep.subr.bf16.mxu0 %v1827
  %1928 = vmatpush2.bf16.msra.mxu0 %v1826
  %1929 = vmatprep.subr.bf16.mxu0 %v1825
  %1930 = vmatpush2.bf16.msra.mxu0 %v1824
  %1931 = vmatprep.subr.bf16.mxu0 %v1823
  %1932 = vmatpush2.bf16.msra.mxu0 %v1822
  %1933 = vmatprep.subr.bf16.mxu0 %v1821
  %1934 = vmatpush2.bf16.msra.mxu0 %v1820
  %1935 = vmatprep.subr.bf16.mxu0 %v1819
  %1936 = vmatpush2.bf16.msra.mxu0 %v1818
  %1937 = vmatprep.mubr.bf16.mxu0 %v1587
  %1938 = vmatmul.mubr.bf16.gmra.mxu0 %v1586
  %v1939 = vpop.f32.mrf.mxu0
  %v1940 = vadd.f32 %v1645, %v1939
  %v1941 = vpop.f32.mrf.mxu0
  %v1942 = vadd.f32 %v1649, %v1941
  %v1943 = vpop.f32.mrf.mxu0
  %v1944 = vpop.f32.mrf.mxu0
  %1945 = vdwg.mxu0
  %1946 = vmatprep.subr.bf16.mxu0 %v1849
  %1947 = vmatpush1.bf16.msra.mxu0 %v1848
  %1948 = vmatprep.subr.bf16.mxu0 %v1847
  %1949 = vmatpush1.bf16.msra.mxu0 %v1846
  %1950 = vmatprep.subr.bf16.mxu0 %v1845
  %1951 = vmatpush1.bf16.msra.mxu0 %v1844
  %1952 = vmatprep.subr.bf16.mxu0 %v1843
  %1953 = vmatpush1.bf16.msra.mxu0 %v1842
  %1954 = vmatprep.subr.bf16.mxu0 %v1841
  %1955 = vmatpush1.bf16.msra.mxu0 %v1840
  %1956 = vmatprep.subr.bf16.mxu0 %v1839
  %1957 = vmatpush1.bf16.msra.mxu0 %v1838
  %1958 = vmatprep.subr.bf16.mxu0 %v1837
  %1959 = vmatpush1.bf16.msra.mxu0 %v1836
  %1960 = vmatprep.subr.bf16.mxu0 %v1835
  %1961 = vmatpush1.bf16.msra.mxu0 %v1834
  %1962 = vmatprep.subr.bf16.mxu0 0
  %1963 = vmatpush2.bf16.msra.mxu0 0
  %1964 = vmatprep.subr.bf16.mxu0 0
  %1965 = vmatpush2.bf16.msra.mxu0 0
  %1966 = vmatprep.subr.bf16.mxu0 0
  %1967 = vmatpush2.bf16.msra.mxu0 0
  %1968 = vmatprep.subr.bf16.mxu0 0
  %1969 = vmatpush2.bf16.msra.mxu0 0
  %1970 = vmatprep.subr.bf16.mxu0 0
  %1971 = vmatpush2.bf16.msra.mxu0 0
  %1972 = vmatprep.subr.bf16.mxu0 0
  %1973 = vmatpush2.bf16.msra.mxu0 0
  %1974 = vmatprep.subr.bf16.mxu0 0
  %1975 = vmatpush2.bf16.msra.mxu0 0
  %1976 = vmatprep.subr.bf16.mxu0 %v1851
  %1977 = vmatpush2.bf16.msra.mxu0 %v1850
  %1978 = vmatprep.mubr.bf16.mxu0 %v1903
  %1979 = vmatmul.mubr.bf16.gmra.mxu0 %v1588
  %v1980 = vpop.f32.mrf.mxu0
  %v1981 = vadd.f32 %v1940, %v1980
  %v1982 = vpop.f32.mrf.mxu0
  %v1983 = vadd.f32 %v1942, %v1982
  %v1984 = vpop.f32.mrf.mxu0
  %v1985 = vpop.f32.mrf.mxu0
  %1986 = vdwg.mxu0
  %v1987 = vld [vmem:[%s1] sm:$0xff]
  %v1988 = vmul.f32 %v1983, 0.5
  %v1989 = vmul.f32 %v1988, 1.442695
  %v1990 = vpow.pop %v1989
  %v1991 = vmul.f32 %v1987, %v1990
  %v1992 = vadd.f32 %v1981, %v1991
  %v1993 = vpack.c.bf16 %v1992, %v1992
  %v1994 = vld [vmem:[%s6] sm:$0xff]
  %v1995 = vld [vmem:[%s6 + $0x8] sm:$0xff]
  %v1996 = vld [vmem:[%s6 + $0x10] sm:$0xff]
  %v1997 = vld [vmem:[%s6 + $0x18] sm:$0xff]
  %v1998 = vld [vmem:[%s6 + $0x20] sm:$0x33]
  %v1999 = vld [vmem:[%s6 + $0x28] sm:$0x33]
  %v2000 = vld [vmem:[%s7] sm:$0xf]
  %v2002 = vlaneseq
  %v2003 = vshrl.u32 %v2002, 7
  %v2004 = vsub.s32 0, %v2003
  %v2005 = vrot.slane %v2000, %v2004
  %v2006 = vlaneseq
  %v2007 = vshrl.u32 %v2006, 7
  %v2008 = vsub.s32 1, %v2007
  %v2009 = vrot.slane %v2000, %v2008
  %v2010 = vlaneseq
  %v2011 = vshrl.u32 %v2010, 7
  %v2012 = vsub.s32 2, %v2011
  %v2013 = vrot.slane %v2000, %v2012
  %v2014 = vlaneseq
  %v2015 = vshrl.u32 %v2014, 7
  %v2016 = vsub.s32 3, %v2015
  %v2017 = vrot.slane %v2000, %v2016
  %v2028 = vunpack.c.l.b16 %v1994
  %v2029 = vunpack.c.h.b16 %v1994
  %v2030 = vunpack.c.l.b16 %v1995
  %v2031 = vunpack.c.h.b16 %v1995
  %v2032 = vunpack.c.l.b16 %v1996
  %v2033 = vunpack.c.h.b16 %v1996
  %v2034 = vunpack.c.l.b16 %v1997
  %v2035 = vunpack.c.h.b16 %v1997
  %v2036 = vunpack.c.l.b16 %v1998
  %v2037 = vunpack.c.h.b16 %v1998
  %v2038 = vunpack.c.l.b16 %v1999
  %v2039 = vunpack.c.h.b16 %v1999
  %v2040 = vpack.c.b16 %v2032, %v2028
  %v2041 = vpack.c.b16 %v2033, %v2029
  %v2042 = vpack.c.b16 %v2034, %v2030
  %v2043 = vpack.c.b16 %v2035, %v2031
  %v2044 = vpack.c.b16 %v2036, %v2036
  %v2045 = vpack.c.b16 %v2037, %v2037
  %v2046 = vpack.c.b16 %v2038, %v2038
  %v2047 = vpack.c.b16 %v2039, %v2039
  %vm2052 = vcmask 162816
  %v2054 = vsel %vm2052, %v1993, 0
  %vm2056 = vcmask 1041408
  %v2058 = vsel %vm2056, %v2044, 0
  %v2061 = vsel %vm2056, %v2045, 0
  %v2064 = vsel %vm2056, %v2046, 0
  %v2067 = vsel %vm2056, %v2047, 0
  %2069 = vmatprep.subr.bf16.mxu0 0
  %2070 = vmatpush1.bf16.msra.mxu0 0
  %2071 = vmatprep.subr.bf16.mxu0 0
  %2072 = vmatpush1.bf16.msra.mxu0 0
  %2073 = vmatprep.subr.bf16.mxu0 0
  %2074 = vmatpush1.bf16.msra.mxu0 0
  %2075 = vmatprep.subr.bf16.mxu0 0
  %2076 = vmatpush1.bf16.msra.mxu0 0
  %2077 = vmatprep.subr.bf16.mxu0 0
  %2078 = vmatpush1.bf16.msra.mxu0 0
  %2079 = vmatprep.subr.bf16.mxu0 0
  %2080 = vmatpush1.bf16.msra.mxu0 0
  %2081 = vmatprep.subr.bf16.mxu0 %v2061
  %2082 = vmatpush1.bf16.msra.mxu0 %v2058
  %2083 = vmatprep.subr.bf16.mxu0 %v2041
  %2084 = vmatpush1.bf16.msra.mxu0 %v2040
  %2085 = vmatprep.subr.bf16.mxu0 0
  %2086 = vmatpush2.bf16.msra.mxu0 0
  %2087 = vmatprep.subr.bf16.mxu0 0
  %2088 = vmatpush2.bf16.msra.mxu0 0
  %2089 = vmatprep.subr.bf16.mxu0 0
  %2090 = vmatpush2.bf16.msra.mxu0 0
  %2091 = vmatprep.subr.bf16.mxu0 0
  %2092 = vmatpush2.bf16.msra.mxu0 0
  %2093 = vmatprep.subr.bf16.mxu0 0
  %2094 = vmatpush2.bf16.msra.mxu0 0
  %2095 = vmatprep.subr.bf16.mxu0 0
  %2096 = vmatpush2.bf16.msra.mxu0 0
  %2097 = vmatprep.subr.bf16.mxu0 0
  %2098 = vmatpush2.bf16.msra.mxu0 0
  %2099 = vmatprep.subr.bf16.mxu0 0
  %2100 = vmatpush2.bf16.msra.mxu0 0
  %2101 = vmatprep.mubr.bf16.mxu0 0
  %2102 = vmatmul.mubr.bf16.gmra.mxu0 %v2054
  %v2103 = vpop.f32.mrf.mxu0
  %v2104 = vadd.f32 %v2005, %v2103
  %v2105 = vpop.f32.mrf.mxu0
  %v2106 = vadd.f32 %v2009, %v2105
  %v2107 = vpop.f32.mrf.mxu0
  %v2108 = vpop.f32.mrf.mxu0
  %2109 = vdwg.mxu0
  %2110 = vmatprep.subr.bf16.mxu0 0
  %2111 = vmatpush1.bf16.msra.mxu0 0
  %2112 = vmatprep.subr.bf16.mxu0 0
  %2113 = vmatpush1.bf16.msra.mxu0 0
  %2114 = vmatprep.subr.bf16.mxu0 0
  %2115 = vmatpush1.bf16.msra.mxu0 0
  %2116 = vmatprep.subr.bf16.mxu0 0
  %2117 = vmatpush1.bf16.msra.mxu0 0
  %2118 = vmatprep.subr.bf16.mxu0 0
  %2119 = vmatpush1.bf16.msra.mxu0 0
  %2120 = vmatprep.subr.bf16.mxu0 0
  %2121 = vmatpush1.bf16.msra.mxu0 0
  %2122 = vmatprep.subr.bf16.mxu0 %v2067
  %2123 = vmatpush1.bf16.msra.mxu0 %v2064
  %2124 = vmatprep.subr.bf16.mxu0 %v2043
  %2125 = vmatpush1.bf16.msra.mxu0 %v2042
  %2126 = vmatprep.subr.bf16.mxu0 0
  %2127 = vmatpush2.bf16.msra.mxu0 0
  %2128 = vmatprep.subr.bf16.mxu0 0
  %2129 = vmatpush2.bf16.msra.mxu0 0
  %2130 = vmatprep.subr.bf16.mxu0 0
  %2131 = vmatpush2.bf16.msra.mxu0 0
  %2132 = vmatprep.subr.bf16.mxu0 0
  %2133 = vmatpush2.bf16.msra.mxu0 0
  %2134 = vmatprep.subr.bf16.mxu0 0
  %2135 = vmatpush2.bf16.msra.mxu0 0
  %2136 = vmatprep.subr.bf16.mxu0 0
  %2137 = vmatpush2.bf16.msra.mxu0 0
  %2138 = vmatprep.subr.bf16.mxu0 0
  %2139 = vmatpush2.bf16.msra.mxu0 0
  %2140 = vmatprep.subr.bf16.mxu0 0
  %2141 = vmatpush2.bf16.msra.mxu0 0
  %2142 = vmatprep.mubr.bf16.mxu0 0
  %2143 = vmatmul.mubr.bf16.gmra.mxu0 %v2054
  %v2144 = vpop.f32.mrf.mxu0
  %v2145 = vadd.f32 %v2013, %v2144
  %v2146 = vpop.f32.mrf.mxu0
  %v2147 = vadd.f32 %v2017, %v2146
  %v2148 = vpop.f32.mrf.mxu0
  %v2149 = vpop.f32.mrf.mxu0
  %2150 = vdwg.mxu0
  %v2151 = vmax.f32 %v2104, 0.0
  %v2152 = vmax.f32 %v2106, 0.0
  %v2153 = vmax.f32 %v2145, 0.0
  %v2154 = vmax.f32 %v2147, 0.0
  %v2155 = vpack.c.bf16 %v2151, %v2151
  %v2156 = vpack.c.bf16 %v2152, %v2152
  %v2157 = vpack.c.bf16 %v2153, %v2153
  %v2158 = vpack.c.bf16 %v2154, %v2154
  %v2159 = vld [vmem:[%s8] sm:$0xff]
  %v2160 = vld [vmem:[%s8 + $0x8] sm:$0xff]
  %v2161 = vld [vmem:[%s8 + $0x10] sm:$0xff]
  %v2162 = vld [vmem:[%s8 + $0x18] sm:$0xf]
  %v2163 = vld [vmem:[%s8 + $0x1c] sm:$0xff]
  %v2164 = vld [vmem:[%s8 + $0x24] sm:$0xff]
  %v2165 = vld [vmem:[%s8 + $0x2c] sm:$0xff]
  %v2166 = vld [vmem:[%s8 + $0x34] sm:$0xf]
  %v2167 = vld [vmem:[%s8 + $0x38] sm:$0xff]
  %v2168 = vld [vmem:[%s8 + $0x40] sm:$0xff]
  %v2169 = vld [vmem:[%s8 + $0x48] sm:$0xff]
  %v2170 = vld [vmem:[%s8 + $0x50] sm:$0xf]
  %v2171 = vld [vmem:[%s8 + $0x54] sm:$0xff]
  %v2172 = vld [vmem:[%s8 + $0x5c] sm:$0xff]
  %v2173 = vld [vmem:[%s8 + $0x64] sm:$0xff]
  %v2174 = vld [vmem:[%s8 + $0x6c] sm:$0xf]
  %v2175 = vld [vmem:[%s8 + $0x70] sm:$0xff]
  %v2176 = vld [vmem:[%s8 + $0x78] sm:$0xff]
  %v2177 = vld [vmem:[%s8 + $0x80] sm:$0xff]
  %v2178 = vld [vmem:[%s8 + $0x88] sm:$0xf]
  %v2179 = vld [vmem:[%s8 + $0x8c] sm:$0xff]
  %v2180 = vld [vmem:[%s8 + $0x94] sm:$0xff]
  %v2181 = vld [vmem:[%s8 + $0x9c] sm:$0xff]
  %v2182 = vld [vmem:[%s8 + $0xa4] sm:$0xf]
  %v2183 = vld [vmem:[%s8 + $0xa8] sm:$0xff]
  %v2184 = vld [vmem:[%s8 + $0xb0] sm:$0xff]
  %v2185 = vld [vmem:[%s8 + $0xb8] sm:$0xff]
  %v2186 = vld [vmem:[%s8 + $0xc0] sm:$0xf]
  %v2187 = vld [vmem:[%s8 + $0xc4] sm:$0xff]
  %v2188 = vld [vmem:[%s8 + $0xcc] sm:$0xff]
  %v2189 = vld [vmem:[%s8 + $0xd4] sm:$0xff]
  %v2190 = vld [vmem:[%s8 + $0xdc] sm:$0xf]
  %v2191 = vld [vmem:[%s8 + $0xe0] sm:$0xff]
  %v2192 = vld [vmem:[%s8 + $0xe8] sm:$0xff]
  %v2193 = vld [vmem:[%s8 + $0xf0] sm:$0xff]
  %v2194 = vld [vmem:[%s8 + $0xf8] sm:$0xf]
  %v2195 = vld [vmem:[%s8 + $0xfc] sm:$0xff]
  %v2196 = vld [vmem:[%s8 + $0x104] sm:$0xff]
  %v2197 = vld [vmem:[%s8 + $0x10c] sm:$0xff]
  %v2198 = vld [vmem:[%s8 + $0x114] sm:$0xf]
  %v2199 = vld [vmem:[%s8 + $0x118] sm:$0xff]
  %v2200 = vld [vmem:[%s8 + $0x120] sm:$0xff]
  %v2201 = vld [vmem:[%s8 + $0x128] sm:$0xff]
  %v2202 = vld [vmem:[%s8 + $0x130] sm:$0xf]
  %v2203 = vld [vmem:[%s8 + $0x134] sm:$0xff]
  %v2204 = vld [vmem:[%s8 + $0x13c] sm:$0xff]
  %v2205 = vld [vmem:[%s8 + $0x144] sm:$0xff]
  %v2206 = vld [vmem:[%s8 + $0x14c] sm:$0xf]
  %v2207 = vld [vmem:[%s8 + $0x150] sm:$0xff]
  %v2208 = vld [vmem:[%s8 + $0x158] sm:$0xff]
  %v2209 = vld [vmem:[%s8 + $0x160] sm:$0xff]
  %v2210 = vld [vmem:[%s8 + $0x168] sm:$0xf]
  %v2211 = vld [vmem:[%s8 + $0x16c] sm:$0xff]
  %v2212 = vld [vmem:[%s8 + $0x174] sm:$0xff]
  %v2213 = vld [vmem:[%s8 + $0x17c] sm:$0xff]
  %v2214 = vld [vmem:[%s8 + $0x184] sm:$0xf]
  %v2215 = vld [vmem:[%s8 + $0x188] sm:$0xff]
  %v2216 = vld [vmem:[%s8 + $0x190] sm:$0xff]
  %v2217 = vld [vmem:[%s8 + $0x198] sm:$0xff]
  %v2218 = vld [vmem:[%s8 + $0x1a0] sm:$0xf]
  %v2219 = vld [vmem:[%s8 + $0x1a4] sm:$0xff]
  %v2220 = vld [vmem:[%s8 + $0x1ac] sm:$0xff]
  %v2221 = vld [vmem:[%s8 + $0x1b4] sm:$0xff]
  %v2222 = vld [vmem:[%s8 + $0x1bc] sm:$0xf]
  %v2223 = vld [vmem:[%s8 + $0x1c0] sm:$0xff]
  %v2224 = vld [vmem:[%s8 + $0x1c8] sm:$0xff]
  %v2225 = vld [vmem:[%s8 + $0x1d0] sm:$0xff]
  %v2226 = vld [vmem:[%s8 + $0x1d8] sm:$0xf]
  %v2227 = vld [vmem:[%s8 + $0x1dc] sm:$0xff]
  %v2228 = vld [vmem:[%s8 + $0x1e4] sm:$0xff]
  %v2229 = vld [vmem:[%s8 + $0x1ec] sm:$0xff]
  %v2230 = vld [vmem:[%s8 + $0x1f4] sm:$0xf]
  %v2231 = vld [vmem:[%s8 + $0x1f8] sm:$0xff]
  %v2232 = vld [vmem:[%s8 + $0x200] sm:$0xff]
  %v2233 = vld [vmem:[%s8 + $0x208] sm:$0xff]
  %v2234 = vld [vmem:[%s8 + $0x210] sm:$0xf]
  %v2235 = vld [vmem:[%s8 + $0x214] sm:$0xff]
  %v2236 = vld [vmem:[%s8 + $0x21c] sm:$0xff]
  %v2237 = vld [vmem:[%s8 + $0x224] sm:$0xff]
  %v2238 = vld [vmem:[%s8 + $0x22c] sm:$0xf]
  %v2239 = vld [vmem:[%s8 + $0x230] sm:$0xff]
  %v2240 = vld [vmem:[%s8 + $0x238] sm:$0xff]
  %v2241 = vld [vmem:[%s8 + $0x240] sm:$0xff]
  %v2242 = vld [vmem:[%s8 + $0x248] sm:$0xf]
  %v2243 = vld [vmem:[%s8 + $0x24c] sm:$0xff]
  %v2244 = vld [vmem:[%s8 + $0x254] sm:$0xff]
  %v2245 = vld [vmem:[%s8 + $0x25c] sm:$0xff]
  %v2246 = vld [vmem:[%s8 + $0x264] sm:$0xf]
  %v2247 = vld [vmem:[%s8 + $0x268] sm:$0xff]
  %v2248 = vld [vmem:[%s8 + $0x270] sm:$0xff]
  %v2249 = vld [vmem:[%s8 + $0x278] sm:$0xff]
  %v2250 = vld [vmem:[%s8 + $0x280] sm:$0xf]
  %v2251 = vld [vmem:[%s8 + $0x284] sm:$0xff]
  %v2252 = vld [vmem:[%s8 + $0x28c] sm:$0xff]
  %v2253 = vld [vmem:[%s8 + $0x294] sm:$0xff]
  %v2254 = vld [vmem:[%s8 + $0x29c] sm:$0xf]
  %v2255 = vld [vmem:[%s8 + $0x2a0] sm:$0xff]
  %v2256 = vld [vmem:[%s8 + $0x2a8] sm:$0xff]
  %v2257 = vld [vmem:[%s8 + $0x2b0] sm:$0xff]
  %v2258 = vld [vmem:[%s8 + $0x2b8] sm:$0xf]
  %v2259 = vld [vmem:[%s8 + $0x2bc] sm:$0xff]
  %v2260 = vld [vmem:[%s8 + $0x2c4] sm:$0xff]
  %v2261 = vld [vmem:[%s8 + $0x2cc] sm:$0xff]
  %v2262 = vld [vmem:[%s8 + $0x2d4] sm:$0xf]
  %v2263 = vld [vmem:[%s8 + $0x2d8] sm:$0xff]
  %v2264 = vld [vmem:[%s8 + $0x2e0] sm:$0xff]
  %v2265 = vld [vmem:[%s8 + $0x2e8] sm:$0xff]
  %v2266 = vld [vmem:[%s8 + $0x2f0] sm:$0xf]
  %v2267 = vld [vmem:[%s8 + $0x2f4] sm:$0xff]
  %v2268 = vld [vmem:[%s8 + $0x2fc] sm:$0xff]
  %v2269 = vld [vmem:[%s8 + $0x304] sm:$0xff]
  %v2270 = vld [vmem:[%s8 + $0x30c] sm:$0xf]
  %v2271 = vld [vmem:[%s8 + $0x310] sm:$0xff]
  %v2272 = vld [vmem:[%s8 + $0x318] sm:$0xff]
  %v2273 = vld [vmem:[%s8 + $0x320] sm:$0xff]
  %v2274 = vld [vmem:[%s8 + $0x328] sm:$0xf]
  %v2275 = vld [vmem:[%s8 + $0x32c] sm:$0xff]
  %v2276 = vld [vmem:[%s8 + $0x334] sm:$0xff]
  %v2277 = vld [vmem:[%s8 + $0x33c] sm:$0xff]
  %v2278 = vld [vmem:[%s8 + $0x344] sm:$0xf]
  %v2279 = vld [vmem:[%s8 + $0x348] sm:$0xff]
  %v2280 = vld [vmem:[%s8 + $0x350] sm:$0xff]
  %v2281 = vld [vmem:[%s8 + $0x358] sm:$0xff]
  %v2282 = vld [vmem:[%s8 + $0x360] sm:$0xf]
  %v2283 = vld [vmem:[%s8 + $0x364] sm:$0xff]
  %v2284 = vld [vmem:[%s8 + $0x36c] sm:$0xff]
  %v2285 = vld [vmem:[%s8 + $0x374] sm:$0xff]
  %v2286 = vld [vmem:[%s8 + $0x37c] sm:$0xf]
  %v2287 = vld [vmem:[%s8 + $0x380] sm:$0xff]
  %v2288 = vld [vmem:[%s8 + $0x388] sm:$0xff]
  %v2289 = vld [vmem:[%s8 + $0x390] sm:$0xff]
  %v2290 = vld [vmem:[%s8 + $0x398] sm:$0xf]
  %v2291 = vld [vmem:[%s8 + $0x39c] sm:$0xff]
  %v2292 = vld [vmem:[%s8 + $0x3a4] sm:$0xff]
  %v2293 = vld [vmem:[%s8 + $0x3ac] sm:$0xff]
  %v2294 = vld [vmem:[%s8 + $0x3b4] sm:$0xf]
  %v2295 = vld [vmem:[%s8 + $0x3b8] sm:$0xff]
  %v2296 = vld [vmem:[%s8 + $0x3c0] sm:$0xff]
  %v2297 = vld [vmem:[%s8 + $0x3c8] sm:$0xff]
  %v2298 = vld [vmem:[%s8 + $0x3d0] sm:$0xf]
  %v2299 = vld [vmem:[%s8 + $0x3d4] sm:$0xff]
  %v2300 = vld [vmem:[%s8 + $0x3dc] sm:$0xff]
  %v2301 = vld [vmem:[%s8 + $0x3e4] sm:$0xff]
  %v2302 = vld [vmem:[%s8 + $0x3ec] sm:$0xf]
  %v2303 = vld [vmem:[%s8 + $0x3f0] sm:$0xff]
  %v2304 = vld [vmem:[%s8 + $0x3f8] sm:$0xff]
  %v2305 = vld [vmem:[%s8 + $0x400] sm:$0xff]
  %v2306 = vld [vmem:[%s8 + $0x408] sm:$0xf]
  %v2307 = vld [vmem:[%s8 + $0x40c] sm:$0xff]
  %v2308 = vld [vmem:[%s8 + $0x414] sm:$0xff]
  %v2309 = vld [vmem:[%s8 + $0x41c] sm:$0xff]
  %v2310 = vld [vmem:[%s8 + $0x424] sm:$0xf]
  %v2311 = vld [vmem:[%s8 + $0x428] sm:$0xff]
  %v2312 = vld [vmem:[%s8 + $0x430] sm:$0xff]
  %v2313 = vld [vmem:[%s8 + $0x438] sm:$0xff]
  %v2314 = vld [vmem:[%s8 + $0x440] sm:$0xf]
  %v2315 = vld [vmem:[%s8 + $0x444] sm:$0xff]
  %v2316 = vld [vmem:[%s8 + $0x44c] sm:$0xff]
  %v2317 = vld [vmem:[%s8 + $0x454] sm:$0xff]
  %v2318 = vld [vmem:[%s8 + $0x45c] sm:$0xf]
  %v2319 = vld [vmem:[%s8 + $0x460] sm:$0xff]
  %v2320 = vld [vmem:[%s8 + $0x468] sm:$0xff]
  %v2321 = vld [vmem:[%s8 + $0x470] sm:$0xff]
  %v2322 = vld [vmem:[%s8 + $0x478] sm:$0xf]
  %v2323 = vld [vmem:[%s8 + $0x47c] sm:$0xff]
  %v2324 = vld [vmem:[%s8 + $0x484] sm:$0xff]
  %v2325 = vld [vmem:[%s8 + $0x48c] sm:$0xff]
  %v2326 = vld [vmem:[%s8 + $0x494] sm:$0xf]
  %v2327 = vld [vmem:[%s8 + $0x498] sm:$0xff]
  %v2328 = vld [vmem:[%s8 + $0x4a0] sm:$0xff]
  %v2329 = vld [vmem:[%s8 + $0x4a8] sm:$0xff]
  %v2330 = vld [vmem:[%s8 + $0x4b0] sm:$0xf]
  %v2331 = vld [vmem:[%s8 + $0x4b4] sm:$0xff]
  %v2332 = vld [vmem:[%s8 + $0x4bc] sm:$0xff]
  %v2333 = vld [vmem:[%s8 + $0x4c4] sm:$0xff]
  %v2334 = vld [vmem:[%s8 + $0x4cc] sm:$0xf]
  %v2335 = vld [vmem:[%s8 + $0x4d0] sm:$0xff]
  %v2336 = vld [vmem:[%s8 + $0x4d8] sm:$0xff]
  %v2337 = vld [vmem:[%s8 + $0x4e0] sm:$0xff]
  %v2338 = vld [vmem:[%s8 + $0x4e8] sm:$0xf]
  %v2339 = vld [vmem:[%s8 + $0x4ec] sm:$0xff]
  %v2340 = vld [vmem:[%s8 + $0x4f4] sm:$0xff]
  %v2341 = vld [vmem:[%s8 + $0x4fc] sm:$0xff]
  %v2342 = vld [vmem:[%s8 + $0x504] sm:$0xf]
  %v2343 = vld [vmem:[%s8 + $0x508] sm:$0xff]
  %v2344 = vld [vmem:[%s8 + $0x510] sm:$0xff]
  %v2345 = vld [vmem:[%s8 + $0x518] sm:$0xff]
  %v2346 = vld [vmem:[%s8 + $0x520] sm:$0xf]
  %v2347 = vld [vmem:[%s8 + $0x524] sm:$0xff]
  %v2348 = vld [vmem:[%s8 + $0x52c] sm:$0xff]
  %v2349 = vld [vmem:[%s8 + $0x534] sm:$0xff]
  %v2350 = vld [vmem:[%s8 + $0x53c] sm:$0xf]
  %v2351 = vld [vmem:[%s8 + $0x540] sm:$0xff]
  %v2352 = vld [vmem:[%s8 + $0x548] sm:$0xff]
  %v2353 = vld [vmem:[%s8 + $0x550] sm:$0xff]
  %v2354 = vld [vmem:[%s8 + $0x558] sm:$0xf]
  %v2355 = vld [vmem:[%s8 + $0x55c] sm:$0xff]
  %v2356 = vld [vmem:[%s8 + $0x564] sm:$0xff]
  %v2357 = vld [vmem:[%s8 + $0x56c] sm:$0xff]
  %v2358 = vld [vmem:[%s8 + $0x574] sm:$0xf]
  %v2359 = vld [vmem:[%s9] sm:$0xff]
  %v2361 = vlaneseq
  %v2362 = vshrl.u32 %v2361, 7
  %v2363 = vsub.s32 0, %v2362
  %v2364 = vrot.slane %v2359, %v2363
  %v2365 = vlaneseq
  %v2366 = vshrl.u32 %v2365, 7
  %v2367 = vsub.s32 1, %v2366
  %v2368 = vrot.slane %v2359, %v2367
  %v2369 = vlaneseq
  %v2370 = vshrl.u32 %v2369, 7
  %v2371 = vsub.s32 2, %v2370
  %v2372 = vrot.slane %v2359, %v2371
  %v2373 = vlaneseq
  %v2374 = vshrl.u32 %v2373, 7
  %v2375 = vsub.s32 3, %v2374
  %v2376 = vrot.slane %v2359, %v2375
  %v2377 = vlaneseq
  %v2378 = vshrl.u32 %v2377, 7
  %v2379 = vsub.s32 4, %v2378
  %v2380 = vrot.slane %v2359, %v2379
  %v2381 = vlaneseq
  %v2382 = vshrl.u32 %v2381, 7
  %v2383 = vsub.s32 5, %v2382
  %v2384 = vrot.slane %v2359, %v2383
  %v2385 = vlaneseq
  %v2386 = vshrl.u32 %v2385, 7
  %v2387 = vsub.s32 6, %v2386
  %v2388 = vrot.slane %v2359, %v2387
  %v2596 = vunpack.c.l.b16 %v2159
  %v2597 = vunpack.c.h.b16 %v2159
  %v2598 = vunpack.c.l.b16 %v2160
  %v2599 = vunpack.c.h.b16 %v2160
  %v2600 = vunpack.c.l.b16 %v2161
  %v2601 = vunpack.c.h.b16 %v2161
  %v2602 = vunpack.c.l.b16 %v2162
  %v2603 = vunpack.c.l.b16 %v2163
  %v2604 = vunpack.c.h.b16 %v2163
  %v2605 = vunpack.c.l.b16 %v2164
  %v2606 = vunpack.c.h.b16 %v2164
  %v2607 = vunpack.c.l.b16 %v2165
  %v2608 = vunpack.c.h.b16 %v2165
  %v2609 = vunpack.c.l.b16 %v2166
  %v2610 = vunpack.c.l.b16 %v2167
  %v2611 = vunpack.c.h.b16 %v2167
  %v2612 = vunpack.c.l.b16 %v2168
  %v2613 = vunpack.c.h.b16 %v2168
  %v2614 = vunpack.c.l.b16 %v2169
  %v2615 = vunpack.c.h.b16 %v2169
  %v2616 = vunpack.c.l.b16 %v2170
  %v2617 = vunpack.c.l.b16 %v2171
  %v2618 = vunpack.c.h.b16 %v2171
  %v2619 = vunpack.c.l.b16 %v2172
  %v2620 = vunpack.c.h.b16 %v2172
  %v2621 = vunpack.c.l.b16 %v2173
  %v2622 = vunpack.c.h.b16 %v2173
  %v2623 = vunpack.c.l.b16 %v2174
  %v2624 = vunpack.c.l.b16 %v2175
  %v2625 = vunpack.c.h.b16 %v2175
  %v2626 = vunpack.c.l.b16 %v2176
  %v2627 = vunpack.c.h.b16 %v2176
  %v2628 = vunpack.c.l.b16 %v2177
  %v2629 = vunpack.c.h.b16 %v2177
  %v2630 = vunpack.c.l.b16 %v2178
  %v2631 = vunpack.c.l.b16 %v2179
  %v2632 = vunpack.c.h.b16 %v2179
  %v2633 = vunpack.c.l.b16 %v2180
  %v2634 = vunpack.c.h.b16 %v2180
  %v2635 = vunpack.c.l.b16 %v2181
  %v2636 = vunpack.c.h.b16 %v2181
  %v2637 = vunpack.c.l.b16 %v2182
  %v2638 = vunpack.c.l.b16 %v2183
  %v2639 = vunpack.c.h.b16 %v2183
  %v2640 = vunpack.c.l.b16 %v2184
  %v2641 = vunpack.c.h.b16 %v2184
  %v2642 = vunpack.c.l.b16 %v2185
  %v2643 = vunpack.c.h.b16 %v2185
  %v2644 = vunpack.c.l.b16 %v2186
  %v2645 = vunpack.c.l.b16 %v2187
  %v2646 = vunpack.c.h.b16 %v2187
  %v2647 = vunpack.c.l.b16 %v2188
  %v2648 = vunpack.c.h.b16 %v2188
  %v2649 = vunpack.c.l.b16 %v2189
  %v2650 = vunpack.c.h.b16 %v2189
  %v2651 = vunpack.c.l.b16 %v2190
  %v2652 = vunpack.c.l.b16 %v2191
  %v2653 = vunpack.c.h.b16 %v2191
  %v2654 = vunpack.c.l.b16 %v2192
  %v2655 = vunpack.c.h.b16 %v2192
  %v2656 = vunpack.c.l.b16 %v2193
  %v2657 = vunpack.c.h.b16 %v2193
  %v2658 = vunpack.c.l.b16 %v2194
  %v2659 = vunpack.c.l.b16 %v2195
  %v2660 = vunpack.c.h.b16 %v2195
  %v2661 = vunpack.c.l.b16 %v2196
  %v2662 = vunpack.c.h.b16 %v2196
  %v2663 = vunpack.c.l.b16 %v2197
  %v2664 = vunpack.c.h.b16 %v2197
  %v2665 = vunpack.c.l.b16 %v2198
  %v2666 = vunpack.c.l.b16 %v2199
  %v2667 = vunpack.c.h.b16 %v2199
  %v2668 = vunpack.c.l.b16 %v2200
  %v2669 = vunpack.c.h.b16 %v2200
  %v2670 = vunpack.c.l.b16 %v2201
  %v2671 = vunpack.c.h.b16 %v2201
  %v2672 = vunpack.c.l.b16 %v2202
  %v2673 = vunpack.c.l.b16 %v2203
  %v2674 = vunpack.c.h.b16 %v2203
  %v2675 = vunpack.c.l.b16 %v2204
  %v2676 = vunpack.c.h.b16 %v2204
  %v2677 = vunpack.c.l.b16 %v2205
  %v2678 = vunpack.c.h.b16 %v2205
  %v2679 = vunpack.c.l.b16 %v2206
  %v2680 = vunpack.c.l.b16 %v2207
  %v2681 = vunpack.c.h.b16 %v2207
  %v2682 = vunpack.c.l.b16 %v2208
  %v2683 = vunpack.c.h.b16 %v2208
  %v2684 = vunpack.c.l.b16 %v2209
  %v2685 = vunpack.c.h.b16 %v2209
  %v2686 = vunpack.c.l.b16 %v2210
  %v2687 = vunpack.c.l.b16 %v2211
  %v2688 = vunpack.c.h.b16 %v2211
  %v2689 = vunpack.c.l.b16 %v2212
  %v2690 = vunpack.c.h.b16 %v2212
  %v2691 = vunpack.c.l.b16 %v2213
  %v2692 = vunpack.c.h.b16 %v2213
  %v2693 = vunpack.c.l.b16 %v2214
  %v2694 = vunpack.c.l.b16 %v2215
  %v2695 = vunpack.c.h.b16 %v2215
  %v2696 = vunpack.c.l.b16 %v2216
  %v2697 = vunpack.c.h.b16 %v2216
  %v2698 = vunpack.c.l.b16 %v2217
  %v2699 = vunpack.c.h.b16 %v2217
  %v2700 = vunpack.c.l.b16 %v2218
  %v2701 = vunpack.c.l.b16 %v2219
  %v2702 = vunpack.c.h.b16 %v2219
  %v2703 = vunpack.c.l.b16 %v2220
  %v2704 = vunpack.c.h.b16 %v2220
  %v2705 = vunpack.c.l.b16 %v2221
  %v2706 = vunpack.c.h.b16 %v2221
  %v2707 = vunpack.c.l.b16 %v2222
  %v2708 = vunpack.c.l.b16 %v2223
  %v2709 = vunpack.c.h.b16 %v2223
  %v2710 = vunpack.c.l.b16 %v2224
  %v2711 = vunpack.c.h.b16 %v2224
  %v2712 = vunpack.c.l.b16 %v2225
  %v2713 = vunpack.c.h.b16 %v2225
  %v2714 = vunpack.c.l.b16 %v2226
  %v2715 = vunpack.c.l.b16 %v2227
  %v2716 = vunpack.c.h.b16 %v2227
  %v2717 = vunpack.c.l.b16 %v2228
  %v2718 = vunpack.c.h.b16 %v2228
  %v2719 = vunpack.c.l.b16 %v2229
  %v2720 = vunpack.c.h.b16 %v2229
  %v2721 = vunpack.c.l.b16 %v2230
  %v2722 = vunpack.c.l.b16 %v2231
  %v2723 = vunpack.c.h.b16 %v2231
  %v2724 = vunpack.c.l.b16 %v2232
  %v2725 = vunpack.c.h.b16 %v2232
  %v2726 = vunpack.c.l.b16 %v2233
  %v2727 = vunpack.c.h.b16 %v2233
  %v2728 = vunpack.c.l.b16 %v2234
  %v2729 = vunpack.c.l.b16 %v2235
  %v2730 = vunpack.c.h.b16 %v2235
  %v2731 = vunpack.c.l.b16 %v2236
  %v2732 = vunpack.c.h.b16 %v2236
  %v2733 = vunpack.c.l.b16 %v2237
  %v2734 = vunpack.c.h.b16 %v2237
  %v2735 = vunpack.c.l.b16 %v2238
  %v2736 = vunpack.c.l.b16 %v2239
  %v2737 = vunpack.c.h.b16 %v2239
  %v2738 = vunpack.c.l.b16 %v2240
  %v2739 = vunpack.c.h.b16 %v2240
  %v2740 = vunpack.c.l.b16 %v2241
  %v2741 = vunpack.c.h.b16 %v2241
  %v2742 = vunpack.c.l.b16 %v2242
  %v2743 = vunpack.c.l.b16 %v2243
  %v2744 = vunpack.c.h.b16 %v2243
  %v2745 = vunpack.c.l.b16 %v2244
  %v2746 = vunpack.c.h.b16 %v2244
  %v2747 = vunpack.c.l.b16 %v2245
  %v2748 = vunpack.c.h.b16 %v2245
  %v2749 = vunpack.c.l.b16 %v2246
  %v2750 = vunpack.c.l.b16 %v2247
  %v2751 = vunpack.c.h.b16 %v2247
  %v2752 = vunpack.c.l.b16 %v2248
  %v2753 = vunpack.c.h.b16 %v2248
  %v2754 = vunpack.c.l.b16 %v2249
  %v2755 = vunpack.c.h.b16 %v2249
  %v2756 = vunpack.c.l.b16 %v2250
  %v2757 = vunpack.c.l.b16 %v2251
  %v2758 = vunpack.c.h.b16 %v2251
  %v2759 = vunpack.c.l.b16 %v2252
  %v2760 = vunpack.c.h.b16 %v2252
  %v2761 = vunpack.c.l.b16 %v2253
  %v2762 = vunpack.c.h.b16 %v2253
  %v2763 = vunpack.c.l.b16 %v2254
  %v2764 = vunpack.c.l.b16 %v2255
  %v2765 = vunpack.c.h.b16 %v2255
  %v2766 = vunpack.c.l.b16 %v2256
  %v2767 = vunpack.c.h.b16 %v2256
  %v2768 = vunpack.c.l.b16 %v2257
  %v2769 = vunpack.c.h.b16 %v2257
  %v2770 = vunpack.c.l.b16 %v2258
  %v2771 = vunpack.c.l.b16 %v2259
  %v2772 = vunpack.c.h.b16 %v2259
  %v2773 = vunpack.c.l.b16 %v2260
  %v2774 = vunpack.c.h.b16 %v2260
  %v2775 = vunpack.c.l.b16 %v2261
  %v2776 = vunpack.c.h.b16 %v2261
  %v2777 = vunpack.c.l.b16 %v2262
  %v2778 = vunpack.c.l.b16 %v2263
  %v2779 = vunpack.c.h.b16 %v2263
  %v2780 = vunpack.c.l.b16 %v2264
  %v2781 = vunpack.c.h.b16 %v2264
  %v2782 = vunpack.c.l.b16 %v2265
  %v2783 = vunpack.c.h.b16 %v2265
  %v2784 = vunpack.c.l.b16 %v2266
  %v2785 = vunpack.c.l.b16 %v2267
  %v2786 = vunpack.c.h.b16 %v2267
  %v2787 = vunpack.c.l.b16 %v2268
  %v2788 = vunpack.c.h.b16 %v2268
  %v2789 = vunpack.c.l.b16 %v2269
  %v2790 = vunpack.c.h.b16 %v2269
  %v2791 = vunpack.c.l.b16 %v2270
  %v2792 = vunpack.c.l.b16 %v2271
  %v2793 = vunpack.c.h.b16 %v2271
  %v2794 = vunpack.c.l.b16 %v2272
  %v2795 = vunpack.c.h.b16 %v2272
  %v2796 = vunpack.c.l.b16 %v2273
  %v2797 = vunpack.c.h.b16 %v2273
  %v2798 = vunpack.c.l.b16 %v2274
  %v2799 = vunpack.c.l.b16 %v2275
  %v2800 = vunpack.c.h.b16 %v2275
  %v2801 = vunpack.c.l.b16 %v2276
  %v2802 = vunpack.c.h.b16 %v2276
  %v2803 = vunpack.c.l.b16 %v2277
  %v2804 = vunpack.c.h.b16 %v2277
  %v2805 = vunpack.c.l.b16 %v2278
  %v2806 = vunpack.c.l.b16 %v2279
  %v2807 = vunpack.c.h.b16 %v2279
  %v2808 = vunpack.c.l.b16 %v2280
  %v2809 = vunpack.c.h.b16 %v2280
  %v2810 = vunpack.c.l.b16 %v2281
  %v2811 = vunpack.c.h.b16 %v2281
  %v2812 = vunpack.c.l.b16 %v2282
  %v2813 = vunpack.c.l.b16 %v2283
  %v2814 = vunpack.c.h.b16 %v2283
  %v2815 = vunpack.c.l.b16 %v2284
  %v2816 = vunpack.c.h.b16 %v2284
  %v2817 = vunpack.c.l.b16 %v2285
  %v2818 = vunpack.c.h.b16 %v2285
  %v2819 = vunpack.c.l.b16 %v2286
  %v2820 = vunpack.c.l.b16 %v2287
  %v2821 = vunpack.c.h.b16 %v2287
  %v2822 = vunpack.c.l.b16 %v2288
  %v2823 = vunpack.c.h.b16 %v2288
  %v2824 = vunpack.c.l.b16 %v2289
  %v2825 = vunpack.c.h.b16 %v2289
  %v2826 = vunpack.c.l.b16 %v2290
  %v2827 = vunpack.c.l.b16 %v2291
  %v2828 = vunpack.c.h.b16 %v2291
  %v2829 = vunpack.c.l.b16 %v2292
  %v2830 = vunpack.c.h.b16 %v2292
  %v2831 = vunpack.c.l.b16 %v2293
  %v2832 = vunpack.c.h.b16 %v2293
  %v2833 = vunpack.c.l.b16 %v2294
  %v2834 = vunpack.c.l.b16 %v2295
  %v2835 = vunpack.c.h.b16 %v2295
  %v2836 = vunpack.c.l.b16 %v2296
  %v2837 = vunpack.c.h.b16 %v2296
  %v2838 = vunpack.c.l.b16 %v2297
  %v2839 = vunpack.c.h.b16 %v2297
  %v2840 = vunpack.c.l.b16 %v2298
  %v2841 = vunpack.c.l.b16 %v2299
  %v2842 = vunpack.c.h.b16 %v2299
  %v2843 = vunpack.c.l.b16 %v2300
  %v2844 = vunpack.c.h.b16 %v2300
  %v2845 = vunpack.c.l.b16 %v2301
  %v2846 = vunpack.c.h.b16 %v2301
  %v2847 = vunpack.c.l.b16 %v2302
  %v2848 = vunpack.c.l.b16 %v2303
  %v2849 = vunpack.c.h.b16 %v2303
  %v2850 = vunpack.c.l.b16 %v2304
  %v2851 = vunpack.c.h.b16 %v2304
  %v2852 = vunpack.c.l.b16 %v2305
  %v2853 = vunpack.c.h.b16 %v2305
  %v2854 = vunpack.c.l.b16 %v2306
  %v2855 = vunpack.c.l.b16 %v2307
  %v2856 = vunpack.c.h.b16 %v2307
  %v2857 = vunpack.c.l.b16 %v2308
  %v2858 = vunpack.c.h.b16 %v2308
  %v2859 = vunpack.c.l.b16 %v2309
  %v2860 = vunpack.c.h.b16 %v2309
  %v2861 = vunpack.c.l.b16 %v2310
  %v2862 = vunpack.c.l.b16 %v2311
  %v2863 = vunpack.c.h.b16 %v2311
  %v2864 = vunpack.c.l.b16 %v2312
  %v2865 = vunpack.c.h.b16 %v2312
  %v2866 = vunpack.c.l.b16 %v2313
  %v2867 = vunpack.c.h.b16 %v2313
  %v2868 = vunpack.c.l.b16 %v2314
  %v2869 = vunpack.c.l.b16 %v2315
  %v2870 = vunpack.c.h.b16 %v2315
  %v2871 = vunpack.c.l.b16 %v2316
  %v2872 = vunpack.c.h.b16 %v2316
  %v2873 = vunpack.c.l.b16 %v2317
  %v2874 = vunpack.c.h.b16 %v2317
  %v2875 = vunpack.c.l.b16 %v2318
  %v2876 = vunpack.c.l.b16 %v2319
  %v2877 = vunpack.c.h.b16 %v2319
  %v2878 = vunpack.c.l.b16 %v2320
  %v2879 = vunpack.c.h.b16 %v2320
  %v2880 = vunpack.c.l.b16 %v2321
  %v2881 = vunpack.c.h.b16 %v2321
  %v2882 = vunpack.c.l.b16 %v2322
  %v2883 = vunpack.c.l.b16 %v2323
  %v2884 = vunpack.c.h.b16 %v2323
  %v2885 = vunpack.c.l.b16 %v2324
  %v2886 = vunpack.c.h.b16 %v2324
  %v2887 = vunpack.c.l.b16 %v2325
  %v2888 = vunpack.c.h.b16 %v2325
  %v2889 = vunpack.c.l.b16 %v2326
  %v2890 = vunpack.c.l.b16 %v2327
  %v2891 = vunpack.c.h.b16 %v2327
  %v2892 = vunpack.c.l.b16 %v2328
  %v2893 = vunpack.c.h.b16 %v2328
  %v2894 = vunpack.c.l.b16 %v2329
  %v2895 = vunpack.c.h.b16 %v2329
  %v2896 = vunpack.c.l.b16 %v2330
  %v2897 = vunpack.c.l.b16 %v2331
  %v2898 = vunpack.c.h.b16 %v2331
  %v2899 = vunpack.c.l.b16 %v2332
  %v2900 = vunpack.c.h.b16 %v2332
  %v2901 = vunpack.c.l.b16 %v2333
  %v2902 = vunpack.c.h.b16 %v2333
  %v2903 = vunpack.c.l.b16 %v2334
  %v2904 = vunpack.c.l.b16 %v2335
  %v2905 = vunpack.c.h.b16 %v2335
  %v2906 = vunpack.c.l.b16 %v2336
  %v2907 = vunpack.c.h.b16 %v2336
  %v2908 = vunpack.c.l.b16 %v2337
  %v2909 = vunpack.c.h.b16 %v2337
  %v2910 = vunpack.c.l.b16 %v2338
  %v2911 = vunpack.c.l.b16 %v2339
  %v2912 = vunpack.c.h.b16 %v2339
  %v2913 = vunpack.c.l.b16 %v2340
  %v2914 = vunpack.c.h.b16 %v2340
  %v2915 = vunpack.c.l.b16 %v2341
  %v2916 = vunpack.c.h.b16 %v2341
  %v2917 = vunpack.c.l.b16 %v2342
  %v2918 = vunpack.c.l.b16 %v2343
  %v2919 = vunpack.c.h.b16 %v2343
  %v2920 = vunpack.c.l.b16 %v2344
  %v2921 = vunpack.c.h.b16 %v2344
  %v2922 = vunpack.c.l.b16 %v2345
  %v2923 = vunpack.c.h.b16 %v2345
  %v2924 = vunpack.c.l.b16 %v2346
  %v2925 = vunpack.c.l.b16 %v2347
  %v2926 = vunpack.c.h.b16 %v2347
  %v2927 = vunpack.c.l.b16 %v2348
  %v2928 = vunpack.c.h.b16 %v2348
  %v2929 = vunpack.c.l.b16 %v2349
  %v2930 = vunpack.c.h.b16 %v2349
  %v2931 = vunpack.c.l.b16 %v2350
  %v2932 = vunpack.c.l.b16 %v2351
  %v2933 = vunpack.c.h.b16 %v2351
  %v2934 = vunpack.c.l.b16 %v2352
  %v2935 = vunpack.c.h.b16 %v2352
  %v2936 = vunpack.c.l.b16 %v2353
  %v2937 = vunpack.c.h.b16 %v2353
  %v2938 = vunpack.c.l.b16 %v2354
  %v2939 = vunpack.c.l.b16 %v2355
  %v2940 = vunpack.c.h.b16 %v2355
  %v2941 = vunpack.c.l.b16 %v2356
  %v2942 = vunpack.c.h.b16 %v2356
  %v2943 = vunpack.c.l.b16 %v2357
  %v2944 = vunpack.c.h.b16 %v2357
  %v2945 = vunpack.c.l.b16 %v2358
  %v2946 = vpack.c.b16 %v2603, %v2596
  %v2947 = vpack.c.b16 %v2604, %v2597
  %v2948 = vpack.c.b16 %v2605, %v2598
  %v2949 = vpack.c.b16 %v2606, %v2599
  %v2950 = vpack.c.b16 %v2607, %v2600
  %v2951 = vpack.c.b16 %v2608, %v2601
  %v2952 = vpack.c.b16 %v2609, %v2602
  %v2953 = vpack.c.b16 %v2617, %v2610
  %v2954 = vpack.c.b16 %v2618, %v2611
  %v2955 = vpack.c.b16 %v2619, %v2612
  %v2956 = vpack.c.b16 %v2620, %v2613
  %v2957 = vpack.c.b16 %v2621, %v2614
  %v2958 = vpack.c.b16 %v2622, %v2615
  %v2959 = vpack.c.b16 %v2623, %v2616
  %v2960 = vpack.c.b16 %v2631, %v2624
  %v2961 = vpack.c.b16 %v2632, %v2625
  %v2962 = vpack.c.b16 %v2633, %v2626
  %v2963 = vpack.c.b16 %v2634, %v2627
  %v2964 = vpack.c.b16 %v2635, %v2628
  %v2965 = vpack.c.b16 %v2636, %v2629
  %v2966 = vpack.c.b16 %v2637, %v2630
  %v2967 = vpack.c.b16 %v2645, %v2638
  %v2968 = vpack.c.b16 %v2646, %v2639
  %v2969 = vpack.c.b16 %v2647, %v2640
  %v2970 = vpack.c.b16 %v2648, %v2641
  %v2971 = vpack.c.b16 %v2649, %v2642
  %v2972 = vpack.c.b16 %v2650, %v2643
  %v2973 = vpack.c.b16 %v2651, %v2644
  %v2974 = vpack.c.b16 %v2659, %v2652
  %v2975 = vpack.c.b16 %v2660, %v2653
  %v2976 = vpack.c.b16 %v2661, %v2654
  %v2977 = vpack.c.b16 %v2662, %v2655
  %v2978 = vpack.c.b16 %v2663, %v2656
  %v2979 = vpack.c.b16 %v2664, %v2657
  %v2980 = vpack.c.b16 %v2665, %v2658
  %v2981 = vpack.c.b16 %v2673, %v2666
  %v2982 = vpack.c.b16 %v2674, %v2667
  %v2983 = vpack.c.b16 %v2675, %v2668
  %v2984 = vpack.c.b16 %v2676, %v2669
  %v2985 = vpack.c.b16 %v2677, %v2670
  %v2986 = vpack.c.b16 %v2678, %v2671
  %v2987 = vpack.c.b16 %v2679, %v2672
  %v2988 = vpack.c.b16 %v2687, %v2680
  %v2989 = vpack.c.b16 %v2688, %v2681
  %v2990 = vpack.c.b16 %v2689, %v2682
  %v2991 = vpack.c.b16 %v2690, %v2683
  %v2992 = vpack.c.b16 %v2691, %v2684
  %v2993 = vpack.c.b16 %v2692, %v2685
  %v2994 = vpack.c.b16 %v2693, %v2686
  %v2995 = vpack.c.b16 %v2701, %v2694
  %v2996 = vpack.c.b16 %v2702, %v2695
  %v2997 = vpack.c.b16 %v2703, %v2696
  %v2998 = vpack.c.b16 %v2704, %v2697
  %v2999 = vpack.c.b16 %v2705, %v2698
  %v3000 = vpack.c.b16 %v2706, %v2699
  %v3001 = vpack.c.b16 %v2707, %v2700
  %v3002 = vpack.c.b16 %v2715, %v2708
  %v3003 = vpack.c.b16 %v2716, %v2709
  %v3004 = vpack.c.b16 %v2717, %v2710
  %v3005 = vpack.c.b16 %v2718, %v2711
  %v3006 = vpack.c.b16 %v2719, %v2712
  %v3007 = vpack.c.b16 %v2720, %v2713
  %v3008 = vpack.c.b16 %v2721, %v2714
  %v3009 = vpack.c.b16 %v2729, %v2722
  %v3010 = vpack.c.b16 %v2730, %v2723
  %v3011 = vpack.c.b16 %v2731, %v2724
  %v3012 = vpack.c.b16 %v2732, %v2725
  %v3013 = vpack.c.b16 %v2733, %v2726
  %v3014 = vpack.c.b16 %v2734, %v2727
  %v3015 = vpack.c.b16 %v2735, %v2728
  %v3016 = vpack.c.b16 %v2743, %v2736
  %v3017 = vpack.c.b16 %v2744, %v2737
  %v3018 = vpack.c.b16 %v2745, %v2738
  %v3019 = vpack.c.b16 %v2746, %v2739
  %v3020 = vpack.c.b16 %v2747, %v2740
  %v3021 = vpack.c.b16 %v2748, %v2741
  %v3022 = vpack.c.b16 %v2749, %v2742
  %v3023 = vpack.c.b16 %v2757, %v2750
  %v3024 = vpack.c.b16 %v2758, %v2751
  %v3025 = vpack.c.b16 %v2759, %v2752
  %v3026 = vpack.c.b16 %v2760, %v2753
  %v3027 = vpack.c.b16 %v2761, %v2754
  %v3028 = vpack.c.b16 %v2762, %v2755
  %v3029 = vpack.c.b16 %v2763, %v2756
  %v3030 = vpack.c.b16 %v2771, %v2764
  %v3031 = vpack.c.b16 %v2772, %v2765
  %v3032 = vpack.c.b16 %v2773, %v2766
  %v3033 = vpack.c.b16 %v2774, %v2767
  %v3034 = vpack.c.b16 %v2775, %v2768
  %v3035 = vpack.c.b16 %v2776, %v2769
  %v3036 = vpack.c.b16 %v2777, %v2770
  %v3037 = vpack.c.b16 %v2785, %v2778
  %v3038 = vpack.c.b16 %v2786, %v2779
  %v3039 = vpack.c.b16 %v2787, %v2780
  %v3040 = vpack.c.b16 %v2788, %v2781
  %v3041 = vpack.c.b16 %v2789, %v2782
  %v3042 = vpack.c.b16 %v2790, %v2783
  %v3043 = vpack.c.b16 %v2791, %v2784
  %v3044 = vpack.c.b16 %v2799, %v2792
  %v3045 = vpack.c.b16 %v2800, %v2793
  %v3046 = vpack.c.b16 %v2801, %v2794
  %v3047 = vpack.c.b16 %v2802, %v2795
  %v3048 = vpack.c.b16 %v2803, %v2796
  %v3049 = vpack.c.b16 %v2804, %v2797
  %v3050 = vpack.c.b16 %v2805, %v2798
  %v3051 = vpack.c.b16 %v2813, %v2806
  %v3052 = vpack.c.b16 %v2814, %v2807
  %v3053 = vpack.c.b16 %v2815, %v2808
  %v3054 = vpack.c.b16 %v2816, %v2809
  %v3055 = vpack.c.b16 %v2817, %v2810
  %v3056 = vpack.c.b16 %v2818, %v2811
  %v3057 = vpack.c.b16 %v2819, %v2812
  %v3058 = vpack.c.b16 %v2827, %v2820
  %v3059 = vpack.c.b16 %v2828, %v2821
  %v3060 = vpack.c.b16 %v2829, %v2822
  %v3061 = vpack.c.b16 %v2830, %v2823
  %v3062 = vpack.c.b16 %v2831, %v2824
  %v3063 = vpack.c.b16 %v2832, %v2825
  %v3064 = vpack.c.b16 %v2833, %v2826
  %v3065 = vpack.c.b16 %v2841, %v2834
  %v3066 = vpack.c.b16 %v2842, %v2835
  %v3067 = vpack.c.b16 %v2843, %v2836
  %v3068 = vpack.c.b16 %v2844, %v2837
  %v3069 = vpack.c.b16 %v2845, %v2838
  %v3070 = vpack.c.b16 %v2846, %v2839
  %v3071 = vpack.c.b16 %v2847, %v2840
  %v3072 = vpack.c.b16 %v2855, %v2848
  %v3073 = vpack.c.b16 %v2856, %v2849
  %v3074 = vpack.c.b16 %v2857, %v2850
  %v3075 = vpack.c.b16 %v2858, %v2851
  %v3076 = vpack.c.b16 %v2859, %v2852
  %v3077 = vpack.c.b16 %v2860, %v2853
  %v3078 = vpack.c.b16 %v2861, %v2854
  %v3079 = vpack.c.b16 %v2869, %v2862
  %v3080 = vpack.c.b16 %v2870, %v2863
  %v3081 = vpack.c.b16 %v2871, %v2864
  %v3082 = vpack.c.b16 %v2872, %v2865
  %v3083 = vpack.c.b16 %v2873, %v2866
  %v3084 = vpack.c.b16 %v2874, %v2867
  %v3085 = vpack.c.b16 %v2875, %v2868
  %v3086 = vpack.c.b16 %v2883, %v2876
  %v3087 = vpack.c.b16 %v2884, %v2877
  %v3088 = vpack.c.b16 %v2885, %v2878
  %v3089 = vpack.c.b16 %v2886, %v2879
  %v3090 = vpack.c.b16 %v2887, %v2880
  %v3091 = vpack.c.b16 %v2888, %v2881
  %v3092 = vpack.c.b16 %v2889, %v2882
  %v3093 = vpack.c.b16 %v2897, %v2890
  %v3094 = vpack.c.b16 %v2898, %v2891
  %v3095 = vpack.c.b16 %v2899, %v2892
  %v3096 = vpack.c.b16 %v2900, %v2893
  %v3097 = vpack.c.b16 %v2901, %v2894
  %v3098 = vpack.c.b16 %v2902, %v2895
  %v3099 = vpack.c.b16 %v2903, %v2896
  %v3100 = vpack.c.b16 %v2911, %v2904
  %v3101 = vpack.c.b16 %v2912, %v2905
  %v3102 = vpack.c.b16 %v2913, %v2906
  %v3103 = vpack.c.b16 %v2914, %v2907
  %v3104 = vpack.c.b16 %v2915, %v2908
  %v3105 = vpack.c.b16 %v2916, %v2909
  %v3106 = vpack.c.b16 %v2917, %v2910
  %v3107 = vpack.c.b16 %v2925, %v2918
  %v3108 = vpack.c.b16 %v2926, %v2919
  %v3109 = vpack.c.b16 %v2927, %v2920
  %v3110 = vpack.c.b16 %v2928, %v2921
  %v3111 = vpack.c.b16 %v2929, %v2922
  %v3112 = vpack.c.b16 %v2930, %v2923
  %v3113 = vpack.c.b16 %v2931, %v2924
  %v3114 = vpack.c.b16 %v2939, %v2932
  %v3115 = vpack.c.b16 %v2940, %v2933
  %v3116 = vpack.c.b16 %v2941, %v2934
  %v3117 = vpack.c.b16 %v2942, %v2935
  %v3118 = vpack.c.b16 %v2943, %v2936
  %v3119 = vpack.c.b16 %v2944, %v2937
  %v3120 = vpack.c.b16 %v2945, %v2938
  %v3297 = vsel %vm1250, %v2158, 0
  %3299 = vmatprep.subr.bf16.mxu0 %v2996
  %3300 = vmatpush1.bf16.msra.mxu0 %v2995
  %3301 = vmatprep.subr.bf16.mxu0 %v2989
  %3302 = vmatpush1.bf16.msra.mxu0 %v2988
  %3303 = vmatprep.subr.bf16.mxu0 %v2982
  %3304 = vmatpush1.bf16.msra.mxu0 %v2981
  %3305 = vmatprep.subr.bf16.mxu0 %v2975
  %3306 = vmatpush1.bf16.msra.mxu0 %v2974
  %3307 = vmatprep.subr.bf16.mxu0 %v2968
  %3308 = vmatpush1.bf16.msra.mxu0 %v2967
  %3309 = vmatprep.subr.bf16.mxu0 %v2961
  %3310 = vmatpush1.bf16.msra.mxu0 %v2960
  %3311 = vmatprep.subr.bf16.mxu0 %v2954
  %3312 = vmatpush1.bf16.msra.mxu0 %v2953
  %3313 = vmatprep.subr.bf16.mxu0 %v2947
  %3314 = vmatpush1.bf16.msra.mxu0 %v2946
  %3315 = vmatprep.subr.bf16.mxu0 %v3052
  %3316 = vmatpush2.bf16.msra.mxu0 %v3051
  %3317 = vmatprep.subr.bf16.mxu0 %v3045
  %3318 = vmatpush2.bf16.msra.mxu0 %v3044
  %3319 = vmatprep.subr.bf16.mxu0 %v3038
  %3320 = vmatpush2.bf16.msra.mxu0 %v3037
  %3321 = vmatprep.subr.bf16.mxu0 %v3031
  %3322 = vmatpush2.bf16.msra.mxu0 %v3030
  %3323 = vmatprep.subr.bf16.mxu0 %v3024
  %3324 = vmatpush2.bf16.msra.mxu0 %v3023
  %3325 = vmatprep.subr.bf16.mxu0 %v3017
  %3326 = vmatpush2.bf16.msra.mxu0 %v3016
  %3327 = vmatprep.subr.bf16.mxu0 %v3010
  %3328 = vmatpush2.bf16.msra.mxu0 %v3009
  %3329 = vmatprep.subr.bf16.mxu0 %v3003
  %3330 = vmatpush2.bf16.msra.mxu0 %v3002
  %3331 = vmatprep.mubr.bf16.mxu0 %v2156
  %3332 = vmatmul.mubr.bf16.gmra.mxu0 %v2155
  %v3333 = vpop.f32.mrf.mxu0
  %v3334 = vadd.f32 %v2364, %v3333
  %v3335 = vpop.f32.mrf.mxu0
  %v3336 = vadd.f32 %v2368, %v3335
  %v3337 = vpop.f32.mrf.mxu0
  %v3338 = vpop.f32.mrf.mxu0
  %3339 = vdwg.mxu0
  %3340 = vmatprep.subr.bf16.mxu0 %v3108
  %3341 = vmatpush1.bf16.msra.mxu0 %v3107
  %3342 = vmatprep.subr.bf16.mxu0 %v3101
  %3343 = vmatpush1.bf16.msra.mxu0 %v3100
  %3344 = vmatprep.subr.bf16.mxu0 %v3094
  %3345 = vmatpush1.bf16.msra.mxu0 %v3093
  %3346 = vmatprep.subr.bf16.mxu0 %v3087
  %3347 = vmatpush1.bf16.msra.mxu0 %v3086
  %3348 = vmatprep.subr.bf16.mxu0 %v3080
  %3349 = vmatpush1.bf16.msra.mxu0 %v3079
  %3350 = vmatprep.subr.bf16.mxu0 %v3073
  %3351 = vmatpush1.bf16.msra.mxu0 %v3072
  %3352 = vmatprep.subr.bf16.mxu0 %v3066
  %3353 = vmatpush1.bf16.msra.mxu0 %v3065
  %3354 = vmatprep.subr.bf16.mxu0 %v3059
  %3355 = vmatpush1.bf16.msra.mxu0 %v3058
  %3356 = vmatprep.subr.bf16.mxu0 0
  %3357 = vmatpush2.bf16.msra.mxu0 0
  %3358 = vmatprep.subr.bf16.mxu0 0
  %3359 = vmatpush2.bf16.msra.mxu0 0
  %3360 = vmatprep.subr.bf16.mxu0 0
  %3361 = vmatpush2.bf16.msra.mxu0 0
  %3362 = vmatprep.subr.bf16.mxu0 0
  %3363 = vmatpush2.bf16.msra.mxu0 0
  %3364 = vmatprep.subr.bf16.mxu0 0
  %3365 = vmatpush2.bf16.msra.mxu0 0
  %3366 = vmatprep.subr.bf16.mxu0 0
  %3367 = vmatpush2.bf16.msra.mxu0 0
  %3368 = vmatprep.subr.bf16.mxu0 0
  %3369 = vmatpush2.bf16.msra.mxu0 0
  %3370 = vmatprep.subr.bf16.mxu0 %v3115
  %3371 = vmatpush2.bf16.msra.mxu0 %v3114
  %3372 = vmatprep.mubr.bf16.mxu0 %v3297
  %3373 = vmatmul.mubr.bf16.gmra.mxu0 %v2157
  %v3374 = vpop.f32.mrf.mxu0
  %v3375 = vadd.f32 %v3334, %v3374
  %v3376 = vpop.f32.mrf.mxu0
  %v3377 = vadd.f32 %v3336, %v3376
  %v3378 = vpop.f32.mrf.mxu0
  %v3379 = vpop.f32.mrf.mxu0
  %3380 = vdwg.mxu0
  %3381 = vmatprep.subr.bf16.mxu0 %v2998
  %3382 = vmatpush1.bf16.msra.mxu0 %v2997
  %3383 = vmatprep.subr.bf16.mxu0 %v2991
  %3384 = vmatpush1.bf16.msra.mxu0 %v2990
  %3385 = vmatprep.subr.bf16.mxu0 %v2984
  %3386 = vmatpush1.bf16.msra.mxu0 %v2983
  %3387 = vmatprep.subr.bf16.mxu0 %v2977
  %3388 = vmatpush1.bf16.msra.mxu0 %v2976
  %3389 = vmatprep.subr.bf16.mxu0 %v2970
  %3390 = vmatpush1.bf16.msra.mxu0 %v2969
  %3391 = vmatprep.subr.bf16.mxu0 %v2963
  %3392 = vmatpush1.bf16.msra.mxu0 %v2962
  %3393 = vmatprep.subr.bf16.mxu0 %v2956
  %3394 = vmatpush1.bf16.msra.mxu0 %v2955
  %3395 = vmatprep.subr.bf16.mxu0 %v2949
  %3396 = vmatpush1.bf16.msra.mxu0 %v2948
  %3397 = vmatprep.subr.bf16.mxu0 %v3054
  %3398 = vmatpush2.bf16.msra.mxu0 %v3053
  %3399 = vmatprep.subr.bf16.mxu0 %v3047
  %3400 = vmatpush2.bf16.msra.mxu0 %v3046
  %3401 = vmatprep.subr.bf16.mxu0 %v3040
  %3402 = vmatpush2.bf16.msra.mxu0 %v3039
  %3403 = vmatprep.subr.bf16.mxu0 %v3033
  %3404 = vmatpush2.bf16.msra.mxu0 %v3032
  %3405 = vmatprep.subr.bf16.mxu0 %v3026
  %3406 = vmatpush2.bf16.msra.mxu0 %v3025
  %3407 = vmatprep.subr.bf16.mxu0 %v3019
  %3408 = vmatpush2.bf16.msra.mxu0 %v3018
  %3409 = vmatprep.subr.bf16.mxu0 %v3012
  %3410 = vmatpush2.bf16.msra.mxu0 %v3011
  %3411 = vmatprep.subr.bf16.mxu0 %v3005
  %3412 = vmatpush2.bf16.msra.mxu0 %v3004
  %3413 = vmatprep.mubr.bf16.mxu0 %v2156
  %3414 = vmatmul.mubr.bf16.gmra.mxu0 %v2155
  %v3415 = vpop.f32.mrf.mxu0
  %v3416 = vadd.f32 %v2372, %v3415
  %v3417 = vpop.f32.mrf.mxu0
  %v3418 = vadd.f32 %v2376, %v3417
  %v3419 = vpop.f32.mrf.mxu0
  %v3420 = vpop.f32.mrf.mxu0
  %3421 = vdwg.mxu0
  %3422 = vmatprep.subr.bf16.mxu0 %v3110
  %3423 = vmatpush1.bf16.msra.mxu0 %v3109
  %3424 = vmatprep.subr.bf16.mxu0 %v3103
  %3425 = vmatpush1.bf16.msra.mxu0 %v3102
  %3426 = vmatprep.subr.bf16.mxu0 %v3096
  %3427 = vmatpush1.bf16.msra.mxu0 %v3095
  %3428 = vmatprep.subr.bf16.mxu0 %v3089
  %3429 = vmatpush1.bf16.msra.mxu0 %v3088
  %3430 = vmatprep.subr.bf16.mxu0 %v3082
  %3431 = vmatpush1.bf16.msra.mxu0 %v3081
  %3432 = vmatprep.subr.bf16.mxu0 %v3075
  %3433 = vmatpush1.bf16.msra.mxu0 %v3074
  %3434 = vmatprep.subr.bf16.mxu0 %v3068
  %3435 = vmatpush1.bf16.msra.mxu0 %v3067
  %3436 = vmatprep.subr.bf16.mxu0 %v3061
  %3437 = vmatpush1.bf16.msra.mxu0 %v3060
  %3438 = vmatprep.subr.bf16.mxu0 0
  %3439 = vmatpush2.bf16.msra.mxu0 0
  %3440 = vmatprep.subr.bf16.mxu0 0
  %3441 = vmatpush2.bf16.msra.mxu0 0
  %3442 = vmatprep.subr.bf16.mxu0 0
  %3443 = vmatpush2.bf16.msra.mxu0 0
  %3444 = vmatprep.subr.bf16.mxu0 0
  %3445 = vmatpush2.bf16.msra.mxu0 0
  %3446 = vmatprep.subr.bf16.mxu0 0
  %3447 = vmatpush2.bf16.msra.mxu0 0
  %3448 = vmatprep.subr.bf16.mxu0 0
  %3449 = vmatpush2.bf16.msra.mxu0 0
  %3450 = vmatprep.subr.bf16.mxu0 0
  %3451 = vmatpush2.bf16.msra.mxu0 0
  %3452 = vmatprep.subr.bf16.mxu0 %v3117
  %3453 = vmatpush2.bf16.msra.mxu0 %v3116
  %3454 = vmatprep.mubr.bf16.mxu0 %v3297
  %3455 = vmatmul.mubr.bf16.gmra.mxu0 %v2157
  %v3456 = vpop.f32.mrf.mxu0
  %v3457 = vadd.f32 %v3416, %v3456
  %v3458 = vpop.f32.mrf.mxu0
  %v3459 = vadd.f32 %v3418, %v3458
  %v3460 = vpop.f32.mrf.mxu0
  %v3461 = vpop.f32.mrf.mxu0
  %3462 = vdwg.mxu0
  %3463 = vmatprep.subr.bf16.mxu0 %v3000
  %3464 = vmatpush1.bf16.msra.mxu0 %v2999
  %3465 = vmatprep.subr.bf16.mxu0 %v2993
  %3466 = vmatpush1.bf16.msra.mxu0 %v2992
  %3467 = vmatprep.subr.bf16.mxu0 %v2986
  %3468 = vmatpush1.bf16.msra.mxu0 %v2985
  %3469 = vmatprep.subr.bf16.mxu0 %v2979
  %3470 = vmatpush1.bf16.msra.mxu0 %v2978
  %3471 = vmatprep.subr.bf16.mxu0 %v2972
  %3472 = vmatpush1.bf16.msra.mxu0 %v2971
  %3473 = vmatprep.subr.bf16.mxu0 %v2965
  %3474 = vmatpush1.bf16.msra.mxu0 %v2964
  %3475 = vmatprep.subr.bf16.mxu0 %v2958
  %3476 = vmatpush1.bf16.msra.mxu0 %v2957
  %3477 = vmatprep.subr.bf16.mxu0 %v2951
  %3478 = vmatpush1.bf16.msra.mxu0 %v2950
  %3479 = vmatprep.subr.bf16.mxu0 %v3056
  %3480 = vmatpush2.bf16.msra.mxu0 %v3055
  %3481 = vmatprep.subr.bf16.mxu0 %v3049
  %3482 = vmatpush2.bf16.msra.mxu0 %v3048
  %3483 = vmatprep.subr.bf16.mxu0 %v3042
  %3484 = vmatpush2.bf16.msra.mxu0 %v3041
  %3485 = vmatprep.subr.bf16.mxu0 %v3035
  %3486 = vmatpush2.bf16.msra.mxu0 %v3034
  %3487 = vmatprep.subr.bf16.mxu0 %v3028
  %3488 = vmatpush2.bf16.msra.mxu0 %v3027
  %3489 = vmatprep.subr.bf16.mxu0 %v3021
  %3490 = vmatpush2.bf16.msra.mxu0 %v3020
  %3491 = vmatprep.subr.bf16.mxu0 %v3014
  %3492 = vmatpush2.bf16.msra.mxu0 %v3013
  %3493 = vmatprep.subr.bf16.mxu0 %v3007
  %3494 = vmatpush2.bf16.msra.mxu0 %v3006
  %3495 = vmatprep.mubr.bf16.mxu0 %v2156
  %3496 = vmatmul.mubr.bf16.gmra.mxu0 %v2155
  %v3497 = vpop.f32.mrf.mxu0
  %v3498 = vadd.f32 %v2380, %v3497
  %v3499 = vpop.f32.mrf.mxu0
  %v3500 = vadd.f32 %v2384, %v3499
  %v3501 = vpop.f32.mrf.mxu0
  %v3502 = vpop.f32.mrf.mxu0
  %3503 = vdwg.mxu0
  %3504 = vmatprep.subr.bf16.mxu0 %v3112
  %3505 = vmatpush1.bf16.msra.mxu0 %v3111
  %3506 = vmatprep.subr.bf16.mxu0 %v3105
  %3507 = vmatpush1.bf16.msra.mxu0 %v3104
  %3508 = vmatprep.subr.bf16.mxu0 %v3098
  %3509 = vmatpush1.bf16.msra.mxu0 %v3097
  %3510 = vmatprep.subr.bf16.mxu0 %v3091
  %3511 = vmatpush1.bf16.msra.mxu0 %v3090
  %3512 = vmatprep.subr.bf16.mxu0 %v3084
  %3513 = vmatpush1.bf16.msra.mxu0 %v3083
  %3514 = vmatprep.subr.bf16.mxu0 %v3077
  %3515 = vmatpush1.bf16.msra.mxu0 %v3076
  %3516 = vmatprep.subr.bf16.mxu0 %v3070
  %3517 = vmatpush1.bf16.msra.mxu0 %v3069
  %3518 = vmatprep.subr.bf16.mxu0 %v3063
  %3519 = vmatpush1.bf16.msra.mxu0 %v3062
  %3520 = vmatprep.subr.bf16.mxu0 0
  %3521 = vmatpush2.bf16.msra.mxu0 0
  %3522 = vmatprep.subr.bf16.mxu0 0
  %3523 = vmatpush2.bf16.msra.mxu0 0
  %3524 = vmatprep.subr.bf16.mxu0 0
  %3525 = vmatpush2.bf16.msra.mxu0 0
  %3526 = vmatprep.subr.bf16.mxu0 0
  %3527 = vmatpush2.bf16.msra.mxu0 0
  %3528 = vmatprep.subr.bf16.mxu0 0
  %3529 = vmatpush2.bf16.msra.mxu0 0
  %3530 = vmatprep.subr.bf16.mxu0 0
  %3531 = vmatpush2.bf16.msra.mxu0 0
  %3532 = vmatprep.subr.bf16.mxu0 0
  %3533 = vmatpush2.bf16.msra.mxu0 0
  %3534 = vmatprep.subr.bf16.mxu0 %v3119
  %3535 = vmatpush2.bf16.msra.mxu0 %v3118
  %3536 = vmatprep.mubr.bf16.mxu0 %v3297
  %3537 = vmatmul.mubr.bf16.gmra.mxu0 %v2157
  %v3538 = vpop.f32.mrf.mxu0
  %v3539 = vadd.f32 %v3498, %v3538
  %v3540 = vpop.f32.mrf.mxu0
  %v3541 = vadd.f32 %v3500, %v3540
  %v3542 = vpop.f32.mrf.mxu0
  %v3543 = vpop.f32.mrf.mxu0
  %3544 = vdwg.mxu0
  %3545 = vmatprep.subr.bf16.mxu0 0
  %3546 = vmatpush1.bf16.msra.mxu0 %v3001
  %3547 = vmatprep.subr.bf16.mxu0 0
  %3548 = vmatpush1.bf16.msra.mxu0 %v2994
  %3549 = vmatprep.subr.bf16.mxu0 0
  %3550 = vmatpush1.bf16.msra.mxu0 %v2987
  %3551 = vmatprep.subr.bf16.mxu0 0
  %3552 = vmatpush1.bf16.msra.mxu0 %v2980
  %3553 = vmatprep.subr.bf16.mxu0 0
  %3554 = vmatpush1.bf16.msra.mxu0 %v2973
  %3555 = vmatprep.subr.bf16.mxu0 0
  %3556 = vmatpush1.bf16.msra.mxu0 %v2966
  %3557 = vmatprep.subr.bf16.mxu0 0
  %3558 = vmatpush1.bf16.msra.mxu0 %v2959
  %3559 = vmatprep.subr.bf16.mxu0 0
  %3560 = vmatpush1.bf16.msra.mxu0 %v2952
  %3561 = vmatprep.subr.bf16.mxu0 0
  %3562 = vmatpush2.bf16.msra.mxu0 %v3057
  %3563 = vmatprep.subr.bf16.mxu0 0
  %3564 = vmatpush2.bf16.msra.mxu0 %v3050
  %3565 = vmatprep.subr.bf16.mxu0 0
  %3566 = vmatpush2.bf16.msra.mxu0 %v3043
  %3567 = vmatprep.subr.bf16.mxu0 0
  %3568 = vmatpush2.bf16.msra.mxu0 %v3036
  %3569 = vmatprep.subr.bf16.mxu0 0
  %3570 = vmatpush2.bf16.msra.mxu0 %v3029
  %3571 = vmatprep.subr.bf16.mxu0 0
  %3572 = vmatpush2.bf16.msra.mxu0 %v3022
  %3573 = vmatprep.subr.bf16.mxu0 0
  %3574 = vmatpush2.bf16.msra.mxu0 %v3015
  %3575 = vmatprep.subr.bf16.mxu0 0
  %3576 = vmatpush2.bf16.msra.mxu0 %v3008
  %3577 = vmatprep.mubr.bf16.mxu0 %v2156
  %3578 = vmatmul.mubr.bf16.gmra.mxu0 %v2155
  %v3579 = vpop.f32.mrf.mxu0
  %v3580 = vadd.f32 %v2388, %v3579
  %v3581 = vpop.f32.mrf.mxu0
  %v3582 = vpop.f32.mrf.mxu0
  %v3583 = vpop.f32.mrf.mxu0
  %3584 = vdwg.mxu0
  %3585 = vmatprep.subr.bf16.mxu0 0
  %3586 = vmatpush1.bf16.msra.mxu0 %v3113
  %3587 = vmatprep.subr.bf16.mxu0 0
  %3588 = vmatpush1.bf16.msra.mxu0 %v3106
  %3589 = vmatprep.subr.bf16.mxu0 0
  %3590 = vmatpush1.bf16.msra.mxu0 %v3099
  %3591 = vmatprep.subr.bf16.mxu0 0
  %3592 = vmatpush1.bf16.msra.mxu0 %v3092
  %3593 = vmatprep.subr.bf16.mxu0 0
  %3594 = vmatpush1.bf16.msra.mxu0 %v3085
  %3595 = vmatprep.subr.bf16.mxu0 0
  %3596 = vmatpush1.bf16.msra.mxu0 %v3078
  %3597 = vmatprep.subr.bf16.mxu0 0
  %3598 = vmatpush1.bf16.msra.mxu0 %v3071
  %3599 = vmatprep.subr.bf16.mxu0 0
  %3600 = vmatpush1.bf16.msra.mxu0 %v3064
  %3601 = vmatprep.subr.bf16.mxu0 0
  %3602 = vmatpush2.bf16.msra.mxu0 0
  %3603 = vmatprep.subr.bf16.mxu0 0
  %3604 = vmatpush2.bf16.msra.mxu0 0
  %3605 = vmatprep.subr.bf16.mxu0 0
  %3606 = vmatpush2.bf16.msra.mxu0 0
  %3607 = vmatprep.subr.bf16.mxu0 0
  %3608 = vmatpush2.bf16.msra.mxu0 0
  %3609 = vmatprep.subr.bf16.mxu0 0
  %3610 = vmatpush2.bf16.msra.mxu0 0
  %3611 = vmatprep.subr.bf16.mxu0 0
  %3612 = vmatpush2.bf16.msra.mxu0 0
  %3613 = vmatprep.subr.bf16.mxu0 0
  %3614 = vmatpush2.bf16.msra.mxu0 0
  %3615 = vmatprep.subr.bf16.mxu0 0
  %3616 = vmatpush2.bf16.msra.mxu0 %v3120
  %3617 = vmatprep.mubr.bf16.mxu0 %v3297
  %3618 = vmatmul.mubr.bf16.gmra.mxu0 %v2157
  %v3619 = vpop.f32.mrf.mxu0
  %v3620 = vadd.f32 %v3580, %v3619
  %v3621 = vpop.f32.mrf.mxu0
  %v3622 = vpop.f32.mrf.mxu0
  %v3623 = vpop.f32.mrf.mxu0
  %3624 = vdwg.mxu0
  %v3625 = vsub.f32 0.0, %v3375
  %v3626 = vsub.f32 0.0, %v3377
  %v3627 = vsub.f32 0.0, %v3457
  %v3628 = vsub.f32 0.0, %v3459
  %v3629 = vsub.f32 0.0, %v3539
  %v3630 = vsub.f32 0.0, %v3541
  %v3631 = vsub.f32 0.0, %v3620
  %v3632 = vmul.f32 %v3625, 1.442695
  %v3633 = vpow.pop %v3632
  %v3634 = vmul.f32 %v3626, 1.442695
  %v3635 = vpow.pop %v3634
  %v3636 = vmul.f32 %v3627, 1.442695
  %v3637 = vpow.pop %v3636
  %v3638 = vmul.f32 %v3628, 1.442695
  %v3639 = vpow.pop %v3638
  %v3640 = vmul.f32 %v3629, 1.442695
  %v3641 = vpow.pop %v3640
  %v3642 = vmul.f32 %v3630, 1.442695
  %v3643 = vpow.pop %v3642
  %v3644 = vmul.f32 %v3631, 1.442695
  %v3645 = vpow.pop %v3644
  %v3646 = vadd.f32 %v3633, 1.0
  %v3647 = vadd.f32 %v3635, 1.0
  %v3648 = vadd.f32 %v3637, 1.0
  %v3649 = vadd.f32 %v3639, 1.0
  %v3650 = vadd.f32 %v3641, 1.0
  %v3651 = vadd.f32 %v3643, 1.0
  %v3652 = vadd.f32 %v3645, 1.0
  %v3653 = vrcp.pop %v3646
  %v3654 = vrcp.pop %v3647
  %v3655 = vrcp.pop %v3648
  %v3656 = vrcp.pop %v3649
  %v3657 = vrcp.pop %v3650
  %v3658 = vrcp.pop %v3651
  %v3659 = vrcp.pop %v3652
  %3660 = vst [vmem:[%s10] sm:$0xff] %v3653
  %3661 = vst [vmem:[%s10 + $0x8] sm:$0xff] %v3654
  %3662 = vst [vmem:[%s10 + $0x10] sm:$0xff] %v3655
  %3663 = vst [vmem:[%s10 + $0x18] sm:$0xff] %v3656
  %3664 = vst [vmem:[%s10 + $0x20] sm:$0xff] %v3657
  %3665 = vst [vmem:[%s10 + $0x28] sm:$0xff] %v3658
  %3666 = vst [vmem:[%s10 + $0x30] sm:$0xff] %v3659
  %3667 = vst [vmem:[%s11] sm:$0xff] %v1981
  %3668 = vst [vmem:[%s11 + $0x8] sm:$0xff] %v1983
  // Predicated region
  $region42: #{vae_forward.1} parent=0 // pred_check
    _
  $region43: #{vae_forward.1} parent=0 // pred_check_branch
    %3670 = sbr.rel (0) target = $region45
  $region44: #{vae_forward.1} parent=0 // pred_region
    _
  $region45: #{vae_forward.1} parent=0 // pred_fallthru
    _
  // Predicated region
  $region46: #{vae_forward.1} parent=0 // pred_check
    _
  $region47: #{vae_forward.1} parent=0 // pred_check_branch
    %3672 = sbr.rel (0) target = $region49
  $region48: #{vae_forward.1} parent=0 // pred_region
    _
  $region49: #{vae_forward.1} parent=0 // pred_fallthru
    _
  // Predicated region
  $region50: #{vae_forward.1} parent=0 // pred_check
    _
  $region51: #{vae_forward.1} parent=0 // pred_check_branch
    %3674 = sbr.rel (0) target = $region53
  $region52: #{vae_forward.1} parent=0 // pred_region
    _
  $region53: #{vae_forward.1} parent=0 // pred_fallthru
    _
  // Predicated region
  $region54: #{vae_forward.1} parent=0 // pred_check
    _
  $region55: #{vae_forward.1} parent=0 // pred_check_branch
    %3676 = sbr.rel (0) target = $region57
  $region56: #{vae_forward.1} parent=0 // pred_region
    _
  $region57: #{vae_forward.1} parent=0 // pred_fallthru
    _

</llo_original>
